<compile_context>
chip_gen: v6e
topology: v6e:2x2x1
jax: 0.10.0
libtpu: 0.0.40
codegen_flags: <defaults>
</compile_context>

<pallas_src>
import functools

import jax
import jax.numpy as jnp
from jax.experimental import pallas as pl
from jax.experimental.pallas import tpu as pltpu

BN_EPS = 1e-5
ENC_DIM = 512     # hparams.arch == 'resnet18'  ->  encoder_dim = 512
PROJ_DIM = 128
MOMENTUM = 0.999
K_LANE = 128                                   # pad conv patch features to a full lane tile
VMEM_LIMIT_BYTES = 48 * 1024 * 1024            # fits v7x (64 MiB) and v5e/v6e (128 MiB)
CACHE_BUDGET_BYTES = 40 * 1024 * 1024          # VMEM budget for the conv activation cache


def _row_tile_cap():
    """Row-tile cap per generation: 256 on v7x (64 MiB VMEM), 512 on v5e/v6e."""
    try:
        return 256 if pltpu.get_tpu_info().vmem_capacity_bytes <= 64 * 2 ** 20 else 512
    except Exception:
        return 256


# ----------------------------------------------------------------------------
# Fused Pallas kernel: conv-stem encoder + projection head
# ----------------------------------------------------------------------------
def _fused_kernel(patches_ref, wc_ref, g_ref, be_ref,
                  w1_ref, g1_ref, b1_ref, w2_ref, g2_ref, b2_ref,
                  h_ref, z_ref,
                  cache, ssum, cssq, scale_s, shift_s, pool,
                  *, batch, rows_per_batch, tm):
    p = pl.program_id(0)                       # 0: conv+sum, 1: centered var, 2: apply
    t = pl.program_id(1)                       # row tile
    n_rows = batch * rows_per_batch            # static
    nt = n_rows // tm                          # static
    inv_n = 1.0 / float(n_rows)
    row0 = pl.multiple_of(t * tm, tm)

    # ----- pass 0: conv tile (bf16 MXU, f32 acc) -> VMEM cache, per-channel sum -----
    @pl.when(p == 0)
    def _conv_pass():
        @pl.when(t == 0)
        def _():
            ssum[...] = jnp.zeros_like(ssum)
        conv = jnp.dot(patches_ref[...], wc_ref[...],
                       preferred_element_type=jnp.float32)          # (tm, ENC_DIM) f32
        cache[pl.ds(row0, tm), :] = conv
        ssum[...] += jnp.sum(conv, axis=0, keepdims=True)

    # ----- pass 1: centered BatchNorm2d variance from the cache; hoist scale/shift ---
    @pl.when(p == 1)
    def _var_pass():
        @pl.when(t == 0)
        def _():
            cssq[...] = jnp.zeros_like(cssq)
        mean = ssum[...] * inv_n
        c = cache[pl.ds(row0, tm), :] - mean
        cssq[...] += jnp.sum(c * c, axis=0, keepdims=True)

        @pl.when(t == nt - 1)
        def _():
            var = cssq[...] * inv_n                                  # biased, as in BN fwd
            sc = g_ref[...] * jax.lax.rsqrt(var + BN_EPS)
            scale_s[...] = sc
            shift_s[...] = be_ref[...] - mean * sc

    # ----- pass 2: BN apply + ReLU + per-batch pool; projection on final grid step ---
    @pl.when(p == 2)
    def _apply_pass():
        act = cache[pl.ds(row0, tm), :] * scale_s[...] + shift_s[...]
        act = jnp.maximum(act, 0.0)

        if tm % rows_per_batch == 0:
            # Row tile covers whole batch elements -> segmented reduction, no accumulate.
            bpt = tm // rows_per_batch
            seg = jnp.concatenate(
                [jnp.sum(act[i * rows_per_batch:(i + 1) * rows_per_batch, :],
                         axis=0, keepdims=True) for i in range(bpt)], axis=0)
            if nt == 1:
                pool[...] = seg
            else:
                pool[pl.ds(t * bpt, bpt), :] = seg
        else:
            # rows_per_batch % tm == 0: several row tiles per batch element.
            @pl.when(t == 0)
            def _():
                pool[...] = jnp.zeros_like(pool)
            b = row0 // rows_per_batch
            pool[pl.ds(b, 1), :] += jnp.sum(act, axis=0, keepdims=True)

        # Final grid step: write h once (full block) and run the projection head on
        # the VMEM-resident pooled features.
        @pl.when(t == nt - 1)
        def _project():
            h = pool[...] * (1.0 / float(rows_per_batch))            # (B, ENC_DIM) f32
            h_ref[...] = h
            z1 = jnp.dot(h.astype(jnp.bfloat16), w1_ref[...],
                         preferred_element_type=jnp.float32)
            m1 = jnp.mean(z1, axis=0, keepdims=True)
            c1 = z1 - m1
            v1 = jnp.mean(c1 * c1, axis=0, keepdims=True)
            a1 = c1 * jax.lax.rsqrt(v1 + BN_EPS) * g1_ref[...] + b1_ref[...]
            a1 = jnp.maximum(a1, 0.0)
            z2 = jnp.dot(a1.astype(jnp.bfloat16), w2_ref[...],
                         preferred_element_type=jnp.float32)
            m2 = jnp.mean(z2, axis=0, keepdims=True)
            c2 = z2 - m2
            v2 = jnp.mean(c2 * c2, axis=0, keepdims=True)
            # BatchNorm1dNoBias: bias exists (requires_grad=False), zero at init, added.
            z_ref[...] = c2 * jax.lax.rsqrt(v2 + BN_EPS) * g2_ref[...] + b2_ref[...]


# ----------------------------------------------------------------------------
# Host-side glue: im2col, tiling, pallas_call wiring
# ----------------------------------------------------------------------------
def _im2col(x):
    """x NCHW -> (B*OH*OW, C*9) patch rows for conv3x3 stride 2, pad 1 (b-major rows)."""
    B, C, H, W = x.shape
    OH, OW = H // 2, W // 2
    xp = jnp.pad(x, ((0, 0), (0, 0), (1, 1), (1, 1)))
    # feature ordering (c, kh, kw) matches PyTorch weight.reshape(OC, C*KH*KW)
    cols = jnp.stack(
        [xp[:, :, kh:kh + 2 * OH:2, kw:kw + 2 * OW:2]
         for kh in range(3) for kw in range(3)],
        axis=2)                                               # (B, C, 9, OH, OW)
    patches = cols.reshape(B, C * 9, OH, OW).transpose(0, 2, 3, 1)
    return patches.reshape(B * OH * OW, C * 9)                # (B*S, K)


def _pick_row_tile(n_rows, rows_per_batch, cap):
    """Largest row tile <= cap dividing n_rows, sublane-aligned, batch-segmentable."""
    for t in range(min(n_rows, cap), 0, -1):
        if n_rows % t:
            continue
        if t % 8 and t != n_rows:
            continue
        if t % rows_per_batch and rows_per_batch % t:
            continue
        return t
    return n_rows


def _const_spec(block_shape):
    """Resident constant operand (fetched once); single-buffer when supported."""
    idx = lambda p, t: (0, 0)
    try:
        return pl.BlockSpec(block_shape, idx, pipeline_mode=pl.Buffered(1))
    except TypeError:            # older Pallas without pipeline_mode: default buffering
        return pl.BlockSpec(block_shape, idx)


@jax.jit
def encode_project_apply(enc_params, proj_params, x):
    """Stand-in convnet(x) + projection, fused: returns (h (B,512), z (B,128))."""
    B, C, H, W = x.shape
    OH, OW = H // 2, W // 2
    S = OH * OW                        # spatial rows per batch element
    n_rows = B * S

    # bf16 im2col (halves the 9x patch blow-up HBM traffic vs f32).
    # TODO(synk): gather the 3x3 windows in-kernel from x kept in HBM (pl.ANY +
    # manual DMA) to avoid materializing the im2col patches in HBM at all.
    patches = _im2col(x.astype(jnp.bfloat16))                  # (n_rows, C*9) bf16
    K = patches.shape[1]
    k_pad = max(K_LANE, -(-K // K_LANE) * K_LANE)
    patches = jnp.pad(patches, ((0, 0), (0, k_pad - K)))       # lane-dense K

    wc = jnp.pad(enc_params["conv_w_t"],
                 ((0, k_pad - K), (0, 0))).astype(jnp.bfloat16)  # (k_pad, ENC_DIM)
    g = enc_params["bn_g"].reshape(1, ENC_DIM)
    be = enc_params["bn_b"].reshape(1, ENC_DIM)
    w1 = proj_params["fc1_w_t"].astype(jnp.bfloat16)             # (ENC_DIM, ENC_DIM)
    g1 = proj_params["bn1_g"].reshape(1, ENC_DIM)
    b1 = proj_params["bn1_b"].reshape(1, ENC_DIM)
    w2 = proj_params["fc2_w_t"].astype(jnp.bfloat16)             # (ENC_DIM, PROJ_DIM)
    g2 = proj_params["bn2_g"].reshape(1, PROJ_DIM)
    b2 = proj_params["bn2_b"].reshape(1, PROJ_DIM)

    cache_bytes = n_rows * ENC_DIM * 4
    if cache_bytes > CACHE_BUDGET_BYTES:
        # TODO(synk): streaming fallback (recompute conv in the apply pass, or the
        # Gram-matrix stats trick) for activation volumes exceeding the VMEM budget.
        raise NotImplementedError("conv activation cache exceeds the VMEM budget")

    tm = _pick_row_tile(n_rows, S, _row_tile_cap())
    nt = n_rows // tm

    kernel = functools.partial(_fused_kernel, batch=B, rows_per_batch=S, tm=tm)

    # patches are only DMA'd during pass 0; passes 1/2 keep the last block resident
    # (index map does not change), so they stream from the VMEM cache only.
    patches_spec = pl.BlockSpec(
        (tm, k_pad), lambda p, t: (jnp.where(p == 0, t, nt - 1), 0))

    in_specs = [
        patches_spec,                           # patches (row-tiled, bf16)
        _const_spec((k_pad, ENC_DIM)),          # conv weight
        _const_spec((1, ENC_DIM)),              # bn2d gamma
        _const_spec((1, ENC_DIM)),              # bn2d beta
        _const_spec((ENC_DIM, ENC_DIM)),        # fc1 weight
        _const_spec((1, ENC_DIM)),              # bn1 gamma
        _const_spec((1, ENC_DIM)),              # bn1 beta
        _const_spec((ENC_DIM, PROJ_DIM)),       # fc2 weight
        _const_spec((1, PROJ_DIM)),             # bn2 gamma
        _const_spec((1, PROJ_DIM)),             # bn2 beta (frozen at 0)
    ]
    out_specs = [
        pl.BlockSpec((B, ENC_DIM), lambda p, t: (0, 0)),        # h (written once at end)
        pl.BlockSpec((B, PROJ_DIM), lambda p, t: (0, 0)),       # z
    ]
    out_shape = (jax.ShapeDtypeStruct((B, ENC_DIM), jnp.float32),
                 jax.ShapeDtypeStruct((B, PROJ_DIM), jnp.float32))
    scratch = [
        pltpu.VMEM((n_rows, ENC_DIM), jnp.float32),   # conv activation cache
        pltpu.VMEM((1, ENC_DIM), jnp.float32),        # per-channel sum
        pltpu.VMEM((1, ENC_DIM), jnp.float32),        # per-channel centered sum-of-squares
        pltpu.VMEM((1, ENC_DIM), jnp.float32),        # hoisted BN scale
        pltpu.VMEM((1, ENC_DIM), jnp.float32),        # hoisted BN shift
        pltpu.VMEM((B, ENC_DIM), jnp.float32),        # per-batch pooled sums
    ]

    flops = int(2 * n_rows * k_pad * ENC_DIM                 # conv computed once
                + 2 * B * (ENC_DIM * ENC_DIM + ENC_DIM * PROJ_DIM))
    bytes_accessed = int(n_rows * k_pad * 2                  # patches read once (bf16)
                         + (k_pad * ENC_DIM + ENC_DIM * ENC_DIM + ENC_DIM * PROJ_DIM) * 2
                         + (4 * ENC_DIM + 2 * PROJ_DIM) * 4
                         + B * (ENC_DIM + PROJ_DIM) * 4)

    h, z = pl.pallas_call(
        kernel,
        out_shape=out_shape,
        grid_spec=pltpu.PrefetchScalarGridSpec(
            num_scalar_prefetch=0,
            grid=(3, nt),
            in_specs=in_specs,
            out_specs=out_specs,
            scratch_shapes=scratch),
        compiler_params=pltpu.CompilerParams(
            # both axes "arbitrary": BN-stat / pool / activation-cache scratch is
            # carried across the whole grid.
            dimension_semantics=("arbitrary", "arbitrary"),
            vmem_limit_bytes=VMEM_LIMIT_BYTES),
        cost_estimate=pl.CostEstimate(
            flops=flops, transcendentals=3 * ENC_DIM + PROJ_DIM,
            bytes_accessed=bytes_accessed),
    )(patches, wc, g, be, w1, g1, b1, w2, g2, b2)
    return h, z


# ----------------------------------------------------------------------------
# EncodeProject module (functional params held in a small Python class)
# ----------------------------------------------------------------------------
class EncodeProject:
    def __init__(self, key, in_channels=4):
        self.encoder_dim = ENC_DIM
        self.proj_dim = PROJ_DIM
        self.m = MOMENTUM
        ks = jax.random.split(key, 3)
        conv_w = 0.05 * jax.random.normal(
            ks[0], (ENC_DIM, in_channels, 3, 3), jnp.float32)
        # Weight prep hoisted to init: conv weight stored reshaped+transposed and the
        # Linear weights pre-transposed (momentum update is elementwise, so the
        # transposed canonical layout is equivalent).
        self.convnet = {
            "conv_w_t": conv_w.reshape(ENC_DIM, in_channels * 9).T,   # (C*9, ENC_DIM)
            "bn_g": jnp.ones((ENC_DIM,), jnp.float32),
            "bn_b": jnp.zeros((ENC_DIM,), jnp.float32),
        }
        # encoder_m = copy.deepcopy(convnet), frozen
        self.encoder_m = jax.tree_util.tree_map(lambda p: p, self.convnet)
        self.projection = {
            "fc1_w_t": (jax.random.normal(ks[1], (ENC_DIM, ENC_DIM), jnp.float32)
                        / jnp.sqrt(ENC_DIM)).T,                       # (in, out)
            "bn1_g": jnp.ones((ENC_DIM,), jnp.float32),
            "bn1_b": jnp.zeros((ENC_DIM,), jnp.float32),
            "fc2_w_t": (jax.random.normal(ks[2], (PROJ_DIM, ENC_DIM), jnp.float32)
                        / jnp.sqrt(ENC_DIM)).T,                       # (ENC_DIM, PROJ_DIM)
            "bn2_g": jnp.ones((PROJ_DIM,), jnp.float32),
            "bn2_b": jnp.zeros((PROJ_DIM,), jnp.float32),  # BatchNorm1dNoBias: frozen 0
        }

    def _momentum_update_key_encoder(self):
        # param_m = param_m * m + param_b * (1 - m)  (elementwise parameter plumbing)
        self.encoder_m = jax.tree_util.tree_map(
            lambda pm, pb: pm * self.m + pb * (1.0 - self.m),
            self.encoder_m, self.convnet)

    def forward(self, x, y=None, k=None, t=None, out="z"):
        y_pro = k_pro = t_pro = None
        self._momentum_update_key_encoder()
        h, z = encode_project_apply(self.convnet, self.projection, x)
        if out == "h":
            return h
        if y is not None:
            _, y_pro = encode_project_apply(self.encoder_m, self.projection, y)
        if k is not None:
            _, k_pro = encode_project_apply(self.convnet, self.projection, k)
        if t is not None:
            _, t_pro = encode_project_apply(self.encoder_m, self.projection, t)
        return z, y_pro, k_pro, t_pro


if __name__ == "__main__":
    key = jax.random.PRNGKey(0)
    k_model, k_x, k_y = jax.random.split(key, 3)
    model = EncodeProject(k_model, in_channels=4)

    x = jax.random.normal(k_x, (2, 4, 16, 16), jnp.float32)   # NCHW
    y = jax.random.normal(k_y, (2, 4, 16, 16), jnp.float32)   # NCHW (key-encoder branch)

    z, y_pro, k_pro, t_pro = model.forward(x, y=y)
    h_only = model.forward(x, out="h")

    jax.block_until_ready((z, y_pro, h_only))
    assert z.shape == (2, PROJ_DIM) and y_pro.shape == (2, PROJ_DIM)
    assert h_only.shape == (2, ENC_DIM)
    assert k_pro is None and t_pro is None
    assert bool(jnp.all(jnp.isfinite(z))) and bool(jnp.all(jnp.isfinite(y_pro)))
    assert bool(jnp.all(jnp.isfinite(h_only)))
    print("KERNEL_OK")
</pallas_src>

<mosaic_0001>
module attributes {stable_mosaic.version = 11 : i64} {
  func.func @_fused_kernel(%arg0: i32, %arg1: i32, %arg2: memref<128x128xbf16, #tpu.memory_space<vmem>>, %arg3: memref<128x512xbf16, #tpu.memory_space<vmem>>, %arg4: memref<1x512xf32, #tpu.memory_space<vmem>>, %arg5: memref<1x512xf32, #tpu.memory_space<vmem>>, %arg6: memref<512x512xbf16, #tpu.memory_space<vmem>>, %arg7: memref<1x512xf32, #tpu.memory_space<vmem>>, %arg8: memref<1x512xf32, #tpu.memory_space<vmem>>, %arg9: memref<512x128xbf16, #tpu.memory_space<vmem>>, %arg10: memref<1x128xf32, #tpu.memory_space<vmem>>, %arg11: memref<1x128xf32, #tpu.memory_space<vmem>>, %arg12: memref<2x512xf32, #tpu.memory_space<vmem>>, %arg13: memref<2x128xf32, #tpu.memory_space<vmem>>, %arg14: memref<128x512xf32, #tpu.memory_space<vmem>>, %arg15: memref<1x512xf32, #tpu.memory_space<vmem>>, %arg16: memref<1x512xf32, #tpu.memory_space<vmem>>, %arg17: memref<1x512xf32, #tpu.memory_space<vmem>>, %arg18: memref<1x512xf32, #tpu.memory_space<vmem>>, %arg19: memref<2x512xf32, #tpu.memory_space<vmem>>) attributes {dimension_semantics = [#tpu.dimension_semantics<arbitrary>, #tpu.dimension_semantics<arbitrary>], iteration_bounds = array<i64: 3, 1>, scalar_prefetch = 0 : i64, scratch_operands = 6 : i64, tpu.core_type = #tpu.core_type<tc>, window_params = [{transform_indices = @transform_0, window_bounds = array<i64: 128, 128>}, {pipeline_mode = #tpu.pipeline_mode<synchronous>, transform_indices = @transform_1, window_bounds = array<i64: 128, 512>}, {pipeline_mode = #tpu.pipeline_mode<synchronous>, transform_indices = @transform_2, window_bounds = array<i64: 1, 512>}, {pipeline_mode = #tpu.pipeline_mode<synchronous>, transform_indices = @transform_3, window_bounds = array<i64: 1, 512>}, {pipeline_mode = #tpu.pipeline_mode<synchronous>, transform_indices = @transform_4, window_bounds = array<i64: 512, 512>}, {pipeline_mode = #tpu.pipeline_mode<synchronous>, transform_indices = @transform_5, window_bounds = array<i64: 1, 512>}, {pipeline_mode = #tpu.pipeline_mode<synchronous>, transform_indices = @transform_6, window_bounds = array<i64: 1, 512>}, {pipeline_mode = #tpu.pipeline_mode<synchronous>, transform_indices = @transform_7, window_bounds = array<i64: 512, 128>}, {pipeline_mode = #tpu.pipeline_mode<synchronous>, transform_indices = @transform_8, window_bounds = array<i64: 1, 128>}, {pipeline_mode = #tpu.pipeline_mode<synchronous>, transform_indices = @transform_9, window_bounds = array<i64: 1, 128>}, {pipeline_mode = #tpu.pipeline_mode<synchronous>, transform_indices = @transform_10, window_bounds = array<i64: 2, 512>}, {pipeline_mode = #tpu.pipeline_mode<synchronous>, transform_indices = @transform_11, window_bounds = array<i64: 2, 128>}]} {
    %c128_i32 = arith.constant 128 : i32
    %0 = arith.muli %arg1, %c128_i32 : i32
    %1 = tpu.assume_multiple %0, 128 : i32
    %c0_i32 = arith.constant 0 : i32
    %2 = arith.cmpi eq, %arg0, %c0_i32 : i32
    %3 = arith.extui %2 : i1 to i32
    %c0_i32_0 = arith.constant 0 : i32
    %4 = arith.cmpi ne, %3, %c0_i32_0 : i32
    scf.if %4 {
      %c0_i32_3 = arith.constant 0 : i32
      %11 = arith.cmpi eq, %arg1, %c0_i32_3 : i32
      %12 = arith.extui %11 : i1 to i32
      %c0_i32_4 = arith.constant 0 : i32
      %13 = arith.cmpi ne, %12, %c0_i32_4 : i32
      scf.if %13 {
        %cst_14 = arith.constant 0.000000e+00 : f32
        %24 = vector.broadcast %cst_14 : f32 to vector<1x512xf32>
        %c0_15 = arith.constant 0 : index
        %c0_16 = arith.constant 0 : index
        %25 = vector.load %arg15[%c0_15, %c0_16] : memref<1x512xf32, #tpu.memory_space<vmem>>, vector<1x512xf32>
        tpu.vector_store %arg15[%c0_15, %c0_16], %24 {strides = array<i32>} : memref<1x512xf32, #tpu.memory_space<vmem>>, vector<1x512xf32>,
      } else {
      }
      %c0 = arith.constant 0 : index
      %c0_5 = arith.constant 0 : index
      %14 = vector.load %arg2[%c0, %c0_5] : memref<128x128xbf16, #tpu.memory_space<vmem>>, vector<128x128xbf16>
      %c0_6 = arith.constant 0 : index
      %c0_7 = arith.constant 0 : index
      %15 = vector.load %arg3[%c0_6, %c0_7] : memref<128x512xbf16, #tpu.memory_space<vmem>>, vector<128x512xbf16>
      %cst = arith.constant dense<0.000000e+00> : vector<128x512xf32>
      %16 = tpu.matmul %14, %15, %cst {dimension_numbers = #tpu.dot_dimension_numbers<[1], [0], [0], [1], [0, 0, 1, 1], [], []>} : vector<128x128xbf16>, vector<128x512xbf16>, vector<128x512xf32> -> vector<128x512xf32>
      %17 = arith.index_cast %1 : i32 to index
      %c0_8 = arith.constant 0 : index
      %18 = vector.load %arg14[%17, %c0_8] : memref<128x512xf32, #tpu.memory_space<vmem>>, vector<128x512xf32>
      tpu.vector_store %arg14[%17, %c0_8], %16 {strides = array<i32>} : memref<128x512xf32, #tpu.memory_space<vmem>>, vector<128x512xf32>,
      %c0_9 = arith.constant 0 : index
      %c0_10 = arith.constant 0 : index
      %19 = vector.load %arg15[%c0_9, %c0_10] : memref<1x512xf32, #tpu.memory_space<vmem>>, vector<1x512xf32>
      %cst_11 = arith.constant dense<0.000000e+00> : vector<512xf32>
      %20 = vector.multi_reduction <add>, %16, %cst_11 [0] : vector<128x512xf32> to vector<512xf32>
      %21 = vector.shape_cast %20 : vector<512xf32> to vector<1x512xf32>
      %22 = arith.addf %19, %21 : vector<1x512xf32>
      %c0_12 = arith.constant 0 : index
      %c0_13 = arith.constant 0 : index
      %23 = vector.load %arg15[%c0_12, %c0_13] : memref<1x512xf32, #tpu.memory_space<vmem>>, vector<1x512xf32>
      tpu.vector_store %arg15[%c0_12, %c0_13], %22 {strides = array<i32>} : memref<1x512xf32, #tpu.memory_space<vmem>>, vector<1x512xf32>,
    } else {
    }
    %c1_i32 = arith.constant 1 : i32
    %5 = arith.cmpi eq, %arg0, %c1_i32 : i32
    %6 = arith.extui %5 : i1 to i32
    %c0_i32_1 = arith.constant 0 : i32
    %7 = arith.cmpi ne, %6, %c0_i32_1 : i32
    scf.if %7 {
      %c0_i32_3 = arith.constant 0 : i32
      %11 = arith.cmpi eq, %arg1, %c0_i32_3 : i32
      %12 = arith.extui %11 : i1 to i32
      %c0_i32_4 = arith.constant 0 : i32
      %13 = arith.cmpi ne, %12, %c0_i32_4 : i32
      scf.if %13 {
        %cst_14 = arith.constant 0.000000e+00 : f32
        %30 = vector.broadcast %cst_14 : f32 to vector<1x512xf32>
        %c0_15 = arith.constant 0 : index
        %c0_16 = arith.constant 0 : index
        %31 = vector.load %arg16[%c0_15, %c0_16] : memref<1x512xf32, #tpu.memory_space<vmem>>, vector<1x512xf32>
        tpu.vector_store %arg16[%c0_15, %c0_16], %30 {strides = array<i32>} : memref<1x512xf32, #tpu.memory_space<vmem>>, vector<1x512xf32>,
      } else {
      }
      %c0 = arith.constant 0 : index
      %c0_5 = arith.constant 0 : index
      %14 = vector.load %arg15[%c0, %c0_5] : memref<1x512xf32, #tpu.memory_space<vmem>>, vector<1x512xf32>
      %cst = arith.constant 7.812500e-03 : f32
      %15 = vector.broadcast %cst : f32 to vector<1x512xf32>
      %16 = arith.mulf %14, %15 : vector<1x512xf32>
      %17 = arith.index_cast %1 : i32 to index
      %c0_6 = arith.constant 0 : index
      %18 = vector.load %arg14[%17, %c0_6] : memref<128x512xf32, #tpu.memory_space<vmem>>, vector<128x512xf32>
      %19 = vector.broadcast %16 : vector<1x512xf32> to vector<128x512xf32>
      %20 = arith.subf %18, %19 : vector<128x512xf32>
      %c0_7 = arith.constant 0 : index
      %c0_8 = arith.constant 0 : index
      %21 = vector.load %arg16[%c0_7, %c0_8] : memref<1x512xf32, #tpu.memory_space<vmem>>, vector<1x512xf32>
      %22 = arith.mulf %20, %20 : vector<128x512xf32>
      %cst_9 = arith.constant dense<0.000000e+00> : vector<512xf32>
      %23 = vector.multi_reduction <add>, %22, %cst_9 [0] : vector<128x512xf32> to vector<512xf32>
      %24 = vector.shape_cast %23 : vector<512xf32> to vector<1x512xf32>
      %25 = arith.addf %21, %24 : vector<1x512xf32>
      %c0_10 = arith.constant 0 : index
      %c0_11 = arith.constant 0 : index
      %26 = vector.load %arg16[%c0_10, %c0_11] : memref<1x512xf32, #tpu.memory_space<vmem>>, vector<1x512xf32>
      tpu.vector_store %arg16[%c0_10, %c0_11], %25 {strides = array<i32>} : memref<1x512xf32, #tpu.memory_space<vmem>>, vector<1x512xf32>,
      %c0_i32_12 = arith.constant 0 : i32
      %27 = arith.cmpi eq, %arg1, %c0_i32_12 : i32
      %28 = arith.extui %27 : i1 to i32
      %c0_i32_13 = arith.constant 0 : i32
      %29 = arith.cmpi ne, %28, %c0_i32_13 : i32
      scf.if %29 {
        %c0_14 = arith.constant 0 : index
        %c0_15 = arith.constant 0 : index
        %30 = vector.load %arg16[%c0_14, %c0_15] : memref<1x512xf32, #tpu.memory_space<vmem>>, vector<1x512xf32>
        %cst_16 = arith.constant 7.812500e-03 : f32
        %31 = vector.broadcast %cst_16 : f32 to vector<1x512xf32>
        %32 = arith.mulf %30, %31 : vector<1x512xf32>
        %c0_17 = arith.constant 0 : index
        %c0_18 = arith.constant 0 : index
        %33 = vector.load %arg4[%c0_17, %c0_18] : memref<1x512xf32, #tpu.memory_space<vmem>>, vector<1x512xf32>
        %cst_19 = arith.constant 9.99999974E-6 : f32
        %34 = vector.broadcast %cst_19 : f32 to vector<1x512xf32>
        %35 = arith.addf %32, %34 : vector<1x512xf32>
        %36 = math.rsqrt %35 : vector<1x512xf32>
        %37 = arith.mulf %33, %36 : vector<1x512xf32>
        %c0_20 = arith.constant 0 : index
        %c0_21 = arith.constant 0 : index
        %38 = vector.load %arg17[%c0_20, %c0_21] : memref<1x512xf32, #tpu.memory_space<vmem>>, vector<1x512xf32>
        tpu.vector_store %arg17[%c0_20, %c0_21], %37 {strides = array<i32>} : memref<1x512xf32, #tpu.memory_space<vmem>>, vector<1x512xf32>,
        %c0_22 = arith.constant 0 : index
        %c0_23 = arith.constant 0 : index
        %39 = vector.load %arg5[%c0_22, %c0_23] : memref<1x512xf32, #tpu.memory_space<vmem>>, vector<1x512xf32>
        %40 = arith.mulf %16, %37 : vector<1x512xf32>
        %41 = arith.subf %39, %40 : vector<1x512xf32>
        %c0_24 = arith.constant 0 : index
        %c0_25 = arith.constant 0 : index
        %42 = vector.load %arg18[%c0_24, %c0_25] : memref<1x512xf32, #tpu.memory_space<vmem>>, vector<1x512xf32>
        tpu.vector_store %arg18[%c0_24, %c0_25], %41 {strides = array<i32>} : memref<1x512xf32, #tpu.memory_space<vmem>>, vector<1x512xf32>,
      } else {
      }
    } else {
    }
    %c2_i32 = arith.constant 2 : i32
    %8 = arith.cmpi eq, %arg0, %c2_i32 : i32
    %9 = arith.extui %8 : i1 to i32
    %c0_i32_2 = arith.constant 0 : i32
    %10 = arith.cmpi ne, %9, %c0_i32_2 : i32
    scf.if %10 {
      %11 = arith.index_cast %1 : i32 to index
      %c0 = arith.constant 0 : index
      %12 = vector.load %arg14[%11, %c0] : memref<128x512xf32, #tpu.memory_space<vmem>>, vector<128x512xf32>
      %c0_3 = arith.constant 0 : index
      %c0_4 = arith.constant 0 : index
      %13 = vector.load %arg17[%c0_3, %c0_4] : memref<1x512xf32, #tpu.memory_space<vmem>>, vector<1x512xf32>
      %14 = vector.broadcast %13 : vector<1x512xf32> to vector<128x512xf32>
      %15 = arith.mulf %12, %14 : vector<128x512xf32>
      %c0_5 = arith.constant 0 : index
      %c0_6 = arith.constant 0 : index
      %16 = vector.load %arg18[%c0_5, %c0_6] : memref<1x512xf32, #tpu.memory_space<vmem>>, vector<1x512xf32>
      %17 = vector.broadcast %16 : vector<1x512xf32> to vector<128x512xf32>
      %18 = arith.addf %15, %17 : vector<128x512xf32>
      %cst = arith.constant 0.000000e+00 : f32
      %19 = vector.broadcast %cst : f32 to vector<128x512xf32>
      %20 = arith.maximumf %18, %19 : vector<128x512xf32>
      %21 = vector.extract_strided_slice %20 {offsets = [0, 0], sizes = [64, 512], strides = [1, 1]} : vector<128x512xf32> to vector<64x512xf32>
      %cst_7 = arith.constant dense<0.000000e+00> : vector<512xf32>
      %22 = vector.multi_reduction <add>, %21, %cst_7 [0] : vector<64x512xf32> to vector<512xf32>
      %23 = vector.shape_cast %22 : vector<512xf32> to vector<1x512xf32>
      %24 = vector.extract_strided_slice %20 {offsets = [64, 0], sizes = [64, 512], strides = [1, 1]} : vector<128x512xf32> to vector<64x512xf32>
      %cst_8 = arith.constant dense<0.000000e+00> : vector<512xf32>
      %25 = vector.multi_reduction <add>, %24, %cst_8 [0] : vector<64x512xf32> to vector<512xf32>
      %26 = vector.shape_cast %25 : vector<512xf32> to vector<1x512xf32>
      %27 = tpu.concatenate %23, %26 in 0 : vector<1x512xf32>, vector<1x512xf32> -> vector<2x512xf32>
      %c0_9 = arith.constant 0 : index
      %c0_10 = arith.constant 0 : index
      %28 = vector.load %arg19[%c0_9, %c0_10] : memref<2x512xf32, #tpu.memory_space<vmem>>, vector<2x512xf32>
      tpu.vector_store %arg19[%c0_9, %c0_10], %27 {strides = array<i32>} : memref<2x512xf32, #tpu.memory_space<vmem>>, vector<2x512xf32>,
      %c0_i32_11 = arith.constant 0 : i32
      %29 = arith.cmpi eq, %arg1, %c0_i32_11 : i32
      %30 = arith.extui %29 : i1 to i32
      %c0_i32_12 = arith.constant 0 : i32
      %31 = arith.cmpi ne, %30, %c0_i32_12 : i32
      scf.if %31 {
        %c0_13 = arith.constant 0 : index
        %c0_14 = arith.constant 0 : index
        %32 = vector.load %arg19[%c0_13, %c0_14] : memref<2x512xf32, #tpu.memory_space<vmem>>, vector<2x512xf32>
        %cst_15 = arith.constant 1.562500e-02 : f32
        %33 = vector.broadcast %cst_15 : f32 to vector<2x512xf32>
        %34 = arith.mulf %32, %33 : vector<2x512xf32>
        %c0_16 = arith.constant 0 : index
        %c0_17 = arith.constant 0 : index
        %35 = vector.load %arg12[%c0_16, %c0_17] : memref<2x512xf32, #tpu.memory_space<vmem>>, vector<2x512xf32>
        tpu.vector_store %arg12[%c0_16, %c0_17], %34 {strides = array<i32>} : memref<2x512xf32, #tpu.memory_space<vmem>>, vector<2x512xf32>,
        %36 = arith.truncf %34 : vector<2x512xf32> to vector<2x512xbf16>
        %c0_18 = arith.constant 0 : index
        %c0_19 = arith.constant 0 : index
        %37 = vector.load %arg6[%c0_18, %c0_19] : memref<512x512xbf16, #tpu.memory_space<vmem>>, vector<512x512xbf16>
        %cst_20 = arith.constant dense<0.000000e+00> : vector<2x512xf32>
        %38 = tpu.matmul %36, %37, %cst_20 {dimension_numbers = #tpu.dot_dimension_numbers<[1], [0], [0], [1], [0, 0, 1, 1], [], []>} : vector<2x512xbf16>, vector<512x512xbf16>, vector<2x512xf32> -> vector<2x512xf32>
        %cst_21 = arith.constant dense<0.000000e+00> : vector<512xf32>
        %39 = vector.multi_reduction <add>, %38, %cst_21 [0] : vector<2x512xf32> to vector<512xf32>
        %40 = vector.shape_cast %39 : vector<512xf32> to vector<1x512xf32>
        %cst_22 = arith.constant 2.000000e+00 : f32
        %41 = vector.broadcast %cst_22 : f32 to vector<1x512xf32>
        %42 = arith.divf %40, %41 : vector<1x512xf32>
        %43 = vector.broadcast %42 : vector<1x512xf32> to vector<2x512xf32>
        %44 = arith.subf %38, %43 : vector<2x512xf32>
        %45 = arith.mulf %44, %44 : vector<2x512xf32>
        %cst_23 = arith.constant dense<0.000000e+00> : vector<512xf32>
        %46 = vector.multi_reduction <add>, %45, %cst_23 [0] : vector<2x512xf32> to vector<512xf32>
        %47 = vector.shape_cast %46 : vector<512xf32> to vector<1x512xf32>
        %cst_24 = arith.constant 2.000000e+00 : f32
        %48 = vector.broadcast %cst_24 : f32 to vector<1x512xf32>
        %49 = arith.divf %47, %48 : vector<1x512xf32>
        %cst_25 = arith.constant 9.99999974E-6 : f32
        %50 = vector.broadcast %cst_25 : f32 to vector<1x512xf32>
        %51 = arith.addf %49, %50 : vector<1x512xf32>
        %52 = math.rsqrt %51 : vector<1x512xf32>
        %53 = vector.broadcast %52 : vector<1x512xf32> to vector<2x512xf32>
        %54 = arith.mulf %44, %53 : vector<2x512xf32>
        %c0_26 = arith.constant 0 : index
        %c0_27 = arith.constant 0 : index
        %55 = vector.load %arg7[%c0_26, %c0_27] : memref<1x512xf32, #tpu.memory_space<vmem>>, vector<1x512xf32>
        %56 = vector.broadcast %55 : vector<1x512xf32> to vector<2x512xf32>
        %57 = arith.mulf %54, %56 : vector<2x512xf32>
        %c0_28 = arith.constant 0 : index
        %c0_29 = arith.constant 0 : index
        %58 = vector.load %arg8[%c0_28, %c0_29] : memref<1x512xf32, #tpu.memory_space<vmem>>, vector<1x512xf32>
        %59 = vector.broadcast %58 : vector<1x512xf32> to vector<2x512xf32>
        %60 = arith.addf %57, %59 : vector<2x512xf32>
        %cst_30 = arith.constant 0.000000e+00 : f32
        %61 = vector.broadcast %cst_30 : f32 to vector<2x512xf32>
        %62 = arith.maximumf %60, %61 : vector<2x512xf32>
        %63 = arith.truncf %62 : vector<2x512xf32> to vector<2x512xbf16>
        %c0_31 = arith.constant 0 : index
        %c0_32 = arith.constant 0 : index
        %64 = vector.load %arg9[%c0_31, %c0_32] : memref<512x128xbf16, #tpu.memory_space<vmem>>, vector<512x128xbf16>
        %cst_33 = arith.constant dense<0.000000e+00> : vector<2x128xf32>
        %65 = tpu.matmul %63, %64, %cst_33 {dimension_numbers = #tpu.dot_dimension_numbers<[1], [0], [0], [1], [0, 0, 1, 1], [], []>} : vector<2x512xbf16>, vector<512x128xbf16>, vector<2x128xf32> -> vector<2x128xf32>
        %cst_34 = arith.constant dense<0.000000e+00> : vector<128xf32>
        %66 = vector.multi_reduction <add>, %65, %cst_34 [0] : vector<2x128xf32> to vector<128xf32>
        %67 = vector.shape_cast %66 : vector<128xf32> to vector<1x128xf32>
        %cst_35 = arith.constant 2.000000e+00 : f32
        %68 = vector.broadcast %cst_35 : f32 to vector<1x128xf32>
        %69 = arith.divf %67, %68 : vector<1x128xf32>
        %70 = vector.broadcast %69 : vector<1x128xf32> to vector<2x128xf32>
        %71 = arith.subf %65, %70 : vector<2x128xf32>
        %72 = arith.mulf %71, %71 : vector<2x128xf32>
        %cst_36 = arith.constant dense<0.000000e+00> : vector<128xf32>
        %73 = vector.multi_reduction <add>, %72, %cst_36 [0] : vector<2x128xf32> to vector<128xf32>
        %74 = vector.shape_cast %73 : vector<128xf32> to vector<1x128xf32>
        %cst_37 = arith.constant 2.000000e+00 : f32
        %75 = vector.broadcast %cst_37 : f32 to vector<1x128xf32>
        %76 = arith.divf %74, %75 : vector<1x128xf32>
        %cst_38 = arith.constant 9.99999974E-6 : f32
        %77 = vector.broadcast %cst_38 : f32 to vector<1x128xf32>
        %78 = arith.addf %76, %77 : vector<1x128xf32>
        %79 = math.rsqrt %78 : vector<1x128xf32>
        %80 = vector.broadcast %79 : vector<1x128xf32> to vector<2x128xf32>
        %81 = arith.mulf %71, %80 : vector<2x128xf32>
        %c0_39 = arith.constant 0 : index
        %c0_40 = arith.constant 0 : index
        %82 = vector.load %arg10[%c0_39, %c0_40] : memref<1x128xf32, #tpu.memory_space<vmem>>, vector<1x128xf32>
        %83 = vector.broadcast %82 : vector<1x128xf32> to vector<2x128xf32>
        %84 = arith.mulf %81, %83 : vector<2x128xf32>
        %c0_41 = arith.constant 0 : index
        %c0_42 = arith.constant 0 : index
        %85 = vector.load %arg11[%c0_41, %c0_42] : memref<1x128xf32, #tpu.memory_space<vmem>>, vector<1x128xf32>
        %86 = vector.broadcast %85 : vector<1x128xf32> to vector<2x128xf32>
        %87 = arith.addf %84, %86 : vector<2x128xf32>
        %c0_43 = arith.constant 0 : index
        %c0_44 = arith.constant 0 : index
        %88 = vector.load %arg13[%c0_43, %c0_44] : memref<2x128xf32, #tpu.memory_space<vmem>>, vector<2x128xf32>
        tpu.vector_store %arg13[%c0_43, %c0_44], %87 {strides = array<i32>} : memref<2x128xf32, #tpu.memory_space<vmem>>, vector<2x128xf32>,
      } else {
      }
    } else {
    }
    return
  }
  func.func @transform_0(%arg0: i32, %arg1: i32) -> (i32, i32) {
    %c0_i32 = arith.constant 0 : i32
    %0 = arith.cmpi eq, %arg0, %c0_i32 : i32
    %c0_i32_0 = arith.constant 0 : i32
    %1 = arith.select %0, %arg1, %c0_i32_0 : i32
    %c0_i32_1 = arith.constant 0 : i32
    %c0_i32_2 = arith.constant 0 : i32
    return %1, %c0_i32_1 : i32, i32
  }
  func.func @transform_1(%arg0: i32, %arg1: i32) -> (i32, i32) {
    %c0_i32 = arith.constant 0 : i32
    %c0_i32_0 = arith.constant 0 : i32
    %c0_i32_1 = arith.constant 0 : i32
    return %c0_i32, %c0_i32_0 : i32, i32
  }
  func.func @transform_2(%arg0: i32, %arg1: i32) -> (i32, i32) {
    %c0_i32 = arith.constant 0 : i32
    %c0_i32_0 = arith.constant 0 : i32
    %c0_i32_1 = arith.constant 0 : i32
    return %c0_i32, %c0_i32_0 : i32, i32
  }
  func.func @transform_3(%arg0: i32, %arg1: i32) -> (i32, i32) {
    %c0_i32 = arith.constant 0 : i32
    %c0_i32_0 = arith.constant 0 : i32
    %c0_i32_1 = arith.constant 0 : i32
    return %c0_i32, %c0_i32_0 : i32, i32
  }
  func.func @transform_4(%arg0: i32, %arg1: i32) -> (i32, i32) {
    %c0_i32 = arith.constant 0 : i32
    %c0_i32_0 = arith.constant 0 : i32
    %c0_i32_1 = arith.constant 0 : i32
    return %c0_i32, %c0_i32_0 : i32, i32
  }
  func.func @transform_5(%arg0: i32, %arg1: i32) -> (i32, i32) {
    %c0_i32 = arith.constant 0 : i32
    %c0_i32_0 = arith.constant 0 : i32
    %c0_i32_1 = arith.constant 0 : i32
    return %c0_i32, %c0_i32_0 : i32, i32
  }
  func.func @transform_6(%arg0: i32, %arg1: i32) -> (i32, i32) {
    %c0_i32 = arith.constant 0 : i32
    %c0_i32_0 = arith.constant 0 : i32
    %c0_i32_1 = arith.constant 0 : i32
    return %c0_i32, %c0_i32_0 : i32, i32
  }
  func.func @transform_7(%arg0: i32, %arg1: i32) -> (i32, i32) {
    %c0_i32 = arith.constant 0 : i32
    %c0_i32_0 = arith.constant 0 : i32
    %c0_i32_1 = arith.constant 0 : i32
    return %c0_i32, %c0_i32_0 : i32, i32
  }
  func.func @transform_8(%arg0: i32, %arg1: i32) -> (i32, i32) {
    %c0_i32 = arith.constant 0 : i32
    %c0_i32_0 = arith.constant 0 : i32
    %c0_i32_1 = arith.constant 0 : i32
    return %c0_i32, %c0_i32_0 : i32, i32
  }
  func.func @transform_9(%arg0: i32, %arg1: i32) -> (i32, i32) {
    %c0_i32 = arith.constant 0 : i32
    %c0_i32_0 = arith.constant 0 : i32
    %c0_i32_1 = arith.constant 0 : i32
    return %c0_i32, %c0_i32_0 : i32, i32
  }
  func.func @transform_10(%arg0: i32, %arg1: i32) -> (i32, i32) {
    %c0_i32 = arith.constant 0 : i32
    %c0_i32_0 = arith.constant 0 : i32
    %c0_i32_1 = arith.constant 0 : i32
    return %c0_i32, %c0_i32_0 : i32, i32
  }
  func.func @transform_11(%arg0: i32, %arg1: i32) -> (i32, i32) {
    %c0_i32 = arith.constant 0 : i32
    %c0_i32_0 = arith.constant 0 : i32
    %c0_i32_1 = arith.constant 0 : i32
    return %c0_i32, %c0_i32_0 : i32, i32
  }
}

</mosaic_0001>

<llo_original>
// kernel: encode_project_apply.1
$region0: #{encode_project_apply.1}
  #allocation0 [shape = 'u32[]', space=smem, size = 0x4, offset = 0x4, fixed_abs, tag = 'smem constant byte address 0x4 - core index']
  #allocation1 [shape = 'u32[144,128]{1,0:T(1,128)}', space=vmem, size = 0x12000, scoped, tag = 'internal scratch']
  #allocation2 [shape = 'f32[128,512]{1,0:T(8,128)}', space=vmem, size = 0x40000, scoped, tag = 'scratch operand']
  #allocation3 [shape = 'f32[1,512]{1,0:T(1,128)}', space=vmem, size = 0x800, scoped, tag = 'scratch operand']
  #allocation4 [shape = 'f32[1,512]{1,0:T(1,128)}', space=vmem, size = 0x800, scoped, tag = 'scratch operand']
  #allocation5 [shape = 'f32[1,512]{1,0:T(1,128)}', space=vmem, size = 0x800, scoped, tag = 'scratch operand']
  #allocation6 [shape = 'f32[1,512]{1,0:T(1,128)}', space=vmem, size = 0x800, scoped, tag = 'scratch operand']
  #allocation7 [shape = 'f32[2,512]{1,0:T(2,128)}', space=vmem, size = 0x1000, scoped, tag = 'scratch operand']
  %s0 = inlined_call_operand.vmem [shape: bf16[128,128], index: 0, kind: input, shape index: {}]
  %s1 = inlined_call_operand.vmem [shape: bf16[128,512], index: 1, kind: input, shape index: {}]
  %s2 = inlined_call_operand.vmem [shape: f32[1,512], index: 2, kind: input, shape index: {}]
  %s3 = inlined_call_operand.vmem [shape: f32[1,512], index: 3, kind: input, shape index: {}]
  %s4 = inlined_call_operand.vmem [shape: bf16[512,512], index: 4, kind: input, shape index: {}]
  %s5 = inlined_call_operand.vmem [shape: f32[1,512], index: 5, kind: input, shape index: {}]
  %s6 = inlined_call_operand.vmem [shape: f32[1,512], index: 6, kind: input, shape index: {}]
  %s7 = inlined_call_operand.vmem [shape: bf16[512,128], index: 7, kind: input, shape index: {}]
  %s8 = inlined_call_operand.vmem [shape: f32[1,128], index: 8, kind: input, shape index: {}]
  %s9 = inlined_call_operand.vmem [shape: f32[1,128], index: 9, kind: input, shape index: {}]
  %s10 = inlined_call_operand.hbm [shape: f32[2,512], index: 10, kind: output, shape index: {0}]
  %s11 = inlined_call_operand.hbm [shape: f32[2,128], index: 11, kind: output, shape index: {1}]
  %12 = xla_tuple %s10, %s11
  %s13 = sld [smem:[#allocation0]]
  $region109: #{encode_project_apply.1} parent=0
    _
  %s15 = ssub.s32 1, %s13
  %s16 = scalar_select 0, %s15, %s13
  $region1: #{encode_project_apply.1} parent=0
    #allocation8 [shape = 'u8[4096]{0}', space=vmem, size = 0x1000, scoped, tag = 'output window, operand 0, single buffered']
    #allocation9 [shape = 's32[2]{0}', space=sflag, size = 0x8, scoped, tag = 'scoped memory for encode_project_apply.1']
    #allocation10 [shape = 'u8[1024]{0}', space=vmem, size = 0x400, scoped, tag = 'output window, operand 1, single buffered']
    #allocation11 [shape = 's32[1]{0}', space=sflag, size = 0x4, scoped, tag = 'scoped memory for encode_project_apply.1']
    %17 = vsyncpa [#allocation9], 0
    %18 = vsyncpa [#allocation11], 0
    loop: start=0, step=1, limit=5
    $region2: #{encode_project_apply.1} parent=1 // loop_pre_header
      _
    $region3: #{encode_project_apply.1} parent=1 // loop_header
      %s20 = sphi 0, %s24
      %p21 = scmp.ge.s32.totalorder %s20, 5
      %s27 = sphi 0, %s39
      %s28 = sphi 0, %s35
      %s29 = sphi 0, %s27
      %s30 = sphi 0, %s28
      %s31 = sphi 0, %s29
      %s32 = sphi 0, %s30
      %s46 = sphi 0, %s48
      %s49 = sphi 0, %s46
      %s50 = sphi 0, %s49
      %s66 = sphi 0, %s50
      %s70 = sphi 0, %s70
      %s72 = sphi 0, %s70
      %s73 = sphi 0, %s72
      %s87 = sphi 0, %s73
      %s91 = sphi 0, %s91
      %s93 = sphi 0, %s91
      %s94 = sphi 0, %s93
      %s108 = sphi 0, %s94
      %s112 = sphi 0, %s112
      %s114 = sphi 0, %s112
      %s115 = sphi 0, %s114
      %s129 = sphi 0, %s115
      %s133 = sphi 0, %s133
      %s135 = sphi 0, %s133
      %s136 = sphi 0, %s135
      %s150 = sphi 0, %s136
      %s154 = sphi 0, %s154
      %s156 = sphi 0, %s154
      %s157 = sphi 0, %s156
      %s171 = sphi 0, %s157
      %s175 = sphi 0, %s175
      %s177 = sphi 0, %s175
      %s178 = sphi 0, %s177
      %s192 = sphi 0, %s178
      %s196 = sphi 0, %s196
      %s198 = sphi 0, %s196
      %s199 = sphi 0, %s198
      %s213 = sphi 0, %s199
      %s217 = sphi 0, %s217
      %s219 = sphi 0, %s217
      %s220 = sphi 0, %s219
      %s234 = sphi 0, %s220
      %s238 = sphi 0, %s238
      %s240 = sphi 0, %s238
      %s241 = sphi 0, %s240
      %s255 = sphi 0, %s241
      %s259 = sphi 0, %s259
      %s261 = sphi 0, %s259
      %s262 = sphi 0, %s261
      %s276 = sphi 0, %s262
      %s280 = sphi 0, %s280
      %s282 = sphi 0, %s280
      %s283 = sphi 0, %s282
      %s297 = sphi 0, %s283
    $region4: #{encode_project_apply.1} parent=1 // loop_header_branch
      %23 = sbr.rel (%p21) target = $region8
    $region5: #{encode_project_apply.1} parent=1 // loop_body
      %s25 = ssub.s32 %s20, 1
      %s26 = ssub.s32 %s20, 2
      %s33 = sadd.s32 1, %s28
      %p34 = scmp.ge.s32.totalorder %s33, 1
      %s35 = scalar_select %p34, 0, %s33
      %s36 = sadd.s32 1, %s27
      %s37 = scalar_select %p34, %s36, %s27
      %p38 = scmp.ge.s32.totalorder %s37, 3
      %s39 = scalar_select %p38, 0, %s37
      %p40 = scmp.eq.s32.totalorder %s27, 0
      %s41 = scalar_select %p40, %s28, 0
      %p42 = scmp.eq.s32.totalorder %s39, 0
      %s43 = scalar_select %p42, %s35, 0
      %s44 = ssub.s32 %s41, %s43
      %p45 = scmp.eq.s32.totalorder %s44, 0
      %s47 = sadd.s32 %s46, 1
      %s48 = scalar_select %p45, %s46, %s47
      %p51 = pneg %p45
      %p52 = scmp.eq.s32.totalorder %s20, 2
      %p53 = por %p51, %p52
      %p54 = scmp.ne.s32.totalorder %s46, %s49
      %p55 = scmp.eq.s32.totalorder %s20, 0
      %p56 = por %p54, %p55
      %p57 = scmp.ne.s32.totalorder %s46, %s49
      %p58 = scmp.eq.s32.totalorder %s25, 2
      %p59 = por %p57, %p58
      %p60 = scmp.ne.s32.totalorder %s49, %s50
      %p61 = scmp.eq.s32.totalorder %s25, 0
      %p62 = por %p60, %p61
      %p63 = scmp.ne.s32.totalorder %s49, %s50
      %p64 = scmp.eq.s32.totalorder %s26, 2
      %p65 = por %p63, %p64
      %p67 = scmp.ne.s32.totalorder %s50, %s66
      %p68 = scmp.eq.s32.totalorder %s26, 0
      %p69 = por %p67, %p68
      %s71 = sadd.s32 %s70, 1
      %p74 = scmp.eq.s32.totalorder %s20, 2
      %p75 = scmp.ne.s32.totalorder %s70, %s72
      %p76 = scmp.eq.s32.totalorder %s20, 0
      %p77 = por %p75, %p76
      %p78 = scmp.ne.s32.totalorder %s70, %s72
      %p79 = scmp.eq.s32.totalorder %s25, 2
      %p80 = por %p78, %p79
      %p81 = scmp.ne.s32.totalorder %s72, %s73
      %p82 = scmp.eq.s32.totalorder %s25, 0
      %p83 = por %p81, %p82
      %p84 = scmp.ne.s32.totalorder %s72, %s73
      %p85 = scmp.eq.s32.totalorder %s26, 2
      %p86 = por %p84, %p85
      %p88 = scmp.ne.s32.totalorder %s73, %s87
      %p89 = scmp.eq.s32.totalorder %s26, 0
      %p90 = por %p88, %p89
      %s92 = sadd.s32 %s91, 1
      %p95 = scmp.eq.s32.totalorder %s20, 2
      %p96 = scmp.ne.s32.totalorder %s91, %s93
      %p97 = scmp.eq.s32.totalorder %s20, 0
      %p98 = por %p96, %p97
      %p99 = scmp.ne.s32.totalorder %s91, %s93
      %p100 = scmp.eq.s32.totalorder %s25, 2
      %p101 = por %p99, %p100
      %p102 = scmp.ne.s32.totalorder %s93, %s94
      %p103 = scmp.eq.s32.totalorder %s25, 0
      %p104 = por %p102, %p103
      %p105 = scmp.ne.s32.totalorder %s93, %s94
      %p106 = scmp.eq.s32.totalorder %s26, 2
      %p107 = por %p105, %p106
      %p109 = scmp.ne.s32.totalorder %s94, %s108
      %p110 = scmp.eq.s32.totalorder %s26, 0
      %p111 = por %p109, %p110
      %s113 = sadd.s32 %s112, 1
      %p116 = scmp.eq.s32.totalorder %s20, 2
      %p117 = scmp.ne.s32.totalorder %s112, %s114
      %p118 = scmp.eq.s32.totalorder %s20, 0
      %p119 = por %p117, %p118
      %p120 = scmp.ne.s32.totalorder %s112, %s114
      %p121 = scmp.eq.s32.totalorder %s25, 2
      %p122 = por %p120, %p121
      %p123 = scmp.ne.s32.totalorder %s114, %s115
      %p124 = scmp.eq.s32.totalorder %s25, 0
      %p125 = por %p123, %p124
      %p126 = scmp.ne.s32.totalorder %s114, %s115
      %p127 = scmp.eq.s32.totalorder %s26, 2
      %p128 = por %p126, %p127
      %p130 = scmp.ne.s32.totalorder %s115, %s129
      %p131 = scmp.eq.s32.totalorder %s26, 0
      %p132 = por %p130, %p131
      %s134 = sadd.s32 %s133, 1
      %p137 = scmp.eq.s32.totalorder %s20, 2
      %p138 = scmp.ne.s32.totalorder %s133, %s135
      %p139 = scmp.eq.s32.totalorder %s20, 0
      %p140 = por %p138, %p139
      %p141 = scmp.ne.s32.totalorder %s133, %s135
      %p142 = scmp.eq.s32.totalorder %s25, 2
      %p143 = por %p141, %p142
      %p144 = scmp.ne.s32.totalorder %s135, %s136
      %p145 = scmp.eq.s32.totalorder %s25, 0
      %p146 = por %p144, %p145
      %p147 = scmp.ne.s32.totalorder %s135, %s136
      %p148 = scmp.eq.s32.totalorder %s26, 2
      %p149 = por %p147, %p148
      %p151 = scmp.ne.s32.totalorder %s136, %s150
      %p152 = scmp.eq.s32.totalorder %s26, 0
      %p153 = por %p151, %p152
      %s155 = sadd.s32 %s154, 1
      %p158 = scmp.eq.s32.totalorder %s20, 2
      %p159 = scmp.ne.s32.totalorder %s154, %s156
      %p160 = scmp.eq.s32.totalorder %s20, 0
      %p161 = por %p159, %p160
      %p162 = scmp.ne.s32.totalorder %s154, %s156
      %p163 = scmp.eq.s32.totalorder %s25, 2
      %p164 = por %p162, %p163
      %p165 = scmp.ne.s32.totalorder %s156, %s157
      %p166 = scmp.eq.s32.totalorder %s25, 0
      %p167 = por %p165, %p166
      %p168 = scmp.ne.s32.totalorder %s156, %s157
      %p169 = scmp.eq.s32.totalorder %s26, 2
      %p170 = por %p168, %p169
      %p172 = scmp.ne.s32.totalorder %s157, %s171
      %p173 = scmp.eq.s32.totalorder %s26, 0
      %p174 = por %p172, %p173
      %s176 = sadd.s32 %s175, 1
      %p179 = scmp.eq.s32.totalorder %s20, 2
      %p180 = scmp.ne.s32.totalorder %s175, %s177
      %p181 = scmp.eq.s32.totalorder %s20, 0
      %p182 = por %p180, %p181
      %p183 = scmp.ne.s32.totalorder %s175, %s177
      %p184 = scmp.eq.s32.totalorder %s25, 2
      %p185 = por %p183, %p184
      %p186 = scmp.ne.s32.totalorder %s177, %s178
      %p187 = scmp.eq.s32.totalorder %s25, 0
      %p188 = por %p186, %p187
      %p189 = scmp.ne.s32.totalorder %s177, %s178
      %p190 = scmp.eq.s32.totalorder %s26, 2
      %p191 = por %p189, %p190
      %p193 = scmp.ne.s32.totalorder %s178, %s192
      %p194 = scmp.eq.s32.totalorder %s26, 0
      %p195 = por %p193, %p194
      %s197 = sadd.s32 %s196, 1
      %p200 = scmp.eq.s32.totalorder %s20, 2
      %p201 = scmp.ne.s32.totalorder %s196, %s198
      %p202 = scmp.eq.s32.totalorder %s20, 0
      %p203 = por %p201, %p202
      %p204 = scmp.ne.s32.totalorder %s196, %s198
      %p205 = scmp.eq.s32.totalorder %s25, 2
      %p206 = por %p204, %p205
      %p207 = scmp.ne.s32.totalorder %s198, %s199
      %p208 = scmp.eq.s32.totalorder %s25, 0
      %p209 = por %p207, %p208
      %p210 = scmp.ne.s32.totalorder %s198, %s199
      %p211 = scmp.eq.s32.totalorder %s26, 2
      %p212 = por %p210, %p211
      %p214 = scmp.ne.s32.totalorder %s199, %s213
      %p215 = scmp.eq.s32.totalorder %s26, 0
      %p216 = por %p214, %p215
      %s218 = sadd.s32 %s217, 1
      %p221 = scmp.eq.s32.totalorder %s20, 2
      %p222 = scmp.ne.s32.totalorder %s217, %s219
      %p223 = scmp.eq.s32.totalorder %s20, 0
      %p224 = por %p222, %p223
      %p225 = scmp.ne.s32.totalorder %s217, %s219
      %p226 = scmp.eq.s32.totalorder %s25, 2
      %p227 = por %p225, %p226
      %p228 = scmp.ne.s32.totalorder %s219, %s220
      %p229 = scmp.eq.s32.totalorder %s25, 0
      %p230 = por %p228, %p229
      %p231 = scmp.ne.s32.totalorder %s219, %s220
      %p232 = scmp.eq.s32.totalorder %s26, 2
      %p233 = por %p231, %p232
      %p235 = scmp.ne.s32.totalorder %s220, %s234
      %p236 = scmp.eq.s32.totalorder %s26, 0
      %p237 = por %p235, %p236
      %s239 = sadd.s32 %s238, 1
      %p242 = scmp.eq.s32.totalorder %s20, 2
      %p243 = scmp.ne.s32.totalorder %s238, %s240
      %p244 = scmp.eq.s32.totalorder %s20, 0
      %p245 = por %p243, %p244
      %p246 = scmp.ne.s32.totalorder %s238, %s240
      %p247 = scmp.eq.s32.totalorder %s25, 2
      %p248 = por %p246, %p247
      %p249 = scmp.ne.s32.totalorder %s240, %s241
      %p250 = scmp.eq.s32.totalorder %s25, 0
      %p251 = por %p249, %p250
      %p252 = scmp.ne.s32.totalorder %s240, %s241
      %p253 = scmp.eq.s32.totalorder %s26, 2
      %p254 = por %p252, %p253
      %p256 = scmp.ne.s32.totalorder %s241, %s255
      %p257 = scmp.eq.s32.totalorder %s26, 0
      %p258 = por %p256, %p257
      %s260 = sadd.s32 %s259, 1
      %p263 = scmp.eq.s32.totalorder %s20, 2
      %p264 = scmp.ne.s32.totalorder %s259, %s261
      %p265 = scmp.eq.s32.totalorder %s20, 0
      %p266 = por %p264, %p265
      %p267 = scmp.ne.s32.totalorder %s259, %s261
      %p268 = scmp.eq.s32.totalorder %s25, 2
      %p269 = por %p267, %p268
      %p270 = scmp.ne.s32.totalorder %s261, %s262
      %p271 = scmp.eq.s32.totalorder %s25, 0
      %p272 = por %p270, %p271
      %p273 = scmp.ne.s32.totalorder %s261, %s262
      %p274 = scmp.eq.s32.totalorder %s26, 2
      %p275 = por %p273, %p274
      %p277 = scmp.ne.s32.totalorder %s262, %s276
      %p278 = scmp.eq.s32.totalorder %s26, 0
      %p279 = por %p277, %p278
      %s281 = sadd.s32 %s280, 1
      %p284 = scmp.eq.s32.totalorder %s20, 2
      %p285 = scmp.ne.s32.totalorder %s280, %s282
      %p286 = scmp.eq.s32.totalorder %s20, 0
      %p287 = por %p285, %p286
      %p288 = scmp.ne.s32.totalorder %s280, %s282
      %p289 = scmp.eq.s32.totalorder %s25, 2
      %p290 = por %p288, %p289
      %p291 = scmp.ne.s32.totalorder %s282, %s283
      %p292 = scmp.eq.s32.totalorder %s25, 0
      %p293 = por %p291, %p292
      %p294 = scmp.ne.s32.totalorder %s282, %s283
      %p295 = scmp.eq.s32.totalorder %s26, 2
      %p296 = por %p294, %p295
      %p298 = scmp.ne.s32.totalorder %s283, %s297
      %p299 = scmp.eq.s32.totalorder %s26, 0
      %p300 = por %p298, %p299
      %p301 = scmp.le.s32.totalorder 1, %s20
      %p302 = scmp.lt.s32.totalorder %s20, 4
      %p303 = pnand %p301, %p302
      %p304 = pneg %p303
      // Predicated region
      $region9: #{encode_project_apply.1} parent=5 // pred_check
        _
      $region10: #{encode_project_apply.1} parent=5 // pred_check_branch
        %306 = sbr.rel (%p303) target = $region12
      $region11: #{encode_project_apply.1} parent=5 // pred_region
        %s307 = ssub.s32 %s20, 1
        // Predicated region
        $region13: #{encode_project_apply.1} parent=11 // pred_check
          %p308 = pneg %p83
        $region14: #{encode_project_apply.1} parent=11 // pred_check_branch
          %310 = sbr.rel (%p308) target = $region16
        $region15: #{encode_project_apply.1} parent=11 // pred_region
          _
        $region16: #{encode_project_apply.1} parent=11 // pred_fallthru
          _
        // Predicated region
        $region17: #{encode_project_apply.1} parent=11 // pred_check
          %p311 = pneg %p104
        $region18: #{encode_project_apply.1} parent=11 // pred_check_branch
          %313 = sbr.rel (%p311) target = $region20
        $region19: #{encode_project_apply.1} parent=11 // pred_region
          _
        $region20: #{encode_project_apply.1} parent=11 // pred_fallthru
          _
        // Predicated region
        $region21: #{encode_project_apply.1} parent=11 // pred_check
          %p314 = pneg %p125
        $region22: #{encode_project_apply.1} parent=11 // pred_check_branch
          %316 = sbr.rel (%p314) target = $region24
        $region23: #{encode_project_apply.1} parent=11 // pred_region
          _
        $region24: #{encode_project_apply.1} parent=11 // pred_fallthru
          _
        // Predicated region
        $region25: #{encode_project_apply.1} parent=11 // pred_check
          %p317 = pneg %p146
        $region26: #{encode_project_apply.1} parent=11 // pred_check_branch
          %319 = sbr.rel (%p317) target = $region28
        $region27: #{encode_project_apply.1} parent=11 // pred_region
          _
        $region28: #{encode_project_apply.1} parent=11 // pred_fallthru
          _
        // Predicated region
        $region29: #{encode_project_apply.1} parent=11 // pred_check
          %p320 = pneg %p167
        $region30: #{encode_project_apply.1} parent=11 // pred_check_branch
          %322 = sbr.rel (%p320) target = $region32
        $region31: #{encode_project_apply.1} parent=11 // pred_region
          _
        $region32: #{encode_project_apply.1} parent=11 // pred_fallthru
          _
        // Predicated region
        $region33: #{encode_project_apply.1} parent=11 // pred_check
          %p323 = pneg %p188
        $region34: #{encode_project_apply.1} parent=11 // pred_check_branch
          %325 = sbr.rel (%p323) target = $region36
        $region35: #{encode_project_apply.1} parent=11 // pred_region
          _
        $region36: #{encode_project_apply.1} parent=11 // pred_fallthru
          _
        // Predicated region
        $region37: #{encode_project_apply.1} parent=11 // pred_check
          %p326 = pneg %p209
        $region38: #{encode_project_apply.1} parent=11 // pred_check_branch
          %328 = sbr.rel (%p326) target = $region40
        $region39: #{encode_project_apply.1} parent=11 // pred_region
          _
        $region40: #{encode_project_apply.1} parent=11 // pred_fallthru
          _
        // Predicated region
        $region41: #{encode_project_apply.1} parent=11 // pred_check
          %p329 = pneg %p230
        $region42: #{encode_project_apply.1} parent=11 // pred_check_branch
          %331 = sbr.rel (%p329) target = $region44
        $region43: #{encode_project_apply.1} parent=11 // pred_region
          _
        $region44: #{encode_project_apply.1} parent=11 // pred_fallthru
          _
        // Predicated region
        $region45: #{encode_project_apply.1} parent=11 // pred_check
          %p332 = pneg %p251
        $region46: #{encode_project_apply.1} parent=11 // pred_check_branch
          %334 = sbr.rel (%p332) target = $region48
        $region47: #{encode_project_apply.1} parent=11 // pred_region
          _
        $region48: #{encode_project_apply.1} parent=11 // pred_fallthru
          _
      $region12: #{encode_project_apply.1} parent=5 // pred_fallthru
        _
      %p335 = scmp.lt.s32.totalorder %s20, 3
      // Predicated region
      $region49: #{encode_project_apply.1} parent=5 // pred_check
        %p336 = pneg %p335
      $region50: #{encode_project_apply.1} parent=5 // pred_check_branch
        %338 = sbr.rel (%p336) target = $region52
      $region51: #{encode_project_apply.1} parent=5 // pred_region
        // Predicated region
        $region53: #{encode_project_apply.1} parent=51 // pred_check
          %p339 = pneg %p56
        $region54: #{encode_project_apply.1} parent=51 // pred_check_branch
          %341 = sbr.rel (%p339) target = $region56
        $region55: #{encode_project_apply.1} parent=51 // pred_region
          %p342 = scmp.eq.s32.totalorder %s27, 0
          %s343 = scalar_select %p342, %s28, 0
          %s344 = smul.u32 16, %s343
          %p345 = scmp.lt.s32.totalorder %s344, 15
          %s346 = scalar_select %p345, %s344, 15
          %s347 = smul.addr %s346, 4
          %s348 = scalar_lea.vmem %s0, %s347
          %p349 = scmp.eq.s32.totalorder %s27, 0
          %s350 = scalar_select %p349, %s28, 0
          %s351 = smul.u32 16, %s350
        $region56: #{encode_project_apply.1} parent=51 // pred_fallthru
          _
      $region52: #{encode_project_apply.1} parent=5 // pred_fallthru
        _
      %p352 = scmp.le.s32.totalorder 1, %s20
      %p353 = scmp.lt.s32.totalorder %s20, 4
      %p354 = pnand %p352, %p353
      %p355 = pneg %p354
      // Predicated region
      $region57: #{encode_project_apply.1} parent=5 // pred_check
        _
      $region58: #{encode_project_apply.1} parent=5 // pred_check_branch
        %357 = sbr.rel (%p354) target = $region60
      $region59: #{encode_project_apply.1} parent=5 // pred_region
        %s358 = ssub.s32 %s20, 1
        %p359 = scmp.eq.s32.totalorder %s29, 0
        %s360 = scalar_select %p359, %s30, 0
        %s361 = smul.u32 16, %s360
        %p362 = scmp.lt.s32.totalorder %s361, 15
        %s363 = scalar_select %p362, %s361, 15
        %s364 = smul.addr %s363, 4
        %s365 = scalar_lea.vmem %s0, %s364
        %p366 = pneg %p62
        %p367 = pneg %p59
        %p368 = pneg %p83
        %p369 = pneg %p80
        %p370 = pneg %p104
        %p371 = pneg %p101
        %p372 = pneg %p125
        %p373 = pneg %p122
        %p374 = pneg %p146
        %p375 = pneg %p143
        %p376 = pneg %p167
        %p377 = pneg %p164
        %p378 = pneg %p188
        %p379 = pneg %p185
        %p380 = pneg %p209
        %p381 = pneg %p206
        %p382 = pneg %p230
        %p383 = pneg %p227
        %p384 = pneg %p251
        %p385 = pneg %p248
        %p386 = pneg %p272
        %p387 = pneg %p269
        %p388 = pneg %p293
        %p389 = pneg %p290
        %p390 = scmp.eq.s32.totalorder %s29, 0
        %s391 = scalar_select %p390, %s30, 0
        %s392 = smul.u32 16, %s391
        %p393 = scmp.lt.s32.totalorder %s392, 15
        %s394 = scalar_select %p393, %s392, 15
        %s395 = smul.addr %s394, 4
        %s396 = scalar_lea.vmem %s0, %s395
        %p397 = scmp.eq.s32.totalorder %s29, 0
        %s398 = scalar_select %p397, %s30, 0
        %s399 = smul.u32 16, %s398
        %s401 = smul.u32 %s30, 128
        %p402 = scmp.eq.s32.totalorder %s29, 0
        // Predicated region
        $region61: #{encode_project_apply.1} parent=59 // pred_check
          %p403 = pneg %p402
        $region62: #{encode_project_apply.1} parent=59 // pred_check_branch
          %405 = sbr.rel (%p403) target = $region64
        $region63: #{encode_project_apply.1} parent=59 // pred_region
          %p406 = scmp.eq.s32.totalorder %s30, 0
          // Predicated region
          $region65: #{encode_project_apply.1} parent=63 // pred_check
            %p407 = pneg %p406
          $region66: #{encode_project_apply.1} parent=63 // pred_check_branch
            %409 = sbr.rel (%p407) target = $region68
          $region67: #{encode_project_apply.1} parent=63 // pred_region
            %v410 = vlaneseq
            %vm411 = vcmp.ge.s32.totalorder %v410, 0
            %vm412 = vcmp.lt.s32.totalorder %v410, 512
            %vm413 = vmand %vm411, %vm412
            %414 = vst.msk [vmem:[#allocation3] sm:$0xf] %vm413, 0.0
          $region68: #{encode_project_apply.1} parent=63 // pred_fallthru
            _
          %v415 = vld [vmem:[%s396] sm:$0xf]
          %v416 = vld [vmem:[%s396 + $0x4] sm:$0xf]
          %v417 = vld [vmem:[%s396 + $0x8] sm:$0xf]
          %v418 = vld [vmem:[%s396 + $0xc] sm:$0xf]
          %v419 = vld [vmem:[%s396 + $0x10] sm:$0xf]
          %v420 = vld [vmem:[%s396 + $0x14] sm:$0xf]
          %v421 = vld [vmem:[%s396 + $0x18] sm:$0xf]
          %v422 = vld [vmem:[%s396 + $0x1c] sm:$0xf]
          %v423 = vld [vmem:[%s396 + $0x20] sm:$0xf]
          %v424 = vld [vmem:[%s396 + $0x24] sm:$0xf]
          %v425 = vld [vmem:[%s396 + $0x28] sm:$0xf]
          %v426 = vld [vmem:[%s396 + $0x2c] sm:$0xf]
          %v427 = vld [vmem:[%s396 + $0x30] sm:$0xf]
          %v428 = vld [vmem:[%s396 + $0x34] sm:$0xf]
          %v429 = vld [vmem:[%s396 + $0x38] sm:$0xf]
          %v430 = vld [vmem:[%s396 + $0x3c] sm:$0xf]
          %v431 = vld [vmem:[%s1] sm:$0xff]
          %v432 = vld [vmem:[%s1 + $0x8] sm:$0xff]
          %v433 = vld [vmem:[%s1 + $0x10] sm:$0xff]
          %v434 = vld [vmem:[%s1 + $0x18] sm:$0xff]
          %v435 = vld [vmem:[%s1 + $0x20] sm:$0xff]
          %v436 = vld [vmem:[%s1 + $0x28] sm:$0xff]
          %v437 = vld [vmem:[%s1 + $0x30] sm:$0xff]
          %v438 = vld [vmem:[%s1 + $0x38] sm:$0xff]
          %v439 = vld [vmem:[%s1 + $0x40] sm:$0xff]
          %v440 = vld [vmem:[%s1 + $0x48] sm:$0xff]
          %v441 = vld [vmem:[%s1 + $0x50] sm:$0xff]
          %v442 = vld [vmem:[%s1 + $0x58] sm:$0xff]
          %v443 = vld [vmem:[%s1 + $0x60] sm:$0xff]
          %v444 = vld [vmem:[%s1 + $0x68] sm:$0xff]
          %v445 = vld [vmem:[%s1 + $0x70] sm:$0xff]
          %v446 = vld [vmem:[%s1 + $0x78] sm:$0xff]
          %v447 = vld [vmem:[%s1 + $0x80] sm:$0xff]
          %v448 = vld [vmem:[%s1 + $0x88] sm:$0xff]
          %v449 = vld [vmem:[%s1 + $0x90] sm:$0xff]
          %v450 = vld [vmem:[%s1 + $0x98] sm:$0xff]
          %v451 = vld [vmem:[%s1 + $0xa0] sm:$0xff]
          %v452 = vld [vmem:[%s1 + $0xa8] sm:$0xff]
          %v453 = vld [vmem:[%s1 + $0xb0] sm:$0xff]
          %v454 = vld [vmem:[%s1 + $0xb8] sm:$0xff]
          %v455 = vld [vmem:[%s1 + $0xc0] sm:$0xff]
          %v456 = vld [vmem:[%s1 + $0xc8] sm:$0xff]
          %v457 = vld [vmem:[%s1 + $0xd0] sm:$0xff]
          %v458 = vld [vmem:[%s1 + $0xd8] sm:$0xff]
          %v459 = vld [vmem:[%s1 + $0xe0] sm:$0xff]
          %v460 = vld [vmem:[%s1 + $0xe8] sm:$0xff]
          %v461 = vld [vmem:[%s1 + $0xf0] sm:$0xff]
          %v462 = vld [vmem:[%s1 + $0xf8] sm:$0xff]
          %v479 = vunpack.c.l.b16 %v415
          %v480 = vunpack.c.l.b16 %v416
          %v481 = vunpack.c.l.b16 %v417
          %v482 = vunpack.c.l.b16 %v418
          %v483 = vunpack.c.l.b16 %v419
          %v484 = vunpack.c.l.b16 %v420
          %v485 = vunpack.c.l.b16 %v421
          %v486 = vunpack.c.l.b16 %v422
          %v487 = vunpack.c.l.b16 %v423
          %v488 = vunpack.c.l.b16 %v424
          %v489 = vunpack.c.l.b16 %v425
          %v490 = vunpack.c.l.b16 %v426
          %v491 = vunpack.c.l.b16 %v427
          %v492 = vunpack.c.l.b16 %v428
          %v493 = vunpack.c.l.b16 %v429
          %v494 = vunpack.c.l.b16 %v430
          %v495 = vpack.c.b16 %v480, %v479
          %v496 = vpack.c.b16 %v482, %v481
          %v497 = vpack.c.b16 %v484, %v483
          %v498 = vpack.c.b16 %v486, %v485
          %v499 = vpack.c.b16 %v488, %v487
          %v500 = vpack.c.b16 %v490, %v489
          %v501 = vpack.c.b16 %v492, %v491
          %v502 = vpack.c.b16 %v494, %v493
          %v543 = vunpack.c.l.b16 %v431
          %v544 = vunpack.c.h.b16 %v431
          %v545 = vunpack.c.l.b16 %v432
          %v546 = vunpack.c.h.b16 %v432
          %v547 = vunpack.c.l.b16 %v433
          %v548 = vunpack.c.h.b16 %v433
          %v549 = vunpack.c.l.b16 %v434
          %v550 = vunpack.c.h.b16 %v434
          %v551 = vunpack.c.l.b16 %v435
          %v552 = vunpack.c.h.b16 %v435
          %v553 = vunpack.c.l.b16 %v436
          %v554 = vunpack.c.h.b16 %v436
          %v555 = vunpack.c.l.b16 %v437
          %v556 = vunpack.c.h.b16 %v437
          %v557 = vunpack.c.l.b16 %v438
          %v558 = vunpack.c.h.b16 %v438
          %v559 = vunpack.c.l.b16 %v439
          %v560 = vunpack.c.h.b16 %v439
          %v561 = vunpack.c.l.b16 %v440
          %v562 = vunpack.c.h.b16 %v440
          %v563 = vunpack.c.l.b16 %v441
          %v564 = vunpack.c.h.b16 %v441
          %v565 = vunpack.c.l.b16 %v442
          %v566 = vunpack.c.h.b16 %v442
          %v567 = vunpack.c.l.b16 %v443
          %v568 = vunpack.c.h.b16 %v443
          %v569 = vunpack.c.l.b16 %v444
          %v570 = vunpack.c.h.b16 %v444
          %v571 = vunpack.c.l.b16 %v445
          %v572 = vunpack.c.h.b16 %v445
          %v573 = vunpack.c.l.b16 %v446
          %v574 = vunpack.c.h.b16 %v446
          %v575 = vunpack.c.l.b16 %v447
          %v576 = vunpack.c.h.b16 %v447
          %v577 = vunpack.c.l.b16 %v448
          %v578 = vunpack.c.h.b16 %v448
          %v579 = vunpack.c.l.b16 %v449
          %v580 = vunpack.c.h.b16 %v449
          %v581 = vunpack.c.l.b16 %v450
          %v582 = vunpack.c.h.b16 %v450
          %v583 = vunpack.c.l.b16 %v451
          %v584 = vunpack.c.h.b16 %v451
          %v585 = vunpack.c.l.b16 %v452
          %v586 = vunpack.c.h.b16 %v452
          %v587 = vunpack.c.l.b16 %v453
          %v588 = vunpack.c.h.b16 %v453
          %v589 = vunpack.c.l.b16 %v454
          %v590 = vunpack.c.h.b16 %v454
          %v591 = vunpack.c.l.b16 %v455
          %v592 = vunpack.c.h.b16 %v455
          %v593 = vunpack.c.l.b16 %v456
          %v594 = vunpack.c.h.b16 %v456
          %v595 = vunpack.c.l.b16 %v457
          %v596 = vunpack.c.h.b16 %v457
          %v597 = vunpack.c.l.b16 %v458
          %v598 = vunpack.c.h.b16 %v458
          %v599 = vunpack.c.l.b16 %v459
          %v600 = vunpack.c.h.b16 %v459
          %v601 = vunpack.c.l.b16 %v460
          %v602 = vunpack.c.h.b16 %v460
          %v603 = vunpack.c.l.b16 %v461
          %v604 = vunpack.c.h.b16 %v461
          %v605 = vunpack.c.l.b16 %v462
          %v606 = vunpack.c.h.b16 %v462
          %v607 = vpack.c.b16 %v547, %v543
          %v608 = vpack.c.b16 %v548, %v544
          %v609 = vpack.c.b16 %v549, %v545
          %v610 = vpack.c.b16 %v550, %v546
          %v611 = vpack.c.b16 %v555, %v551
          %v612 = vpack.c.b16 %v556, %v552
          %v613 = vpack.c.b16 %v557, %v553
          %v614 = vpack.c.b16 %v558, %v554
          %v615 = vpack.c.b16 %v563, %v559
          %v616 = vpack.c.b16 %v564, %v560
          %v617 = vpack.c.b16 %v565, %v561
          %v618 = vpack.c.b16 %v566, %v562
          %v619 = vpack.c.b16 %v571, %v567
          %v620 = vpack.c.b16 %v572, %v568
          %v621 = vpack.c.b16 %v573, %v569
          %v622 = vpack.c.b16 %v574, %v570
          %v623 = vpack.c.b16 %v579, %v575
          %v624 = vpack.c.b16 %v580, %v576
          %v625 = vpack.c.b16 %v581, %v577
          %v626 = vpack.c.b16 %v582, %v578
          %v627 = vpack.c.b16 %v587, %v583
          %v628 = vpack.c.b16 %v588, %v584
          %v629 = vpack.c.b16 %v589, %v585
          %v630 = vpack.c.b16 %v590, %v586
          %v631 = vpack.c.b16 %v595, %v591
          %v632 = vpack.c.b16 %v596, %v592
          %v633 = vpack.c.b16 %v597, %v593
          %v634 = vpack.c.b16 %v598, %v594
          %v635 = vpack.c.b16 %v603, %v599
          %v636 = vpack.c.b16 %v604, %v600
          %v637 = vpack.c.b16 %v605, %v601
          %v638 = vpack.c.b16 %v606, %v602
          %671 = vmatprep.subr.bf16.mxu0 %v636
          %672 = vmatpush1.bf16.msra.mxu0 %v635
          %673 = vmatprep.subr.bf16.mxu0 %v632
          %674 = vmatpush1.bf16.msra.mxu0 %v631
          %675 = vmatprep.subr.bf16.mxu0 %v628
          %676 = vmatpush1.bf16.msra.mxu0 %v627
          %677 = vmatprep.subr.bf16.mxu0 %v624
          %678 = vmatpush1.bf16.msra.mxu0 %v623
          %679 = vmatprep.subr.bf16.mxu0 %v620
          %680 = vmatpush1.bf16.msra.mxu0 %v619
          %681 = vmatprep.subr.bf16.mxu0 %v616
          %682 = vmatpush1.bf16.msra.mxu0 %v615
          %683 = vmatprep.subr.bf16.mxu0 %v612
          %684 = vmatpush1.bf16.msra.mxu0 %v611
          %685 = vmatprep.subr.bf16.mxu0 %v608
          %686 = vmatpush1.bf16.msra.mxu0 %v607
          %687 = vmatprep.subr.bf16.mxu0 0
          %688 = vmatpush2.bf16.msra.mxu0 0
          %689 = vmatprep.subr.bf16.mxu0 0
          %690 = vmatpush2.bf16.msra.mxu0 0
          %691 = vmatprep.subr.bf16.mxu0 0
          %692 = vmatpush2.bf16.msra.mxu0 0
          %693 = vmatprep.subr.bf16.mxu0 0
          %694 = vmatpush2.bf16.msra.mxu0 0
          %695 = vmatprep.subr.bf16.mxu0 0
          %696 = vmatpush2.bf16.msra.mxu0 0
          %697 = vmatprep.subr.bf16.mxu0 0
          %698 = vmatpush2.bf16.msra.mxu0 0
          %699 = vmatprep.subr.bf16.mxu0 0
          %700 = vmatpush2.bf16.msra.mxu0 0
          %701 = vmatprep.subr.bf16.mxu0 0
          %702 = vmatpush2.bf16.msra.mxu0 0
          %703 = vmatprep.mubr.bf16.mxu0 0
          %704 = vmatmul.mubr.bf16.gmra.mxu0 %v495
          %v705 = vpop.f32.mrf.mxu0
          %v706 = vadd.f32 0.0, %v705
          %v707 = vpop.f32.mrf.mxu0
          %v708 = vadd.f32 0.0, %v707
          %v709 = vpop.f32.mrf.mxu0
          %v710 = vadd.f32 0.0, %v709
          %v711 = vpop.f32.mrf.mxu0
          %v712 = vadd.f32 0.0, %v711
          %713 = vmatprep.mubr.bf16.mxu0 0
          %714 = vmatmul.mubr.bf16.gmra.mxu0 %v496
          %v715 = vpop.f32.mrf.mxu0
          %v716 = vadd.f32 0.0, %v715
          %v717 = vpop.f32.mrf.mxu0
          %v718 = vadd.f32 0.0, %v717
          %v719 = vpop.f32.mrf.mxu0
          %v720 = vadd.f32 0.0, %v719
          %v721 = vpop.f32.mrf.mxu0
          %v722 = vadd.f32 0.0, %v721
          %723 = vmatprep.mubr.bf16.mxu0 0
          %724 = vmatmul.mubr.bf16.gmra.mxu0 %v497
          %v725 = vpop.f32.mrf.mxu0
          %v726 = vadd.f32 0.0, %v725
          %v727 = vpop.f32.mrf.mxu0
          %v728 = vadd.f32 0.0, %v727
          %v729 = vpop.f32.mrf.mxu0
          %v730 = vadd.f32 0.0, %v729
          %v731 = vpop.f32.mrf.mxu0
          %v732 = vadd.f32 0.0, %v731
          %733 = vmatprep.mubr.bf16.mxu0 0
          %734 = vmatmul.mubr.bf16.gmra.mxu0 %v498
          %v735 = vpop.f32.mrf.mxu0
          %v736 = vadd.f32 0.0, %v735
          %v737 = vpop.f32.mrf.mxu0
          %v738 = vadd.f32 0.0, %v737
          %v739 = vpop.f32.mrf.mxu0
          %v740 = vadd.f32 0.0, %v739
          %v741 = vpop.f32.mrf.mxu0
          %v742 = vadd.f32 0.0, %v741
          %743 = vmatprep.mubr.bf16.mxu0 0
          %744 = vmatmul.mubr.bf16.gmra.mxu0 %v499
          %v745 = vpop.f32.mrf.mxu0
          %v746 = vadd.f32 0.0, %v745
          %v747 = vpop.f32.mrf.mxu0
          %v748 = vadd.f32 0.0, %v747
          %v749 = vpop.f32.mrf.mxu0
          %v750 = vadd.f32 0.0, %v749
          %v751 = vpop.f32.mrf.mxu0
          %v752 = vadd.f32 0.0, %v751
          %753 = vmatprep.mubr.bf16.mxu0 0
          %754 = vmatmul.mubr.bf16.gmra.mxu0 %v500
          %v755 = vpop.f32.mrf.mxu0
          %v756 = vadd.f32 0.0, %v755
          %v757 = vpop.f32.mrf.mxu0
          %v758 = vadd.f32 0.0, %v757
          %v759 = vpop.f32.mrf.mxu0
          %v760 = vadd.f32 0.0, %v759
          %v761 = vpop.f32.mrf.mxu0
          %v762 = vadd.f32 0.0, %v761
          %763 = vmatprep.mubr.bf16.mxu0 0
          %764 = vmatmul.mubr.bf16.gmra.mxu0 %v501
          %v765 = vpop.f32.mrf.mxu0
          %v766 = vadd.f32 0.0, %v765
          %v767 = vpop.f32.mrf.mxu0
          %v768 = vadd.f32 0.0, %v767
          %v769 = vpop.f32.mrf.mxu0
          %v770 = vadd.f32 0.0, %v769
          %v771 = vpop.f32.mrf.mxu0
          %v772 = vadd.f32 0.0, %v771
          %773 = vmatprep.mubr.bf16.mxu0 0
          %774 = vmatmul.mubr.bf16.gmra.mxu0 %v502
          %v775 = vpop.f32.mrf.mxu0
          %v776 = vadd.f32 0.0, %v775
          %v777 = vpop.f32.mrf.mxu0
          %v778 = vadd.f32 0.0, %v777
          %v779 = vpop.f32.mrf.mxu0
          %v780 = vadd.f32 0.0, %v779
          %v781 = vpop.f32.mrf.mxu0
          %v782 = vadd.f32 0.0, %v781
          %783 = vdwg.mxu0
          %784 = vmatprep.subr.bf16.mxu0 %v638
          %785 = vmatpush1.bf16.msra.mxu0 %v637
          %786 = vmatprep.subr.bf16.mxu0 %v634
          %787 = vmatpush1.bf16.msra.mxu0 %v633
          %788 = vmatprep.subr.bf16.mxu0 %v630
          %789 = vmatpush1.bf16.msra.mxu0 %v629
          %790 = vmatprep.subr.bf16.mxu0 %v626
          %791 = vmatpush1.bf16.msra.mxu0 %v625
          %792 = vmatprep.subr.bf16.mxu0 %v622
          %793 = vmatpush1.bf16.msra.mxu0 %v621
          %794 = vmatprep.subr.bf16.mxu0 %v618
          %795 = vmatpush1.bf16.msra.mxu0 %v617
          %796 = vmatprep.subr.bf16.mxu0 %v614
          %797 = vmatpush1.bf16.msra.mxu0 %v613
          %798 = vmatprep.subr.bf16.mxu0 %v610
          %799 = vmatpush1.bf16.msra.mxu0 %v609
          %800 = vmatprep.subr.bf16.mxu0 0
          %801 = vmatpush2.bf16.msra.mxu0 0
          %802 = vmatprep.subr.bf16.mxu0 0
          %803 = vmatpush2.bf16.msra.mxu0 0
          %804 = vmatprep.subr.bf16.mxu0 0
          %805 = vmatpush2.bf16.msra.mxu0 0
          %806 = vmatprep.subr.bf16.mxu0 0
          %807 = vmatpush2.bf16.msra.mxu0 0
          %808 = vmatprep.subr.bf16.mxu0 0
          %809 = vmatpush2.bf16.msra.mxu0 0
          %810 = vmatprep.subr.bf16.mxu0 0
          %811 = vmatpush2.bf16.msra.mxu0 0
          %812 = vmatprep.subr.bf16.mxu0 0
          %813 = vmatpush2.bf16.msra.mxu0 0
          %814 = vmatprep.subr.bf16.mxu0 0
          %815 = vmatpush2.bf16.msra.mxu0 0
          %816 = vmatprep.mubr.bf16.mxu0 0
          %817 = vmatmul.mubr.bf16.gmra.mxu0 %v495
          %v818 = vpop.f32.mrf.mxu0
          %v819 = vadd.f32 0.0, %v818
          %v820 = vpop.f32.mrf.mxu0
          %v821 = vadd.f32 0.0, %v820
          %v822 = vpop.f32.mrf.mxu0
          %v823 = vadd.f32 0.0, %v822
          %v824 = vpop.f32.mrf.mxu0
          %v825 = vadd.f32 0.0, %v824
          %826 = vmatprep.mubr.bf16.mxu0 0
          %827 = vmatmul.mubr.bf16.gmra.mxu0 %v496
          %v828 = vpop.f32.mrf.mxu0
          %v829 = vadd.f32 0.0, %v828
          %v830 = vpop.f32.mrf.mxu0
          %v831 = vadd.f32 0.0, %v830
          %v832 = vpop.f32.mrf.mxu0
          %v833 = vadd.f32 0.0, %v832
          %v834 = vpop.f32.mrf.mxu0
          %v835 = vadd.f32 0.0, %v834
          %836 = vmatprep.mubr.bf16.mxu0 0
          %837 = vmatmul.mubr.bf16.gmra.mxu0 %v497
          %v838 = vpop.f32.mrf.mxu0
          %v839 = vadd.f32 0.0, %v838
          %v840 = vpop.f32.mrf.mxu0
          %v841 = vadd.f32 0.0, %v840
          %v842 = vpop.f32.mrf.mxu0
          %v843 = vadd.f32 0.0, %v842
          %v844 = vpop.f32.mrf.mxu0
          %v845 = vadd.f32 0.0, %v844
          %846 = vmatprep.mubr.bf16.mxu0 0
          %847 = vmatmul.mubr.bf16.gmra.mxu0 %v498
          %v848 = vpop.f32.mrf.mxu0
          %v849 = vadd.f32 0.0, %v848
          %v850 = vpop.f32.mrf.mxu0
          %v851 = vadd.f32 0.0, %v850
          %v852 = vpop.f32.mrf.mxu0
          %v853 = vadd.f32 0.0, %v852
          %v854 = vpop.f32.mrf.mxu0
          %v855 = vadd.f32 0.0, %v854
          %856 = vmatprep.mubr.bf16.mxu0 0
          %857 = vmatmul.mubr.bf16.gmra.mxu0 %v499
          %v858 = vpop.f32.mrf.mxu0
          %v859 = vadd.f32 0.0, %v858
          %v860 = vpop.f32.mrf.mxu0
          %v861 = vadd.f32 0.0, %v860
          %v862 = vpop.f32.mrf.mxu0
          %v863 = vadd.f32 0.0, %v862
          %v864 = vpop.f32.mrf.mxu0
          %v865 = vadd.f32 0.0, %v864
          %866 = vmatprep.mubr.bf16.mxu0 0
          %867 = vmatmul.mubr.bf16.gmra.mxu0 %v500
          %v868 = vpop.f32.mrf.mxu0
          %v869 = vadd.f32 0.0, %v868
          %v870 = vpop.f32.mrf.mxu0
          %v871 = vadd.f32 0.0, %v870
          %v872 = vpop.f32.mrf.mxu0
          %v873 = vadd.f32 0.0, %v872
          %v874 = vpop.f32.mrf.mxu0
          %v875 = vadd.f32 0.0, %v874
          %876 = vmatprep.mubr.bf16.mxu0 0
          %877 = vmatmul.mubr.bf16.gmra.mxu0 %v501
          %v878 = vpop.f32.mrf.mxu0
          %v879 = vadd.f32 0.0, %v878
          %v880 = vpop.f32.mrf.mxu0
          %v881 = vadd.f32 0.0, %v880
          %v882 = vpop.f32.mrf.mxu0
          %v883 = vadd.f32 0.0, %v882
          %v884 = vpop.f32.mrf.mxu0
          %v885 = vadd.f32 0.0, %v884
          %886 = vmatprep.mubr.bf16.mxu0 0
          %887 = vmatmul.mubr.bf16.gmra.mxu0 %v502
          %v888 = vpop.f32.mrf.mxu0
          %v889 = vadd.f32 0.0, %v888
          %v890 = vpop.f32.mrf.mxu0
          %v891 = vadd.f32 0.0, %v890
          %v892 = vpop.f32.mrf.mxu0
          %v893 = vadd.f32 0.0, %v892
          %v894 = vpop.f32.mrf.mxu0
          %v895 = vadd.f32 0.0, %v894
          %896 = vdwg.mxu0
          %s897 = sshra.s32 %s401, 3
          %s898 = sand.u32 %s401, 7
          %s899 = smul.u32 %s897, 4
          %s900 = smul.addr %s899, 8
          %s901 = scalar_lea.vmem [#allocation2], %s900
          %902 = vst [vmem:[%s901] sm:$0xff] %v706
          %903 = vst [vmem:[%s901 + $0x8] sm:$0xff] %v708
          %904 = vst [vmem:[%s901 + $0x10] sm:$0xff] %v819
          %905 = vst [vmem:[%s901 + $0x18] sm:$0xff] %v821
          %906 = vst [vmem:[%s901 + $0x20] sm:$0xff] %v710
          %907 = vst [vmem:[%s901 + $0x28] sm:$0xff] %v712
          %908 = vst [vmem:[%s901 + $0x30] sm:$0xff] %v823
          %909 = vst [vmem:[%s901 + $0x38] sm:$0xff] %v825
          %910 = vst [vmem:[%s901 + $0x40] sm:$0xff] %v716
          %911 = vst [vmem:[%s901 + $0x48] sm:$0xff] %v718
          %912 = vst [vmem:[%s901 + $0x50] sm:$0xff] %v829
          %913 = vst [vmem:[%s901 + $0x58] sm:$0xff] %v831
          %914 = vst [vmem:[%s901 + $0x60] sm:$0xff] %v720
          %915 = vst [vmem:[%s901 + $0x68] sm:$0xff] %v722
          %916 = vst [vmem:[%s901 + $0x70] sm:$0xff] %v833
          %917 = vst [vmem:[%s901 + $0x78] sm:$0xff] %v835
          %918 = vst [vmem:[%s901 + $0x80] sm:$0xff] %v726
          %919 = vst [vmem:[%s901 + $0x88] sm:$0xff] %v728
          %920 = vst [vmem:[%s901 + $0x90] sm:$0xff] %v839
          %921 = vst [vmem:[%s901 + $0x98] sm:$0xff] %v841
          %922 = vst [vmem:[%s901 + $0xa0] sm:$0xff] %v730
          %923 = vst [vmem:[%s901 + $0xa8] sm:$0xff] %v732
          %924 = vst [vmem:[%s901 + $0xb0] sm:$0xff] %v843
          %925 = vst [vmem:[%s901 + $0xb8] sm:$0xff] %v845
          %926 = vst [vmem:[%s901 + $0xc0] sm:$0xff] %v736
          %927 = vst [vmem:[%s901 + $0xc8] sm:$0xff] %v738
          %928 = vst [vmem:[%s901 + $0xd0] sm:$0xff] %v849
          %929 = vst [vmem:[%s901 + $0xd8] sm:$0xff] %v851
          %930 = vst [vmem:[%s901 + $0xe0] sm:$0xff] %v740
          %931 = vst [vmem:[%s901 + $0xe8] sm:$0xff] %v742
          %932 = vst [vmem:[%s901 + $0xf0] sm:$0xff] %v853
          %933 = vst [vmem:[%s901 + $0xf8] sm:$0xff] %v855
          %934 = vst [vmem:[%s901 + $0x100] sm:$0xff] %v746
          %935 = vst [vmem:[%s901 + $0x108] sm:$0xff] %v748
          %936 = vst [vmem:[%s901 + $0x110] sm:$0xff] %v859
          %937 = vst [vmem:[%s901 + $0x118] sm:$0xff] %v861
          %938 = vst [vmem:[%s901 + $0x120] sm:$0xff] %v750
          %939 = vst [vmem:[%s901 + $0x128] sm:$0xff] %v752
          %940 = vst [vmem:[%s901 + $0x130] sm:$0xff] %v863
          %941 = vst [vmem:[%s901 + $0x138] sm:$0xff] %v865
          %942 = vst [vmem:[%s901 + $0x140] sm:$0xff] %v756
          %943 = vst [vmem:[%s901 + $0x148] sm:$0xff] %v758
          %944 = vst [vmem:[%s901 + $0x150] sm:$0xff] %v869
          %945 = vst [vmem:[%s901 + $0x158] sm:$0xff] %v871
          %946 = vst [vmem:[%s901 + $0x160] sm:$0xff] %v760
          %947 = vst [vmem:[%s901 + $0x168] sm:$0xff] %v762
          %948 = vst [vmem:[%s901 + $0x170] sm:$0xff] %v873
          %949 = vst [vmem:[%s901 + $0x178] sm:$0xff] %v875
          %950 = vst [vmem:[%s901 + $0x180] sm:$0xff] %v766
          %951 = vst [vmem:[%s901 + $0x188] sm:$0xff] %v768
          %952 = vst [vmem:[%s901 + $0x190] sm:$0xff] %v879
          %953 = vst [vmem:[%s901 + $0x198] sm:$0xff] %v881
          %954 = vst [vmem:[%s901 + $0x1a0] sm:$0xff] %v770
          %955 = vst [vmem:[%s901 + $0x1a8] sm:$0xff] %v772
          %956 = vst [vmem:[%s901 + $0x1b0] sm:$0xff] %v883
          %957 = vst [vmem:[%s901 + $0x1b8] sm:$0xff] %v885
          %958 = vst [vmem:[%s901 + $0x1c0] sm:$0xff] %v776
          %959 = vst [vmem:[%s901 + $0x1c8] sm:$0xff] %v778
          %960 = vst [vmem:[%s901 + $0x1d0] sm:$0xff] %v889
          %961 = vst [vmem:[%s901 + $0x1d8] sm:$0xff] %v891
          %962 = vst [vmem:[%s901 + $0x1e0] sm:$0xff] %v780
          %963 = vst [vmem:[%s901 + $0x1e8] sm:$0xff] %v782
          %964 = vst [vmem:[%s901 + $0x1f0] sm:$0xff] %v893
          %965 = vst [vmem:[%s901 + $0x1f8] sm:$0xff] %v895
          %v966 = vld [vmem:[#allocation3] sm:$0xf]
          %v967 = vadd.f32 %v706, %v710
          %v968 = vadd.f32 %v967, %v716
          %v969 = vadd.f32 %v968, %v720
          %v970 = vadd.f32 %v969, %v726
          %v971 = vadd.f32 %v970, %v730
          %v972 = vadd.f32 %v971, %v736
          %v973 = vadd.f32 %v972, %v740
          %v974 = vadd.f32 %v973, %v746
          %v975 = vadd.f32 %v974, %v750
          %v976 = vadd.f32 %v975, %v756
          %v977 = vadd.f32 %v976, %v760
          %v978 = vadd.f32 %v977, %v766
          %v979 = vadd.f32 %v978, %v770
          %v980 = vadd.f32 %v979, %v776
          %v981 = vadd.f32 %v980, %v780
          %v982 = vrot.slane %v981, 4
          %v983 = vadd.f32 %v981, %v982
          %v984 = vrot.slane %v983, 2
          %v985 = vadd.f32 %v983, %v984
          %v986 = vrot.slane %v985, 1
          %v987 = vadd.f32 %v985, %v986
          %v988 = vadd.f32 %v708, %v712
          %v989 = vadd.f32 %v988, %v718
          %v990 = vadd.f32 %v989, %v722
          %v991 = vadd.f32 %v990, %v728
          %v992 = vadd.f32 %v991, %v732
          %v993 = vadd.f32 %v992, %v738
          %v994 = vadd.f32 %v993, %v742
          %v995 = vadd.f32 %v994, %v748
          %v996 = vadd.f32 %v995, %v752
          %v997 = vadd.f32 %v996, %v758
          %v998 = vadd.f32 %v997, %v762
          %v999 = vadd.f32 %v998, %v768
          %v1000 = vadd.f32 %v999, %v772
          %v1001 = vadd.f32 %v1000, %v778
          %v1002 = vadd.f32 %v1001, %v782
          %v1003 = vrot.slane %v1002, 4
          %v1004 = vadd.f32 %v1002, %v1003
          %v1005 = vrot.slane %v1004, 2
          %v1006 = vadd.f32 %v1004, %v1005
          %v1007 = vrot.slane %v1006, 1
          %v1008 = vadd.f32 %v1006, %v1007
          %v1009 = vadd.f32 %v819, %v823
          %v1010 = vadd.f32 %v1009, %v829
          %v1011 = vadd.f32 %v1010, %v833
          %v1012 = vadd.f32 %v1011, %v839
          %v1013 = vadd.f32 %v1012, %v843
          %v1014 = vadd.f32 %v1013, %v849
          %v1015 = vadd.f32 %v1014, %v853
          %v1016 = vadd.f32 %v1015, %v859
          %v1017 = vadd.f32 %v1016, %v863
          %v1018 = vadd.f32 %v1017, %v869
          %v1019 = vadd.f32 %v1018, %v873
          %v1020 = vadd.f32 %v1019, %v879
          %v1021 = vadd.f32 %v1020, %v883
          %v1022 = vadd.f32 %v1021, %v889
          %v1023 = vadd.f32 %v1022, %v893
          %v1024 = vrot.slane %v1023, 4
          %v1025 = vadd.f32 %v1023, %v1024
          %v1026 = vrot.slane %v1025, 2
          %v1027 = vadd.f32 %v1025, %v1026
          %v1028 = vrot.slane %v1027, 1
          %v1029 = vadd.f32 %v1027, %v1028
          %v1030 = vadd.f32 %v821, %v825
          %v1031 = vadd.f32 %v1030, %v831
          %v1032 = vadd.f32 %v1031, %v835
          %v1033 = vadd.f32 %v1032, %v841
          %v1034 = vadd.f32 %v1033, %v845
          %v1035 = vadd.f32 %v1034, %v851
          %v1036 = vadd.f32 %v1035, %v855
          %v1037 = vadd.f32 %v1036, %v861
          %v1038 = vadd.f32 %v1037, %v865
          %v1039 = vadd.f32 %v1038, %v871
          %v1040 = vadd.f32 %v1039, %v875
          %v1041 = vadd.f32 %v1040, %v881
          %v1042 = vadd.f32 %v1041, %v885
          %v1043 = vadd.f32 %v1042, %v891
          %v1044 = vadd.f32 %v1043, %v895
          %v1045 = vrot.slane %v1044, 4
          %v1046 = vadd.f32 %v1044, %v1045
          %v1047 = vrot.slane %v1046, 2
          %v1048 = vadd.f32 %v1046, %v1047
          %v1049 = vrot.slane %v1048, 1
          %v1050 = vadd.f32 %v1048, %v1049
          %v1055 = vcombine.low %v987, %v1008
          %v1056 = vcombine.low %v1029, %v1050
          %v1058 = vunpack.c.l.s4 1966171168
          %v1059 = vunpack.c.0.s8 %v1058
          %v1060 = vlaneseq
          %v1061 = vshrl.u32 %v1060, 7
          %v1062 = vsub.s32 %v1059, %v1061
          %v1063 = vrot.slane %v1055, %v1062
          %v1065 = vunpack.c.l.s4 1966171168
          %v1066 = vunpack.c.0.s8 %v1065
          %v1067 = vlaneseq
          %v1068 = vshrl.u32 %v1067, 7
          %v1069 = vsub.s32 %v1066, %v1068
          %v1070 = vrot.slane %v1056, %v1069
          %v1071 = vcombine.low %v1063, %v1070
          %v1073 = vunpack.c.l.s4 1966171168
          %v1074 = vunpack.c.0.s8 %v1073
          %v1075 = vlaneseq
          %v1076 = vshrl.u32 %v1075, 7
          %v1077 = vsub.s32 %v1074, %v1076
          %v1078 = vrot.slane %v1071, %v1077
          %v1080 = vadd.f32 %v966, %v1078
          %v1081 = vlaneseq
          %vm1082 = vcmp.ge.s32.totalorder %v1081, 0
          %vm1083 = vcmp.lt.s32.totalorder %v1081, 512
          %vm1084 = vmand %vm1082, %vm1083
          %1085 = vst.msk [vmem:[#allocation3] sm:$0xf] %vm1084, %v1080
        $region64: #{encode_project_apply.1} parent=59 // pred_fallthru
          _
        %p1086 = scmp.eq.s32.totalorder %s29, 1
        // Predicated region
        $region69: #{encode_project_apply.1} parent=59 // pred_check
          %p1087 = pneg %p1086
        $region70: #{encode_project_apply.1} parent=59 // pred_check_branch
          %1089 = sbr.rel (%p1087) target = $region72
        $region71: #{encode_project_apply.1} parent=59 // pred_region
          %p1090 = scmp.eq.s32.totalorder %s30, 0
          // Predicated region
          $region73: #{encode_project_apply.1} parent=71 // pred_check
            %p1091 = pneg %p1090
          $region74: #{encode_project_apply.1} parent=71 // pred_check_branch
            %1093 = sbr.rel (%p1091) target = $region76
          $region75: #{encode_project_apply.1} parent=71 // pred_region
            %v1094 = vlaneseq
            %vm1095 = vcmp.ge.s32.totalorder %v1094, 0
            %vm1096 = vcmp.lt.s32.totalorder %v1094, 512
            %vm1097 = vmand %vm1095, %vm1096
            %1098 = vst.msk [vmem:[#allocation4] sm:$0xf] %vm1097, 0.0
          $region76: #{encode_project_apply.1} parent=71 // pred_fallthru
            _
          %v1099 = vld [vmem:[#allocation3] sm:$0xf]
          %v1100 = vmul.f32 %v1099, 0.0078125
          %s1101 = sshra.s32 %s401, 3
          %s1102 = sand.u32 %s401, 7
          %s1103 = smul.u32 %s1101, 4
          %s1104 = smul.addr %s1103, 8
          %s1105 = scalar_lea.vmem [#allocation2], %s1104
          %v1106 = vld [vmem:[%s1105] sm:$0xff]
          %v1107 = vld [vmem:[%s1105 + $0x8] sm:$0xff]
          %v1108 = vld [vmem:[%s1105 + $0x10] sm:$0xff]
          %v1109 = vld [vmem:[%s1105 + $0x18] sm:$0xff]
          %v1110 = vld [vmem:[%s1105 + $0x20] sm:$0xff]
          %v1111 = vld [vmem:[%s1105 + $0x28] sm:$0xff]
          %v1112 = vld [vmem:[%s1105 + $0x30] sm:$0xff]
          %v1113 = vld [vmem:[%s1105 + $0x38] sm:$0xff]
          %v1114 = vld [vmem:[%s1105 + $0x40] sm:$0xff]
          %v1115 = vld [vmem:[%s1105 + $0x48] sm:$0xff]
          %v1116 = vld [vmem:[%s1105 + $0x50] sm:$0xff]
          %v1117 = vld [vmem:[%s1105 + $0x58] sm:$0xff]
          %v1118 = vld [vmem:[%s1105 + $0x60] sm:$0xff]
          %v1119 = vld [vmem:[%s1105 + $0x68] sm:$0xff]
          %v1120 = vld [vmem:[%s1105 + $0x70] sm:$0xff]
          %v1121 = vld [vmem:[%s1105 + $0x78] sm:$0xff]
          %v1122 = vld [vmem:[%s1105 + $0x80] sm:$0xff]
          %v1123 = vld [vmem:[%s1105 + $0x88] sm:$0xff]
          %v1124 = vld [vmem:[%s1105 + $0x90] sm:$0xff]
          %v1125 = vld [vmem:[%s1105 + $0x98] sm:$0xff]
          %v1126 = vld [vmem:[%s1105 + $0xa0] sm:$0xff]
          %v1127 = vld [vmem:[%s1105 + $0xa8] sm:$0xff]
          %v1128 = vld [vmem:[%s1105 + $0xb0] sm:$0xff]
          %v1129 = vld [vmem:[%s1105 + $0xb8] sm:$0xff]
          %v1130 = vld [vmem:[%s1105 + $0xc0] sm:$0xff]
          %v1131 = vld [vmem:[%s1105 + $0xc8] sm:$0xff]
          %v1132 = vld [vmem:[%s1105 + $0xd0] sm:$0xff]
          %v1133 = vld [vmem:[%s1105 + $0xd8] sm:$0xff]
          %v1134 = vld [vmem:[%s1105 + $0xe0] sm:$0xff]
          %v1135 = vld [vmem:[%s1105 + $0xe8] sm:$0xff]
          %v1136 = vld [vmem:[%s1105 + $0xf0] sm:$0xff]
          %v1137 = vld [vmem:[%s1105 + $0xf8] sm:$0xff]
          %v1138 = vld [vmem:[%s1105 + $0x100] sm:$0xff]
          %v1139 = vld [vmem:[%s1105 + $0x108] sm:$0xff]
          %v1140 = vld [vmem:[%s1105 + $0x110] sm:$0xff]
          %v1141 = vld [vmem:[%s1105 + $0x118] sm:$0xff]
          %v1142 = vld [vmem:[%s1105 + $0x120] sm:$0xff]
          %v1143 = vld [vmem:[%s1105 + $0x128] sm:$0xff]
          %v1144 = vld [vmem:[%s1105 + $0x130] sm:$0xff]
          %v1145 = vld [vmem:[%s1105 + $0x138] sm:$0xff]
          %v1146 = vld [vmem:[%s1105 + $0x140] sm:$0xff]
          %v1147 = vld [vmem:[%s1105 + $0x148] sm:$0xff]
          %v1148 = vld [vmem:[%s1105 + $0x150] sm:$0xff]
          %v1149 = vld [vmem:[%s1105 + $0x158] sm:$0xff]
          %v1150 = vld [vmem:[%s1105 + $0x160] sm:$0xff]
          %v1151 = vld [vmem:[%s1105 + $0x168] sm:$0xff]
          %v1152 = vld [vmem:[%s1105 + $0x170] sm:$0xff]
          %v1153 = vld [vmem:[%s1105 + $0x178] sm:$0xff]
          %v1154 = vld [vmem:[%s1105 + $0x180] sm:$0xff]
          %v1155 = vld [vmem:[%s1105 + $0x188] sm:$0xff]
          %v1156 = vld [vmem:[%s1105 + $0x190] sm:$0xff]
          %v1157 = vld [vmem:[%s1105 + $0x198] sm:$0xff]
          %v1158 = vld [vmem:[%s1105 + $0x1a0] sm:$0xff]
          %v1159 = vld [vmem:[%s1105 + $0x1a8] sm:$0xff]
          %v1160 = vld [vmem:[%s1105 + $0x1b0] sm:$0xff]
          %v1161 = vld [vmem:[%s1105 + $0x1b8] sm:$0xff]
          %v1162 = vld [vmem:[%s1105 + $0x1c0] sm:$0xff]
          %v1163 = vld [vmem:[%s1105 + $0x1c8] sm:$0xff]
          %v1164 = vld [vmem:[%s1105 + $0x1d0] sm:$0xff]
          %v1165 = vld [vmem:[%s1105 + $0x1d8] sm:$0xff]
          %v1166 = vld [vmem:[%s1105 + $0x1e0] sm:$0xff]
          %v1167 = vld [vmem:[%s1105 + $0x1e8] sm:$0xff]
          %v1168 = vld [vmem:[%s1105 + $0x1f0] sm:$0xff]
          %v1169 = vld [vmem:[%s1105 + $0x1f8] sm:$0xff]
          %v1171 = vlaneseq
          %v1172 = vshrl.u32 %v1171, 7
          %v1173 = vsub.s32 0, %v1172
          %v1174 = vrot.slane %v1100, %v1173
          %v1175 = vlaneseq
          %v1176 = vshrl.u32 %v1175, 7
          %v1177 = vsub.s32 1, %v1176
          %v1178 = vrot.slane %v1100, %v1177
          %v1179 = vlaneseq
          %v1180 = vshrl.u32 %v1179, 7
          %v1181 = vsub.s32 2, %v1180
          %v1182 = vrot.slane %v1100, %v1181
          %v1183 = vlaneseq
          %v1184 = vshrl.u32 %v1183, 7
          %v1185 = vsub.s32 3, %v1184
          %v1186 = vrot.slane %v1100, %v1185
          %v1191 = vsub.f32 %v1106, %v1174
          %v1192 = vsub.f32 %v1107, %v1178
          %v1193 = vsub.f32 %v1108, %v1182
          %v1194 = vsub.f32 %v1109, %v1186
          %v1195 = vsub.f32 %v1110, %v1174
          %v1196 = vsub.f32 %v1111, %v1178
          %v1197 = vsub.f32 %v1112, %v1182
          %v1198 = vsub.f32 %v1113, %v1186
          %v1199 = vsub.f32 %v1114, %v1174
          %v1200 = vsub.f32 %v1115, %v1178
          %v1201 = vsub.f32 %v1116, %v1182
          %v1202 = vsub.f32 %v1117, %v1186
          %v1203 = vsub.f32 %v1118, %v1174
          %v1204 = vsub.f32 %v1119, %v1178
          %v1205 = vsub.f32 %v1120, %v1182
          %v1206 = vsub.f32 %v1121, %v1186
          %v1207 = vsub.f32 %v1122, %v1174
          %v1208 = vsub.f32 %v1123, %v1178
          %v1209 = vsub.f32 %v1124, %v1182
          %v1210 = vsub.f32 %v1125, %v1186
          %v1211 = vsub.f32 %v1126, %v1174
          %v1212 = vsub.f32 %v1127, %v1178
          %v1213 = vsub.f32 %v1128, %v1182
          %v1214 = vsub.f32 %v1129, %v1186
          %v1215 = vsub.f32 %v1130, %v1174
          %v1216 = vsub.f32 %v1131, %v1178
          %v1217 = vsub.f32 %v1132, %v1182
          %v1218 = vsub.f32 %v1133, %v1186
          %v1219 = vsub.f32 %v1134, %v1174
          %v1220 = vsub.f32 %v1135, %v1178
          %v1221 = vsub.f32 %v1136, %v1182
          %v1222 = vsub.f32 %v1137, %v1186
          %v1223 = vsub.f32 %v1138, %v1174
          %v1224 = vsub.f32 %v1139, %v1178
          %v1225 = vsub.f32 %v1140, %v1182
          %v1226 = vsub.f32 %v1141, %v1186
          %v1227 = vsub.f32 %v1142, %v1174
          %v1228 = vsub.f32 %v1143, %v1178
          %v1229 = vsub.f32 %v1144, %v1182
          %v1230 = vsub.f32 %v1145, %v1186
          %v1231 = vsub.f32 %v1146, %v1174
          %v1232 = vsub.f32 %v1147, %v1178
          %v1233 = vsub.f32 %v1148, %v1182
          %v1234 = vsub.f32 %v1149, %v1186
          %v1235 = vsub.f32 %v1150, %v1174
          %v1236 = vsub.f32 %v1151, %v1178
          %v1237 = vsub.f32 %v1152, %v1182
          %v1238 = vsub.f32 %v1153, %v1186
          %v1239 = vsub.f32 %v1154, %v1174
          %v1240 = vsub.f32 %v1155, %v1178
          %v1241 = vsub.f32 %v1156, %v1182
          %v1242 = vsub.f32 %v1157, %v1186
          %v1243 = vsub.f32 %v1158, %v1174
          %v1244 = vsub.f32 %v1159, %v1178
          %v1245 = vsub.f32 %v1160, %v1182
          %v1246 = vsub.f32 %v1161, %v1186
          %v1247 = vsub.f32 %v1162, %v1174
          %v1248 = vsub.f32 %v1163, %v1178
          %v1249 = vsub.f32 %v1164, %v1182
          %v1250 = vsub.f32 %v1165, %v1186
          %v1251 = vsub.f32 %v1166, %v1174
          %v1252 = vsub.f32 %v1167, %v1178
          %v1253 = vsub.f32 %v1168, %v1182
          %v1254 = vsub.f32 %v1169, %v1186
          %v1255 = vld [vmem:[#allocation4] sm:$0xf]
          %v1256 = vmul.f32 %v1191, %v1191
          %v1257 = vmul.f32 %v1192, %v1192
          %v1258 = vmul.f32 %v1193, %v1193
          %v1259 = vmul.f32 %v1194, %v1194
          %v1260 = vmul.f32 %v1195, %v1195
          %v1261 = vmul.f32 %v1196, %v1196
          %v1262 = vmul.f32 %v1197, %v1197
          %v1263 = vmul.f32 %v1198, %v1198
          %v1264 = vmul.f32 %v1199, %v1199
          %v1265 = vmul.f32 %v1200, %v1200
          %v1266 = vmul.f32 %v1201, %v1201
          %v1267 = vmul.f32 %v1202, %v1202
          %v1268 = vmul.f32 %v1203, %v1203
          %v1269 = vmul.f32 %v1204, %v1204
          %v1270 = vmul.f32 %v1205, %v1205
          %v1271 = vmul.f32 %v1206, %v1206
          %v1272 = vmul.f32 %v1207, %v1207
          %v1273 = vmul.f32 %v1208, %v1208
          %v1274 = vmul.f32 %v1209, %v1209
          %v1275 = vmul.f32 %v1210, %v1210
          %v1276 = vmul.f32 %v1211, %v1211
          %v1277 = vmul.f32 %v1212, %v1212
          %v1278 = vmul.f32 %v1213, %v1213
          %v1279 = vmul.f32 %v1214, %v1214
          %v1280 = vmul.f32 %v1215, %v1215
          %v1281 = vmul.f32 %v1216, %v1216
          %v1282 = vmul.f32 %v1217, %v1217
          %v1283 = vmul.f32 %v1218, %v1218
          %v1284 = vmul.f32 %v1219, %v1219
          %v1285 = vmul.f32 %v1220, %v1220
          %v1286 = vmul.f32 %v1221, %v1221
          %v1287 = vmul.f32 %v1222, %v1222
          %v1288 = vmul.f32 %v1223, %v1223
          %v1289 = vmul.f32 %v1224, %v1224
          %v1290 = vmul.f32 %v1225, %v1225
          %v1291 = vmul.f32 %v1226, %v1226
          %v1292 = vmul.f32 %v1227, %v1227
          %v1293 = vmul.f32 %v1228, %v1228
          %v1294 = vmul.f32 %v1229, %v1229
          %v1295 = vmul.f32 %v1230, %v1230
          %v1296 = vmul.f32 %v1231, %v1231
          %v1297 = vmul.f32 %v1232, %v1232
          %v1298 = vmul.f32 %v1233, %v1233
          %v1299 = vmul.f32 %v1234, %v1234
          %v1300 = vmul.f32 %v1235, %v1235
          %v1301 = vmul.f32 %v1236, %v1236
          %v1302 = vmul.f32 %v1237, %v1237
          %v1303 = vmul.f32 %v1238, %v1238
          %v1304 = vmul.f32 %v1239, %v1239
          %v1305 = vmul.f32 %v1240, %v1240
          %v1306 = vmul.f32 %v1241, %v1241
          %v1307 = vmul.f32 %v1242, %v1242
          %v1308 = vmul.f32 %v1243, %v1243
          %v1309 = vmul.f32 %v1244, %v1244
          %v1310 = vmul.f32 %v1245, %v1245
          %v1311 = vmul.f32 %v1246, %v1246
          %v1312 = vmul.f32 %v1247, %v1247
          %v1313 = vmul.f32 %v1248, %v1248
          %v1314 = vmul.f32 %v1249, %v1249
          %v1315 = vmul.f32 %v1250, %v1250
          %v1316 = vmul.f32 %v1251, %v1251
          %v1317 = vmul.f32 %v1252, %v1252
          %v1318 = vmul.f32 %v1253, %v1253
          %v1319 = vmul.f32 %v1254, %v1254
          %v1320 = vadd.f32 %v1256, %v1260
          %v1321 = vadd.f32 %v1320, %v1264
          %v1322 = vadd.f32 %v1321, %v1268
          %v1323 = vadd.f32 %v1322, %v1272
          %v1324 = vadd.f32 %v1323, %v1276
          %v1325 = vadd.f32 %v1324, %v1280
          %v1326 = vadd.f32 %v1325, %v1284
          %v1327 = vadd.f32 %v1326, %v1288
          %v1328 = vadd.f32 %v1327, %v1292
          %v1329 = vadd.f32 %v1328, %v1296
          %v1330 = vadd.f32 %v1329, %v1300
          %v1331 = vadd.f32 %v1330, %v1304
          %v1332 = vadd.f32 %v1331, %v1308
          %v1333 = vadd.f32 %v1332, %v1312
          %v1334 = vadd.f32 %v1333, %v1316
          %v1335 = vrot.slane %v1334, 4
          %v1336 = vadd.f32 %v1334, %v1335
          %v1337 = vrot.slane %v1336, 2
          %v1338 = vadd.f32 %v1336, %v1337
          %v1339 = vrot.slane %v1338, 1
          %v1340 = vadd.f32 %v1338, %v1339
          %v1341 = vadd.f32 %v1257, %v1261
          %v1342 = vadd.f32 %v1341, %v1265
          %v1343 = vadd.f32 %v1342, %v1269
          %v1344 = vadd.f32 %v1343, %v1273
          %v1345 = vadd.f32 %v1344, %v1277
          %v1346 = vadd.f32 %v1345, %v1281
          %v1347 = vadd.f32 %v1346, %v1285
          %v1348 = vadd.f32 %v1347, %v1289
          %v1349 = vadd.f32 %v1348, %v1293
          %v1350 = vadd.f32 %v1349, %v1297
          %v1351 = vadd.f32 %v1350, %v1301
          %v1352 = vadd.f32 %v1351, %v1305
          %v1353 = vadd.f32 %v1352, %v1309
          %v1354 = vadd.f32 %v1353, %v1313
          %v1355 = vadd.f32 %v1354, %v1317
          %v1356 = vrot.slane %v1355, 4
          %v1357 = vadd.f32 %v1355, %v1356
          %v1358 = vrot.slane %v1357, 2
          %v1359 = vadd.f32 %v1357, %v1358
          %v1360 = vrot.slane %v1359, 1
          %v1361 = vadd.f32 %v1359, %v1360
          %v1362 = vadd.f32 %v1258, %v1262
          %v1363 = vadd.f32 %v1362, %v1266
          %v1364 = vadd.f32 %v1363, %v1270
          %v1365 = vadd.f32 %v1364, %v1274
          %v1366 = vadd.f32 %v1365, %v1278
          %v1367 = vadd.f32 %v1366, %v1282
          %v1368 = vadd.f32 %v1367, %v1286
          %v1369 = vadd.f32 %v1368, %v1290
          %v1370 = vadd.f32 %v1369, %v1294
          %v1371 = vadd.f32 %v1370, %v1298
          %v1372 = vadd.f32 %v1371, %v1302
          %v1373 = vadd.f32 %v1372, %v1306
          %v1374 = vadd.f32 %v1373, %v1310
          %v1375 = vadd.f32 %v1374, %v1314
          %v1376 = vadd.f32 %v1375, %v1318
          %v1377 = vrot.slane %v1376, 4
          %v1378 = vadd.f32 %v1376, %v1377
          %v1379 = vrot.slane %v1378, 2
          %v1380 = vadd.f32 %v1378, %v1379
          %v1381 = vrot.slane %v1380, 1
          %v1382 = vadd.f32 %v1380, %v1381
          %v1383 = vadd.f32 %v1259, %v1263
          %v1384 = vadd.f32 %v1383, %v1267
          %v1385 = vadd.f32 %v1384, %v1271
          %v1386 = vadd.f32 %v1385, %v1275
          %v1387 = vadd.f32 %v1386, %v1279
          %v1388 = vadd.f32 %v1387, %v1283
          %v1389 = vadd.f32 %v1388, %v1287
          %v1390 = vadd.f32 %v1389, %v1291
          %v1391 = vadd.f32 %v1390, %v1295
          %v1392 = vadd.f32 %v1391, %v1299
          %v1393 = vadd.f32 %v1392, %v1303
          %v1394 = vadd.f32 %v1393, %v1307
          %v1395 = vadd.f32 %v1394, %v1311
          %v1396 = vadd.f32 %v1395, %v1315
          %v1397 = vadd.f32 %v1396, %v1319
          %v1398 = vrot.slane %v1397, 4
          %v1399 = vadd.f32 %v1397, %v1398
          %v1400 = vrot.slane %v1399, 2
          %v1401 = vadd.f32 %v1399, %v1400
          %v1402 = vrot.slane %v1401, 1
          %v1403 = vadd.f32 %v1401, %v1402
          %v1408 = vcombine.low %v1340, %v1361
          %v1409 = vcombine.low %v1382, %v1403
          %v1411 = vunpack.c.l.s4 1966171168
          %v1412 = vunpack.c.0.s8 %v1411
          %v1413 = vlaneseq
          %v1414 = vshrl.u32 %v1413, 7
          %v1415 = vsub.s32 %v1412, %v1414
          %v1416 = vrot.slane %v1408, %v1415
          %v1418 = vunpack.c.l.s4 1966171168
          %v1419 = vunpack.c.0.s8 %v1418
          %v1420 = vlaneseq
          %v1421 = vshrl.u32 %v1420, 7
          %v1422 = vsub.s32 %v1419, %v1421
          %v1423 = vrot.slane %v1409, %v1422
          %v1424 = vcombine.low %v1416, %v1423
          %v1426 = vunpack.c.l.s4 1966171168
          %v1427 = vunpack.c.0.s8 %v1426
          %v1428 = vlaneseq
          %v1429 = vshrl.u32 %v1428, 7
          %v1430 = vsub.s32 %v1427, %v1429
          %v1431 = vrot.slane %v1424, %v1430
          %v1433 = vadd.f32 %v1255, %v1431
          %v1434 = vlaneseq
          %vm1435 = vcmp.ge.s32.totalorder %v1434, 0
          %vm1436 = vcmp.lt.s32.totalorder %v1434, 512
          %vm1437 = vmand %vm1435, %vm1436
          %1438 = vst.msk [vmem:[#allocation4] sm:$0xf] %vm1437, %v1433
          // Predicated region
          $region77: #{encode_project_apply.1} parent=71 // pred_check
            %p1439 = pneg %p1090
          $region78: #{encode_project_apply.1} parent=71 // pred_check_branch
            %1441 = sbr.rel (%p1439) target = $region80
          $region79: #{encode_project_apply.1} parent=71 // pred_region
            %v1442 = vld [vmem:[#allocation4] sm:$0xf]
            %v1443 = vmul.f32 %v1442, 0.0078125
            %v1444 = vld [vmem:[%s2] sm:$0xf]
            %v1445 = vadd.f32 %v1443, 1e-05
            %v1446 = vrsqrt.pop %v1445
            %v1447 = vmul.f32 %v1444, %v1446
            %1448 = vst.msk [vmem:[#allocation5] sm:$0xf] %vm1437, %v1447
            %v1449 = vld [vmem:[%s3] sm:$0xf]
            %v1450 = vmul.f32 %v1100, %v1447
            %v1451 = vsub.f32 %v1449, %v1450
            %1452 = vst.msk [vmem:[#allocation6] sm:$0xf] %vm1437, %v1451
          $region80: #{encode_project_apply.1} parent=71 // pred_fallthru
            _
        $region72: #{encode_project_apply.1} parent=59 // pred_fallthru
          _
        %p1453 = scmp.eq.s32.totalorder %s29, 2
        // Predicated region
        $region81: #{encode_project_apply.1} parent=59 // pred_check
          %p1454 = pneg %p1453
        $region82: #{encode_project_apply.1} parent=59 // pred_check_branch
          %1456 = sbr.rel (%p1454) target = $region84
        $region83: #{encode_project_apply.1} parent=59 // pred_region
          %s1457 = sshra.s32 %s401, 3
          %s1458 = sand.u32 %s401, 7
          %s1459 = smul.u32 %s1457, 4
          %s1460 = smul.addr %s1459, 8
          %s1461 = scalar_lea.vmem [#allocation2], %s1460
          %v1462 = vld [vmem:[%s1461] sm:$0xff]
          %v1463 = vld [vmem:[%s1461 + $0x8] sm:$0xff]
          %v1464 = vld [vmem:[%s1461 + $0x10] sm:$0xff]
          %v1465 = vld [vmem:[%s1461 + $0x18] sm:$0xff]
          %v1466 = vld [vmem:[%s1461 + $0x20] sm:$0xff]
          %v1467 = vld [vmem:[%s1461 + $0x28] sm:$0xff]
          %v1468 = vld [vmem:[%s1461 + $0x30] sm:$0xff]
          %v1469 = vld [vmem:[%s1461 + $0x38] sm:$0xff]
          %v1470 = vld [vmem:[%s1461 + $0x40] sm:$0xff]
          %v1471 = vld [vmem:[%s1461 + $0x48] sm:$0xff]
          %v1472 = vld [vmem:[%s1461 + $0x50] sm:$0xff]
          %v1473 = vld [vmem:[%s1461 + $0x58] sm:$0xff]
          %v1474 = vld [vmem:[%s1461 + $0x60] sm:$0xff]
          %v1475 = vld [vmem:[%s1461 + $0x68] sm:$0xff]
          %v1476 = vld [vmem:[%s1461 + $0x70] sm:$0xff]
          %v1477 = vld [vmem:[%s1461 + $0x78] sm:$0xff]
          %v1478 = vld [vmem:[%s1461 + $0x80] sm:$0xff]
          %v1479 = vld [vmem:[%s1461 + $0x88] sm:$0xff]
          %v1480 = vld [vmem:[%s1461 + $0x90] sm:$0xff]
          %v1481 = vld [vmem:[%s1461 + $0x98] sm:$0xff]
          %v1482 = vld [vmem:[%s1461 + $0xa0] sm:$0xff]
          %v1483 = vld [vmem:[%s1461 + $0xa8] sm:$0xff]
          %v1484 = vld [vmem:[%s1461 + $0xb0] sm:$0xff]
          %v1485 = vld [vmem:[%s1461 + $0xb8] sm:$0xff]
          %v1486 = vld [vmem:[%s1461 + $0xc0] sm:$0xff]
          %v1487 = vld [vmem:[%s1461 + $0xc8] sm:$0xff]
          %v1488 = vld [vmem:[%s1461 + $0xd0] sm:$0xff]
          %v1489 = vld [vmem:[%s1461 + $0xd8] sm:$0xff]
          %v1490 = vld [vmem:[%s1461 + $0xe0] sm:$0xff]
          %v1491 = vld [vmem:[%s1461 + $0xe8] sm:$0xff]
          %v1492 = vld [vmem:[%s1461 + $0xf0] sm:$0xff]
          %v1493 = vld [vmem:[%s1461 + $0xf8] sm:$0xff]
          %v1494 = vld [vmem:[%s1461 + $0x100] sm:$0xff]
          %v1495 = vld [vmem:[%s1461 + $0x108] sm:$0xff]
          %v1496 = vld [vmem:[%s1461 + $0x110] sm:$0xff]
          %v1497 = vld [vmem:[%s1461 + $0x118] sm:$0xff]
          %v1498 = vld [vmem:[%s1461 + $0x120] sm:$0xff]
          %v1499 = vld [vmem:[%s1461 + $0x128] sm:$0xff]
          %v1500 = vld [vmem:[%s1461 + $0x130] sm:$0xff]
          %v1501 = vld [vmem:[%s1461 + $0x138] sm:$0xff]
          %v1502 = vld [vmem:[%s1461 + $0x140] sm:$0xff]
          %v1503 = vld [vmem:[%s1461 + $0x148] sm:$0xff]
          %v1504 = vld [vmem:[%s1461 + $0x150] sm:$0xff]
          %v1505 = vld [vmem:[%s1461 + $0x158] sm:$0xff]
          %v1506 = vld [vmem:[%s1461 + $0x160] sm:$0xff]
          %v1507 = vld [vmem:[%s1461 + $0x168] sm:$0xff]
          %v1508 = vld [vmem:[%s1461 + $0x170] sm:$0xff]
          %v1509 = vld [vmem:[%s1461 + $0x178] sm:$0xff]
          %v1510 = vld [vmem:[%s1461 + $0x180] sm:$0xff]
          %v1511 = vld [vmem:[%s1461 + $0x188] sm:$0xff]
          %v1512 = vld [vmem:[%s1461 + $0x190] sm:$0xff]
          %v1513 = vld [vmem:[%s1461 + $0x198] sm:$0xff]
          %v1514 = vld [vmem:[%s1461 + $0x1a0] sm:$0xff]
          %v1515 = vld [vmem:[%s1461 + $0x1a8] sm:$0xff]
          %v1516 = vld [vmem:[%s1461 + $0x1b0] sm:$0xff]
          %v1517 = vld [vmem:[%s1461 + $0x1b8] sm:$0xff]
          %v1518 = vld [vmem:[%s1461 + $0x1c0] sm:$0xff]
          %v1519 = vld [vmem:[%s1461 + $0x1c8] sm:$0xff]
          %v1520 = vld [vmem:[%s1461 + $0x1d0] sm:$0xff]
          %v1521 = vld [vmem:[%s1461 + $0x1d8] sm:$0xff]
          %v1522 = vld [vmem:[%s1461 + $0x1e0] sm:$0xff]
          %v1523 = vld [vmem:[%s1461 + $0x1e8] sm:$0xff]
          %v1524 = vld [vmem:[%s1461 + $0x1f0] sm:$0xff]
          %v1525 = vld [vmem:[%s1461 + $0x1f8] sm:$0xff]
          %v1526 = vld [vmem:[#allocation5] sm:$0xf]
          %v1528 = vlaneseq
          %v1529 = vshrl.u32 %v1528, 7
          %v1530 = vsub.s32 0, %v1529
          %v1531 = vrot.slane %v1526, %v1530
          %v1532 = vlaneseq
          %v1533 = vshrl.u32 %v1532, 7
          %v1534 = vsub.s32 1, %v1533
          %v1535 = vrot.slane %v1526, %v1534
          %v1536 = vlaneseq
          %v1537 = vshrl.u32 %v1536, 7
          %v1538 = vsub.s32 2, %v1537
          %v1539 = vrot.slane %v1526, %v1538
          %v1540 = vlaneseq
          %v1541 = vshrl.u32 %v1540, 7
          %v1542 = vsub.s32 3, %v1541
          %v1543 = vrot.slane %v1526, %v1542
          %v1548 = vmul.f32 %v1462, %v1531
          %v1549 = vmul.f32 %v1463, %v1535
          %v1550 = vmul.f32 %v1464, %v1539
          %v1551 = vmul.f32 %v1465, %v1543
          %v1552 = vmul.f32 %v1466, %v1531
          %v1553 = vmul.f32 %v1467, %v1535
          %v1554 = vmul.f32 %v1468, %v1539
          %v1555 = vmul.f32 %v1469, %v1543
          %v1556 = vmul.f32 %v1470, %v1531
          %v1557 = vmul.f32 %v1471, %v1535
          %v1558 = vmul.f32 %v1472, %v1539
          %v1559 = vmul.f32 %v1473, %v1543
          %v1560 = vmul.f32 %v1474, %v1531
          %v1561 = vmul.f32 %v1475, %v1535
          %v1562 = vmul.f32 %v1476, %v1539
          %v1563 = vmul.f32 %v1477, %v1543
          %v1564 = vmul.f32 %v1478, %v1531
          %v1565 = vmul.f32 %v1479, %v1535
          %v1566 = vmul.f32 %v1480, %v1539
          %v1567 = vmul.f32 %v1481, %v1543
          %v1568 = vmul.f32 %v1482, %v1531
          %v1569 = vmul.f32 %v1483, %v1535
          %v1570 = vmul.f32 %v1484, %v1539
          %v1571 = vmul.f32 %v1485, %v1543
          %v1572 = vmul.f32 %v1486, %v1531
          %v1573 = vmul.f32 %v1487, %v1535
          %v1574 = vmul.f32 %v1488, %v1539
          %v1575 = vmul.f32 %v1489, %v1543
          %v1576 = vmul.f32 %v1490, %v1531
          %v1577 = vmul.f32 %v1491, %v1535
          %v1578 = vmul.f32 %v1492, %v1539
          %v1579 = vmul.f32 %v1493, %v1543
          %v1580 = vmul.f32 %v1494, %v1531
          %v1581 = vmul.f32 %v1495, %v1535
          %v1582 = vmul.f32 %v1496, %v1539
          %v1583 = vmul.f32 %v1497, %v1543
          %v1584 = vmul.f32 %v1498, %v1531
          %v1585 = vmul.f32 %v1499, %v1535
          %v1586 = vmul.f32 %v1500, %v1539
          %v1587 = vmul.f32 %v1501, %v1543
          %v1588 = vmul.f32 %v1502, %v1531
          %v1589 = vmul.f32 %v1503, %v1535
          %v1590 = vmul.f32 %v1504, %v1539
          %v1591 = vmul.f32 %v1505, %v1543
          %v1592 = vmul.f32 %v1506, %v1531
          %v1593 = vmul.f32 %v1507, %v1535
          %v1594 = vmul.f32 %v1508, %v1539
          %v1595 = vmul.f32 %v1509, %v1543
          %v1596 = vmul.f32 %v1510, %v1531
          %v1597 = vmul.f32 %v1511, %v1535
          %v1598 = vmul.f32 %v1512, %v1539
          %v1599 = vmul.f32 %v1513, %v1543
          %v1600 = vmul.f32 %v1514, %v1531
          %v1601 = vmul.f32 %v1515, %v1535
          %v1602 = vmul.f32 %v1516, %v1539
          %v1603 = vmul.f32 %v1517, %v1543
          %v1604 = vmul.f32 %v1518, %v1531
          %v1605 = vmul.f32 %v1519, %v1535
          %v1606 = vmul.f32 %v1520, %v1539
          %v1607 = vmul.f32 %v1521, %v1543
          %v1608 = vmul.f32 %v1522, %v1531
          %v1609 = vmul.f32 %v1523, %v1535
          %v1610 = vmul.f32 %v1524, %v1539
          %v1611 = vmul.f32 %v1525, %v1543
          %v1612 = vld [vmem:[#allocation6] sm:$0xf]
          %v1614 = vlaneseq
          %v1615 = vshrl.u32 %v1614, 7
          %v1616 = vsub.s32 0, %v1615
          %v1617 = vrot.slane %v1612, %v1616
          %v1618 = vlaneseq
          %v1619 = vshrl.u32 %v1618, 7
          %v1620 = vsub.s32 1, %v1619
          %v1621 = vrot.slane %v1612, %v1620
          %v1622 = vlaneseq
          %v1623 = vshrl.u32 %v1622, 7
          %v1624 = vsub.s32 2, %v1623
          %v1625 = vrot.slane %v1612, %v1624
          %v1626 = vlaneseq
          %v1627 = vshrl.u32 %v1626, 7
          %v1628 = vsub.s32 3, %v1627
          %v1629 = vrot.slane %v1612, %v1628
          %v1634 = vadd.f32 %v1548, %v1617
          %v1635 = vadd.f32 %v1549, %v1621
          %v1636 = vadd.f32 %v1550, %v1625
          %v1637 = vadd.f32 %v1551, %v1629
          %v1638 = vadd.f32 %v1552, %v1617
          %v1639 = vadd.f32 %v1553, %v1621
          %v1640 = vadd.f32 %v1554, %v1625
          %v1641 = vadd.f32 %v1555, %v1629
          %v1642 = vadd.f32 %v1556, %v1617
          %v1643 = vadd.f32 %v1557, %v1621
          %v1644 = vadd.f32 %v1558, %v1625
          %v1645 = vadd.f32 %v1559, %v1629
          %v1646 = vadd.f32 %v1560, %v1617
          %v1647 = vadd.f32 %v1561, %v1621
          %v1648 = vadd.f32 %v1562, %v1625
          %v1649 = vadd.f32 %v1563, %v1629
          %v1650 = vadd.f32 %v1564, %v1617
          %v1651 = vadd.f32 %v1565, %v1621
          %v1652 = vadd.f32 %v1566, %v1625
          %v1653 = vadd.f32 %v1567, %v1629
          %v1654 = vadd.f32 %v1568, %v1617
          %v1655 = vadd.f32 %v1569, %v1621
          %v1656 = vadd.f32 %v1570, %v1625
          %v1657 = vadd.f32 %v1571, %v1629
          %v1658 = vadd.f32 %v1572, %v1617
          %v1659 = vadd.f32 %v1573, %v1621
          %v1660 = vadd.f32 %v1574, %v1625
          %v1661 = vadd.f32 %v1575, %v1629
          %v1662 = vadd.f32 %v1576, %v1617
          %v1663 = vadd.f32 %v1577, %v1621
          %v1664 = vadd.f32 %v1578, %v1625
          %v1665 = vadd.f32 %v1579, %v1629
          %v1666 = vadd.f32 %v1580, %v1617
          %v1667 = vadd.f32 %v1581, %v1621
          %v1668 = vadd.f32 %v1582, %v1625
          %v1669 = vadd.f32 %v1583, %v1629
          %v1670 = vadd.f32 %v1584, %v1617
          %v1671 = vadd.f32 %v1585, %v1621
          %v1672 = vadd.f32 %v1586, %v1625
          %v1673 = vadd.f32 %v1587, %v1629
          %v1674 = vadd.f32 %v1588, %v1617
          %v1675 = vadd.f32 %v1589, %v1621
          %v1676 = vadd.f32 %v1590, %v1625
          %v1677 = vadd.f32 %v1591, %v1629
          %v1678 = vadd.f32 %v1592, %v1617
          %v1679 = vadd.f32 %v1593, %v1621
          %v1680 = vadd.f32 %v1594, %v1625
          %v1681 = vadd.f32 %v1595, %v1629
          %v1682 = vadd.f32 %v1596, %v1617
          %v1683 = vadd.f32 %v1597, %v1621
          %v1684 = vadd.f32 %v1598, %v1625
          %v1685 = vadd.f32 %v1599, %v1629
          %v1686 = vadd.f32 %v1600, %v1617
          %v1687 = vadd.f32 %v1601, %v1621
          %v1688 = vadd.f32 %v1602, %v1625
          %v1689 = vadd.f32 %v1603, %v1629
          %v1690 = vadd.f32 %v1604, %v1617
          %v1691 = vadd.f32 %v1605, %v1621
          %v1692 = vadd.f32 %v1606, %v1625
          %v1693 = vadd.f32 %v1607, %v1629
          %v1694 = vadd.f32 %v1608, %v1617
          %v1695 = vadd.f32 %v1609, %v1621
          %v1696 = vadd.f32 %v1610, %v1625
          %v1697 = vadd.f32 %v1611, %v1629
          %v1698 = vmax.f32 %v1634, 0.0
          %v1699 = vmax.f32 %v1635, 0.0
          %v1700 = vmax.f32 %v1636, 0.0
          %v1701 = vmax.f32 %v1637, 0.0
          %v1702 = vmax.f32 %v1638, 0.0
          %v1703 = vmax.f32 %v1639, 0.0
          %v1704 = vmax.f32 %v1640, 0.0
          %v1705 = vmax.f32 %v1641, 0.0
          %v1706 = vmax.f32 %v1642, 0.0
          %v1707 = vmax.f32 %v1643, 0.0
          %v1708 = vmax.f32 %v1644, 0.0
          %v1709 = vmax.f32 %v1645, 0.0
          %v1710 = vmax.f32 %v1646, 0.0
          %v1711 = vmax.f32 %v1647, 0.0
          %v1712 = vmax.f32 %v1648, 0.0
          %v1713 = vmax.f32 %v1649, 0.0
          %v1714 = vmax.f32 %v1650, 0.0
          %v1715 = vmax.f32 %v1651, 0.0
          %v1716 = vmax.f32 %v1652, 0.0
          %v1717 = vmax.f32 %v1653, 0.0
          %v1718 = vmax.f32 %v1654, 0.0
          %v1719 = vmax.f32 %v1655, 0.0
          %v1720 = vmax.f32 %v1656, 0.0
          %v1721 = vmax.f32 %v1657, 0.0
          %v1722 = vmax.f32 %v1658, 0.0
          %v1723 = vmax.f32 %v1659, 0.0
          %v1724 = vmax.f32 %v1660, 0.0
          %v1725 = vmax.f32 %v1661, 0.0
          %v1726 = vmax.f32 %v1662, 0.0
          %v1727 = vmax.f32 %v1663, 0.0
          %v1728 = vmax.f32 %v1664, 0.0
          %v1729 = vmax.f32 %v1665, 0.0
          %v1730 = vmax.f32 %v1666, 0.0
          %v1731 = vmax.f32 %v1667, 0.0
          %v1732 = vmax.f32 %v1668, 0.0
          %v1733 = vmax.f32 %v1669, 0.0
          %v1734 = vmax.f32 %v1670, 0.0
          %v1735 = vmax.f32 %v1671, 0.0
          %v1736 = vmax.f32 %v1672, 0.0
          %v1737 = vmax.f32 %v1673, 0.0
          %v1738 = vmax.f32 %v1674, 0.0
          %v1739 = vmax.f32 %v1675, 0.0
          %v1740 = vmax.f32 %v1676, 0.0
          %v1741 = vmax.f32 %v1677, 0.0
          %v1742 = vmax.f32 %v1678, 0.0
          %v1743 = vmax.f32 %v1679, 0.0
          %v1744 = vmax.f32 %v1680, 0.0
          %v1745 = vmax.f32 %v1681, 0.0
          %v1746 = vmax.f32 %v1682, 0.0
          %v1747 = vmax.f32 %v1683, 0.0
          %v1748 = vmax.f32 %v1684, 0.0
          %v1749 = vmax.f32 %v1685, 0.0
          %v1750 = vmax.f32 %v1686, 0.0
          %v1751 = vmax.f32 %v1687, 0.0
          %v1752 = vmax.f32 %v1688, 0.0
          %v1753 = vmax.f32 %v1689, 0.0
          %v1754 = vmax.f32 %v1690, 0.0
          %v1755 = vmax.f32 %v1691, 0.0
          %v1756 = vmax.f32 %v1692, 0.0
          %v1757 = vmax.f32 %v1693, 0.0
          %v1758 = vmax.f32 %v1694, 0.0
          %v1759 = vmax.f32 %v1695, 0.0
          %v1760 = vmax.f32 %v1696, 0.0
          %v1761 = vmax.f32 %v1697, 0.0
          %v1762 = vadd.f32 %v1698, %v1702
          %v1763 = vadd.f32 %v1762, %v1706
          %v1764 = vadd.f32 %v1763, %v1710
          %v1765 = vadd.f32 %v1764, %v1714
          %v1766 = vadd.f32 %v1765, %v1718
          %v1767 = vadd.f32 %v1766, %v1722
          %v1768 = vadd.f32 %v1767, %v1726
          %v1769 = vrot.slane %v1768, 4
          %v1770 = vadd.f32 %v1768, %v1769
          %v1771 = vrot.slane %v1770, 2
          %v1772 = vadd.f32 %v1770, %v1771
          %v1773 = vrot.slane %v1772, 1
          %v1774 = vadd.f32 %v1772, %v1773
          %v1775 = vadd.f32 %v1699, %v1703
          %v1776 = vadd.f32 %v1775, %v1707
          %v1777 = vadd.f32 %v1776, %v1711
          %v1778 = vadd.f32 %v1777, %v1715
          %v1779 = vadd.f32 %v1778, %v1719
          %v1780 = vadd.f32 %v1779, %v1723
          %v1781 = vadd.f32 %v1780, %v1727
          %v1782 = vrot.slane %v1781, 4
          %v1783 = vadd.f32 %v1781, %v1782
          %v1784 = vrot.slane %v1783, 2
          %v1785 = vadd.f32 %v1783, %v1784
          %v1786 = vrot.slane %v1785, 1
          %v1787 = vadd.f32 %v1785, %v1786
          %v1788 = vadd.f32 %v1700, %v1704
          %v1789 = vadd.f32 %v1788, %v1708
          %v1790 = vadd.f32 %v1789, %v1712
          %v1791 = vadd.f32 %v1790, %v1716
          %v1792 = vadd.f32 %v1791, %v1720
          %v1793 = vadd.f32 %v1792, %v1724
          %v1794 = vadd.f32 %v1793, %v1728
          %v1795 = vrot.slane %v1794, 4
          %v1796 = vadd.f32 %v1794, %v1795
          %v1797 = vrot.slane %v1796, 2
          %v1798 = vadd.f32 %v1796, %v1797
          %v1799 = vrot.slane %v1798, 1
          %v1800 = vadd.f32 %v1798, %v1799
          %v1801 = vadd.f32 %v1701, %v1705
          %v1802 = vadd.f32 %v1801, %v1709
          %v1803 = vadd.f32 %v1802, %v1713
          %v1804 = vadd.f32 %v1803, %v1717
          %v1805 = vadd.f32 %v1804, %v1721
          %v1806 = vadd.f32 %v1805, %v1725
          %v1807 = vadd.f32 %v1806, %v1729
          %v1808 = vrot.slane %v1807, 4
          %v1809 = vadd.f32 %v1807, %v1808
          %v1810 = vrot.slane %v1809, 2
          %v1811 = vadd.f32 %v1809, %v1810
          %v1812 = vrot.slane %v1811, 1
          %v1813 = vadd.f32 %v1811, %v1812
          %v1814 = vadd.f32 %v1730, %v1734
          %v1815 = vadd.f32 %v1814, %v1738
          %v1816 = vadd.f32 %v1815, %v1742
          %v1817 = vadd.f32 %v1816, %v1746
          %v1818 = vadd.f32 %v1817, %v1750
          %v1819 = vadd.f32 %v1818, %v1754
          %v1820 = vadd.f32 %v1819, %v1758
          %v1821 = vrot.slane %v1820, 4
          %v1822 = vadd.f32 %v1820, %v1821
          %v1823 = vrot.slane %v1822, 2
          %v1824 = vadd.f32 %v1822, %v1823
          %v1825 = vrot.slane %v1824, 1
          %v1826 = vadd.f32 %v1824, %v1825
          %v1827 = vadd.f32 %v1731, %v1735
          %v1828 = vadd.f32 %v1827, %v1739
          %v1829 = vadd.f32 %v1828, %v1743
          %v1830 = vadd.f32 %v1829, %v1747
          %v1831 = vadd.f32 %v1830, %v1751
          %v1832 = vadd.f32 %v1831, %v1755
          %v1833 = vadd.f32 %v1832, %v1759
          %v1834 = vrot.slane %v1833, 4
          %v1835 = vadd.f32 %v1833, %v1834
          %v1836 = vrot.slane %v1835, 2
          %v1837 = vadd.f32 %v1835, %v1836
          %v1838 = vrot.slane %v1837, 1
          %v1839 = vadd.f32 %v1837, %v1838
          %v1840 = vadd.f32 %v1732, %v1736
          %v1841 = vadd.f32 %v1840, %v1740
          %v1842 = vadd.f32 %v1841, %v1744
          %v1843 = vadd.f32 %v1842, %v1748
          %v1844 = vadd.f32 %v1843, %v1752
          %v1845 = vadd.f32 %v1844, %v1756
          %v1846 = vadd.f32 %v1845, %v1760
          %v1847 = vrot.slane %v1846, 4
          %v1848 = vadd.f32 %v1846, %v1847
          %v1849 = vrot.slane %v1848, 2
          %v1850 = vadd.f32 %v1848, %v1849
          %v1851 = vrot.slane %v1850, 1
          %v1852 = vadd.f32 %v1850, %v1851
          %v1853 = vadd.f32 %v1733, %v1737
          %v1854 = vadd.f32 %v1853, %v1741
          %v1855 = vadd.f32 %v1854, %v1745
          %v1856 = vadd.f32 %v1855, %v1749
          %v1857 = vadd.f32 %v1856, %v1753
          %v1858 = vadd.f32 %v1857, %v1757
          %v1859 = vadd.f32 %v1858, %v1761
          %v1860 = vrot.slane %v1859, 4
          %v1861 = vadd.f32 %v1859, %v1860
          %v1862 = vrot.slane %v1861, 2
          %v1863 = vadd.f32 %v1861, %v1862
          %v1864 = vrot.slane %v1863, 1
          %v1865 = vadd.f32 %v1863, %v1864
          %vm1866 = vcmask 1040384
          %v1867 = vsel %vm1866, %v1774, %v1826
          %v1868 = vsel %vm1866, %v1787, %v1839
          %v1869 = vsel %vm1866, %v1800, %v1852
          %v1870 = vsel %vm1866, %v1813, %v1865
          %v1875 = vcombine.low %v1867, %v1868
          %v1876 = vcombine.low %v1869, %v1870
          %v1878 = vunpack.c.l.s4 1983009808
          %v1879 = vunpack.c.0.s8 %v1878
          %v1880 = vlaneseq
          %v1881 = vshrl.u32 %v1880, 7
          %v1882 = vsub.s32 %v1879, %v1881
          %v1883 = vrot.slane %v1875, %v1882
          %v1885 = vunpack.c.l.s4 1983009808
          %v1886 = vunpack.c.0.s8 %v1885
          %v1887 = vlaneseq
          %v1888 = vshrl.u32 %v1887, 7
          %v1889 = vsub.s32 %v1886, %v1888
          %v1890 = vrot.slane %v1876, %v1889
          %v1891 = vcombine.low %v1883, %v1890
          %1893 = vst [vmem:[#allocation7] sm:$0xff] %v1891
          %p1894 = scmp.eq.s32.totalorder %s30, 0
          // Predicated region
          $region85: #{encode_project_apply.1} parent=83 // pred_check
            %p1895 = pneg %p1894
          $region86: #{encode_project_apply.1} parent=83 // pred_check_branch
            %1897 = sbr.rel (%p1895) target = $region88
          $region87: #{encode_project_apply.1} parent=83 // pred_region
            %v1898 = vld [vmem:[#allocation7] sm:$0xff]
            %v1899 = vmul.f32 %v1898, 0.015625
            %1900 = vst [vmem:[#allocation8] sm:$0xff] %v1899
            %v1902 = vcombine.high %v1899, %v1899
            %v1904 = vunpack.c.l.s4 1983009808
            %v1905 = vunpack.c.0.s8 %v1904
            %v1906 = vlaneseq
            %v1907 = vshrl.u32 %v1906, 7
            %v1908 = vsub.s32 %v1905, %v1907
            %v1909 = vrot.slane %v1899, %v1908
            %v1911 = vunpack.c.l.s4 1983009808
            %v1912 = vunpack.c.0.s8 %v1911
            %v1913 = vlaneseq
            %v1914 = vshrl.u32 %v1913, 7
            %v1915 = vsub.s32 %v1912, %v1914
            %v1916 = vrot.slane %v1902, %v1915
            %v1917 = vcombine.high %v1909, %v1909
            %v1918 = vcombine.high %v1916, %v1916
            %v1923 = vpack.c.bf16 %v1909, %v1909
            %v1924 = vpack.c.bf16 %v1917, %v1917
            %v1925 = vpack.c.bf16 %v1916, %v1916
            %v1926 = vpack.c.bf16 %v1918, %v1918
            %v1927 = vld [vmem:[%s4] sm:$0xff]
            %v1928 = vld [vmem:[%s4 + $0x8] sm:$0xff]
            %v1929 = vld [vmem:[%s4 + $0x10] sm:$0xff]
            %v1930 = vld [vmem:[%s4 + $0x18] sm:$0xff]
            %v1931 = vld [vmem:[%s4 + $0x20] sm:$0xff]
            %v1932 = vld [vmem:[%s4 + $0x28] sm:$0xff]
            %v1933 = vld [vmem:[%s4 + $0x30] sm:$0xff]
            %v1934 = vld [vmem:[%s4 + $0x38] sm:$0xff]
            %v1935 = vld [vmem:[%s4 + $0x40] sm:$0xff]
            %v1936 = vld [vmem:[%s4 + $0x48] sm:$0xff]
            %v1937 = vld [vmem:[%s4 + $0x50] sm:$0xff]
            %v1938 = vld [vmem:[%s4 + $0x58] sm:$0xff]
            %v1939 = vld [vmem:[%s4 + $0x60] sm:$0xff]
            %v1940 = vld [vmem:[%s4 + $0x68] sm:$0xff]
            %v1941 = vld [vmem:[%s4 + $0x70] sm:$0xff]
            %v1942 = vld [vmem:[%s4 + $0x78] sm:$0xff]
            %v1943 = vld [vmem:[%s4 + $0x80] sm:$0xff]
            %v1944 = vld [vmem:[%s4 + $0x88] sm:$0xff]
            %v1945 = vld [vmem:[%s4 + $0x90] sm:$0xff]
            %v1946 = vld [vmem:[%s4 + $0x98] sm:$0xff]
            %v1947 = vld [vmem:[%s4 + $0xa0] sm:$0xff]
            %v1948 = vld [vmem:[%s4 + $0xa8] sm:$0xff]
            %v1949 = vld [vmem:[%s4 + $0xb0] sm:$0xff]
            %v1950 = vld [vmem:[%s4 + $0xb8] sm:$0xff]
            %v1951 = vld [vmem:[%s4 + $0xc0] sm:$0xff]
            %v1952 = vld [vmem:[%s4 + $0xc8] sm:$0xff]
            %v1953 = vld [vmem:[%s4 + $0xd0] sm:$0xff]
            %v1954 = vld [vmem:[%s4 + $0xd8] sm:$0xff]
            %v1955 = vld [vmem:[%s4 + $0xe0] sm:$0xff]
            %v1956 = vld [vmem:[%s4 + $0xe8] sm:$0xff]
            %v1957 = vld [vmem:[%s4 + $0xf0] sm:$0xff]
            %v1958 = vld [vmem:[%s4 + $0xf8] sm:$0xff]
            %v1959 = vld [vmem:[%s4 + $0x100] sm:$0xff]
            %v1960 = vld [vmem:[%s4 + $0x108] sm:$0xff]
            %v1961 = vld [vmem:[%s4 + $0x110] sm:$0xff]
            %v1962 = vld [vmem:[%s4 + $0x118] sm:$0xff]
            %v1963 = vld [vmem:[%s4 + $0x120] sm:$0xff]
            %v1964 = vld [vmem:[%s4 + $0x128] sm:$0xff]
            %v1965 = vld [vmem:[%s4 + $0x130] sm:$0xff]
            %v1966 = vld [vmem:[%s4 + $0x138] sm:$0xff]
            %v1967 = vld [vmem:[%s4 + $0x140] sm:$0xff]
            %v1968 = vld [vmem:[%s4 + $0x148] sm:$0xff]
            %v1969 = vld [vmem:[%s4 + $0x150] sm:$0xff]
            %v1970 = vld [vmem:[%s4 + $0x158] sm:$0xff]
            %v1971 = vld [vmem:[%s4 + $0x160] sm:$0xff]
            %v1972 = vld [vmem:[%s4 + $0x168] sm:$0xff]
            %v1973 = vld [vmem:[%s4 + $0x170] sm:$0xff]
            %v1974 = vld [vmem:[%s4 + $0x178] sm:$0xff]
            %v1975 = vld [vmem:[%s4 + $0x180] sm:$0xff]
            %v1976 = vld [vmem:[%s4 + $0x188] sm:$0xff]
            %v1977 = vld [vmem:[%s4 + $0x190] sm:$0xff]
            %v1978 = vld [vmem:[%s4 + $0x198] sm:$0xff]
            %v1979 = vld [vmem:[%s4 + $0x1a0] sm:$0xff]
            %v1980 = vld [vmem:[%s4 + $0x1a8] sm:$0xff]
            %v1981 = vld [vmem:[%s4 + $0x1b0] sm:$0xff]
            %v1982 = vld [vmem:[%s4 + $0x1b8] sm:$0xff]
            %v1983 = vld [vmem:[%s4 + $0x1c0] sm:$0xff]
            %v1984 = vld [vmem:[%s4 + $0x1c8] sm:$0xff]
            %v1985 = vld [vmem:[%s4 + $0x1d0] sm:$0xff]
            %v1986 = vld [vmem:[%s4 + $0x1d8] sm:$0xff]
            %v1987 = vld [vmem:[%s4 + $0x1e0] sm:$0xff]
            %v1988 = vld [vmem:[%s4 + $0x1e8] sm:$0xff]
            %v1989 = vld [vmem:[%s4 + $0x1f0] sm:$0xff]
            %v1990 = vld [vmem:[%s4 + $0x1f8] sm:$0xff]
            %v1991 = vld [vmem:[%s4 + $0x200] sm:$0xff]
            %v1992 = vld [vmem:[%s4 + $0x208] sm:$0xff]
            %v1993 = vld [vmem:[%s4 + $0x210] sm:$0xff]
            %v1994 = vld [vmem:[%s4 + $0x218] sm:$0xff]
            %v1995 = vld [vmem:[%s4 + $0x220] sm:$0xff]
            %v1996 = vld [vmem:[%s4 + $0x228] sm:$0xff]
            %v1997 = vld [vmem:[%s4 + $0x230] sm:$0xff]
            %v1998 = vld [vmem:[%s4 + $0x238] sm:$0xff]
            %v1999 = vld [vmem:[%s4 + $0x240] sm:$0xff]
            %v2000 = vld [vmem:[%s4 + $0x248] sm:$0xff]
            %v2001 = vld [vmem:[%s4 + $0x250] sm:$0xff]
            %v2002 = vld [vmem:[%s4 + $0x258] sm:$0xff]
            %v2003 = vld [vmem:[%s4 + $0x260] sm:$0xff]
            %v2004 = vld [vmem:[%s4 + $0x268] sm:$0xff]
            %v2005 = vld [vmem:[%s4 + $0x270] sm:$0xff]
            %v2006 = vld [vmem:[%s4 + $0x278] sm:$0xff]
            %v2007 = vld [vmem:[%s4 + $0x280] sm:$0xff]
            %v2008 = vld [vmem:[%s4 + $0x288] sm:$0xff]
            %v2009 = vld [vmem:[%s4 + $0x290] sm:$0xff]
            %v2010 = vld [vmem:[%s4 + $0x298] sm:$0xff]
            %v2011 = vld [vmem:[%s4 + $0x2a0] sm:$0xff]
            %v2012 = vld [vmem:[%s4 + $0x2a8] sm:$0xff]
            %v2013 = vld [vmem:[%s4 + $0x2b0] sm:$0xff]
            %v2014 = vld [vmem:[%s4 + $0x2b8] sm:$0xff]
            %v2015 = vld [vmem:[%s4 + $0x2c0] sm:$0xff]
            %v2016 = vld [vmem:[%s4 + $0x2c8] sm:$0xff]
            %v2017 = vld [vmem:[%s4 + $0x2d0] sm:$0xff]
            %v2018 = vld [vmem:[%s4 + $0x2d8] sm:$0xff]
            %v2019 = vld [vmem:[%s4 + $0x2e0] sm:$0xff]
            %v2020 = vld [vmem:[%s4 + $0x2e8] sm:$0xff]
            %v2021 = vld [vmem:[%s4 + $0x2f0] sm:$0xff]
            %v2022 = vld [vmem:[%s4 + $0x2f8] sm:$0xff]
            %v2023 = vld [vmem:[%s4 + $0x300] sm:$0xff]
            %v2024 = vld [vmem:[%s4 + $0x308] sm:$0xff]
            %v2025 = vld [vmem:[%s4 + $0x310] sm:$0xff]
            %v2026 = vld [vmem:[%s4 + $0x318] sm:$0xff]
            %v2027 = vld [vmem:[%s4 + $0x320] sm:$0xff]
            %v2028 = vld [vmem:[%s4 + $0x328] sm:$0xff]
            %v2029 = vld [vmem:[%s4 + $0x330] sm:$0xff]
            %v2030 = vld [vmem:[%s4 + $0x338] sm:$0xff]
            %v2031 = vld [vmem:[%s4 + $0x340] sm:$0xff]
            %v2032 = vld [vmem:[%s4 + $0x348] sm:$0xff]
            %v2033 = vld [vmem:[%s4 + $0x350] sm:$0xff]
            %v2034 = vld [vmem:[%s4 + $0x358] sm:$0xff]
            %v2035 = vld [vmem:[%s4 + $0x360] sm:$0xff]
            %v2036 = vld [vmem:[%s4 + $0x368] sm:$0xff]
            %v2037 = vld [vmem:[%s4 + $0x370] sm:$0xff]
            %v2038 = vld [vmem:[%s4 + $0x378] sm:$0xff]
            %v2039 = vld [vmem:[%s4 + $0x380] sm:$0xff]
            %v2040 = vld [vmem:[%s4 + $0x388] sm:$0xff]
            %v2041 = vld [vmem:[%s4 + $0x390] sm:$0xff]
            %v2042 = vld [vmem:[%s4 + $0x398] sm:$0xff]
            %v2043 = vld [vmem:[%s4 + $0x3a0] sm:$0xff]
            %v2044 = vld [vmem:[%s4 + $0x3a8] sm:$0xff]
            %v2045 = vld [vmem:[%s4 + $0x3b0] sm:$0xff]
            %v2046 = vld [vmem:[%s4 + $0x3b8] sm:$0xff]
            %v2047 = vld [vmem:[%s4 + $0x3c0] sm:$0xff]
            %v2048 = vld [vmem:[%s4 + $0x3c8] sm:$0xff]
            %v2049 = vld [vmem:[%s4 + $0x3d0] sm:$0xff]
            %v2050 = vld [vmem:[%s4 + $0x3d8] sm:$0xff]
            %v2051 = vld [vmem:[%s4 + $0x3e0] sm:$0xff]
            %v2052 = vld [vmem:[%s4 + $0x3e8] sm:$0xff]
            %v2053 = vld [vmem:[%s4 + $0x3f0] sm:$0xff]
            %v2054 = vld [vmem:[%s4 + $0x3f8] sm:$0xff]
            %v2183 = vunpack.c.l.b16 %v1927
            %v2184 = vunpack.c.h.b16 %v1927
            %v2185 = vunpack.c.l.b16 %v1928
            %v2186 = vunpack.c.h.b16 %v1928
            %v2187 = vunpack.c.l.b16 %v1929
            %v2188 = vunpack.c.h.b16 %v1929
            %v2189 = vunpack.c.l.b16 %v1930
            %v2190 = vunpack.c.h.b16 %v1930
            %v2191 = vunpack.c.l.b16 %v1931
            %v2192 = vunpack.c.h.b16 %v1931
            %v2193 = vunpack.c.l.b16 %v1932
            %v2194 = vunpack.c.h.b16 %v1932
            %v2195 = vunpack.c.l.b16 %v1933
            %v2196 = vunpack.c.h.b16 %v1933
            %v2197 = vunpack.c.l.b16 %v1934
            %v2198 = vunpack.c.h.b16 %v1934
            %v2199 = vunpack.c.l.b16 %v1935
            %v2200 = vunpack.c.h.b16 %v1935
            %v2201 = vunpack.c.l.b16 %v1936
            %v2202 = vunpack.c.h.b16 %v1936
            %v2203 = vunpack.c.l.b16 %v1937
            %v2204 = vunpack.c.h.b16 %v1937
            %v2205 = vunpack.c.l.b16 %v1938
            %v2206 = vunpack.c.h.b16 %v1938
            %v2207 = vunpack.c.l.b16 %v1939
            %v2208 = vunpack.c.h.b16 %v1939
            %v2209 = vunpack.c.l.b16 %v1940
            %v2210 = vunpack.c.h.b16 %v1940
            %v2211 = vunpack.c.l.b16 %v1941
            %v2212 = vunpack.c.h.b16 %v1941
            %v2213 = vunpack.c.l.b16 %v1942
            %v2214 = vunpack.c.h.b16 %v1942
            %v2215 = vunpack.c.l.b16 %v1943
            %v2216 = vunpack.c.h.b16 %v1943
            %v2217 = vunpack.c.l.b16 %v1944
            %v2218 = vunpack.c.h.b16 %v1944
            %v2219 = vunpack.c.l.b16 %v1945
            %v2220 = vunpack.c.h.b16 %v1945
            %v2221 = vunpack.c.l.b16 %v1946
            %v2222 = vunpack.c.h.b16 %v1946
            %v2223 = vunpack.c.l.b16 %v1947
            %v2224 = vunpack.c.h.b16 %v1947
            %v2225 = vunpack.c.l.b16 %v1948
            %v2226 = vunpack.c.h.b16 %v1948
            %v2227 = vunpack.c.l.b16 %v1949
            %v2228 = vunpack.c.h.b16 %v1949
            %v2229 = vunpack.c.l.b16 %v1950
            %v2230 = vunpack.c.h.b16 %v1950
            %v2231 = vunpack.c.l.b16 %v1951
            %v2232 = vunpack.c.h.b16 %v1951
            %v2233 = vunpack.c.l.b16 %v1952
            %v2234 = vunpack.c.h.b16 %v1952
            %v2235 = vunpack.c.l.b16 %v1953
            %v2236 = vunpack.c.h.b16 %v1953
            %v2237 = vunpack.c.l.b16 %v1954
            %v2238 = vunpack.c.h.b16 %v1954
            %v2239 = vunpack.c.l.b16 %v1955
            %v2240 = vunpack.c.h.b16 %v1955
            %v2241 = vunpack.c.l.b16 %v1956
            %v2242 = vunpack.c.h.b16 %v1956
            %v2243 = vunpack.c.l.b16 %v1957
            %v2244 = vunpack.c.h.b16 %v1957
            %v2245 = vunpack.c.l.b16 %v1958
            %v2246 = vunpack.c.h.b16 %v1958
            %v2247 = vunpack.c.l.b16 %v1959
            %v2248 = vunpack.c.h.b16 %v1959
            %v2249 = vunpack.c.l.b16 %v1960
            %v2250 = vunpack.c.h.b16 %v1960
            %v2251 = vunpack.c.l.b16 %v1961
            %v2252 = vunpack.c.h.b16 %v1961
            %v2253 = vunpack.c.l.b16 %v1962
            %v2254 = vunpack.c.h.b16 %v1962
            %v2255 = vunpack.c.l.b16 %v1963
            %v2256 = vunpack.c.h.b16 %v1963
            %v2257 = vunpack.c.l.b16 %v1964
            %v2258 = vunpack.c.h.b16 %v1964
            %v2259 = vunpack.c.l.b16 %v1965
            %v2260 = vunpack.c.h.b16 %v1965
            %v2261 = vunpack.c.l.b16 %v1966
            %v2262 = vunpack.c.h.b16 %v1966
            %v2263 = vunpack.c.l.b16 %v1967
            %v2264 = vunpack.c.h.b16 %v1967
            %v2265 = vunpack.c.l.b16 %v1968
            %v2266 = vunpack.c.h.b16 %v1968
            %v2267 = vunpack.c.l.b16 %v1969
            %v2268 = vunpack.c.h.b16 %v1969
            %v2269 = vunpack.c.l.b16 %v1970
            %v2270 = vunpack.c.h.b16 %v1970
            %v2271 = vunpack.c.l.b16 %v1971
            %v2272 = vunpack.c.h.b16 %v1971
            %v2273 = vunpack.c.l.b16 %v1972
            %v2274 = vunpack.c.h.b16 %v1972
            %v2275 = vunpack.c.l.b16 %v1973
            %v2276 = vunpack.c.h.b16 %v1973
            %v2277 = vunpack.c.l.b16 %v1974
            %v2278 = vunpack.c.h.b16 %v1974
            %v2279 = vunpack.c.l.b16 %v1975
            %v2280 = vunpack.c.h.b16 %v1975
            %v2281 = vunpack.c.l.b16 %v1976
            %v2282 = vunpack.c.h.b16 %v1976
            %v2283 = vunpack.c.l.b16 %v1977
            %v2284 = vunpack.c.h.b16 %v1977
            %v2285 = vunpack.c.l.b16 %v1978
            %v2286 = vunpack.c.h.b16 %v1978
            %v2287 = vunpack.c.l.b16 %v1979
            %v2288 = vunpack.c.h.b16 %v1979
            %v2289 = vunpack.c.l.b16 %v1980
            %v2290 = vunpack.c.h.b16 %v1980
            %v2291 = vunpack.c.l.b16 %v1981
            %v2292 = vunpack.c.h.b16 %v1981
            %v2293 = vunpack.c.l.b16 %v1982
            %v2294 = vunpack.c.h.b16 %v1982
            %v2295 = vunpack.c.l.b16 %v1983
            %v2296 = vunpack.c.h.b16 %v1983
            %v2297 = vunpack.c.l.b16 %v1984
            %v2298 = vunpack.c.h.b16 %v1984
            %v2299 = vunpack.c.l.b16 %v1985
            %v2300 = vunpack.c.h.b16 %v1985
            %v2301 = vunpack.c.l.b16 %v1986
            %v2302 = vunpack.c.h.b16 %v1986
            %v2303 = vunpack.c.l.b16 %v1987
            %v2304 = vunpack.c.h.b16 %v1987
            %v2305 = vunpack.c.l.b16 %v1988
            %v2306 = vunpack.c.h.b16 %v1988
            %v2307 = vunpack.c.l.b16 %v1989
            %v2308 = vunpack.c.h.b16 %v1989
            %v2309 = vunpack.c.l.b16 %v1990
            %v2310 = vunpack.c.h.b16 %v1990
            %v2311 = vunpack.c.l.b16 %v1991
            %v2312 = vunpack.c.h.b16 %v1991
            %v2313 = vunpack.c.l.b16 %v1992
            %v2314 = vunpack.c.h.b16 %v1992
            %v2315 = vunpack.c.l.b16 %v1993
            %v2316 = vunpack.c.h.b16 %v1993
            %v2317 = vunpack.c.l.b16 %v1994
            %v2318 = vunpack.c.h.b16 %v1994
            %v2319 = vunpack.c.l.b16 %v1995
            %v2320 = vunpack.c.h.b16 %v1995
            %v2321 = vunpack.c.l.b16 %v1996
            %v2322 = vunpack.c.h.b16 %v1996
            %v2323 = vunpack.c.l.b16 %v1997
            %v2324 = vunpack.c.h.b16 %v1997
            %v2325 = vunpack.c.l.b16 %v1998
            %v2326 = vunpack.c.h.b16 %v1998
            %v2327 = vunpack.c.l.b16 %v1999
            %v2328 = vunpack.c.h.b16 %v1999
            %v2329 = vunpack.c.l.b16 %v2000
            %v2330 = vunpack.c.h.b16 %v2000
            %v2331 = vunpack.c.l.b16 %v2001
            %v2332 = vunpack.c.h.b16 %v2001
            %v2333 = vunpack.c.l.b16 %v2002
            %v2334 = vunpack.c.h.b16 %v2002
            %v2335 = vunpack.c.l.b16 %v2003
            %v2336 = vunpack.c.h.b16 %v2003
            %v2337 = vunpack.c.l.b16 %v2004
            %v2338 = vunpack.c.h.b16 %v2004
            %v2339 = vunpack.c.l.b16 %v2005
            %v2340 = vunpack.c.h.b16 %v2005
            %v2341 = vunpack.c.l.b16 %v2006
            %v2342 = vunpack.c.h.b16 %v2006
            %v2343 = vunpack.c.l.b16 %v2007
            %v2344 = vunpack.c.h.b16 %v2007
            %v2345 = vunpack.c.l.b16 %v2008
            %v2346 = vunpack.c.h.b16 %v2008
            %v2347 = vunpack.c.l.b16 %v2009
            %v2348 = vunpack.c.h.b16 %v2009
            %v2349 = vunpack.c.l.b16 %v2010
            %v2350 = vunpack.c.h.b16 %v2010
            %v2351 = vunpack.c.l.b16 %v2011
            %v2352 = vunpack.c.h.b16 %v2011
            %v2353 = vunpack.c.l.b16 %v2012
            %v2354 = vunpack.c.h.b16 %v2012
            %v2355 = vunpack.c.l.b16 %v2013
            %v2356 = vunpack.c.h.b16 %v2013
            %v2357 = vunpack.c.l.b16 %v2014
            %v2358 = vunpack.c.h.b16 %v2014
            %v2359 = vunpack.c.l.b16 %v2015
            %v2360 = vunpack.c.h.b16 %v2015
            %v2361 = vunpack.c.l.b16 %v2016
            %v2362 = vunpack.c.h.b16 %v2016
            %v2363 = vunpack.c.l.b16 %v2017
            %v2364 = vunpack.c.h.b16 %v2017
            %v2365 = vunpack.c.l.b16 %v2018
            %v2366 = vunpack.c.h.b16 %v2018
            %v2367 = vunpack.c.l.b16 %v2019
            %v2368 = vunpack.c.h.b16 %v2019
            %v2369 = vunpack.c.l.b16 %v2020
            %v2370 = vunpack.c.h.b16 %v2020
            %v2371 = vunpack.c.l.b16 %v2021
            %v2372 = vunpack.c.h.b16 %v2021
            %v2373 = vunpack.c.l.b16 %v2022
            %v2374 = vunpack.c.h.b16 %v2022
            %v2375 = vunpack.c.l.b16 %v2023
            %v2376 = vunpack.c.h.b16 %v2023
            %v2377 = vunpack.c.l.b16 %v2024
            %v2378 = vunpack.c.h.b16 %v2024
            %v2379 = vunpack.c.l.b16 %v2025
            %v2380 = vunpack.c.h.b16 %v2025
            %v2381 = vunpack.c.l.b16 %v2026
            %v2382 = vunpack.c.h.b16 %v2026
            %v2383 = vunpack.c.l.b16 %v2027
            %v2384 = vunpack.c.h.b16 %v2027
            %v2385 = vunpack.c.l.b16 %v2028
            %v2386 = vunpack.c.h.b16 %v2028
            %v2387 = vunpack.c.l.b16 %v2029
            %v2388 = vunpack.c.h.b16 %v2029
            %v2389 = vunpack.c.l.b16 %v2030
            %v2390 = vunpack.c.h.b16 %v2030
            %v2391 = vunpack.c.l.b16 %v2031
            %v2392 = vunpack.c.h.b16 %v2031
            %v2393 = vunpack.c.l.b16 %v2032
            %v2394 = vunpack.c.h.b16 %v2032
            %v2395 = vunpack.c.l.b16 %v2033
            %v2396 = vunpack.c.h.b16 %v2033
            %v2397 = vunpack.c.l.b16 %v2034
            %v2398 = vunpack.c.h.b16 %v2034
            %v2399 = vunpack.c.l.b16 %v2035
            %v2400 = vunpack.c.h.b16 %v2035
            %v2401 = vunpack.c.l.b16 %v2036
            %v2402 = vunpack.c.h.b16 %v2036
            %v2403 = vunpack.c.l.b16 %v2037
            %v2404 = vunpack.c.h.b16 %v2037
            %v2405 = vunpack.c.l.b16 %v2038
            %v2406 = vunpack.c.h.b16 %v2038
            %v2407 = vunpack.c.l.b16 %v2039
            %v2408 = vunpack.c.h.b16 %v2039
            %v2409 = vunpack.c.l.b16 %v2040
            %v2410 = vunpack.c.h.b16 %v2040
            %v2411 = vunpack.c.l.b16 %v2041
            %v2412 = vunpack.c.h.b16 %v2041
            %v2413 = vunpack.c.l.b16 %v2042
            %v2414 = vunpack.c.h.b16 %v2042
            %v2415 = vunpack.c.l.b16 %v2043
            %v2416 = vunpack.c.h.b16 %v2043
            %v2417 = vunpack.c.l.b16 %v2044
            %v2418 = vunpack.c.h.b16 %v2044
            %v2419 = vunpack.c.l.b16 %v2045
            %v2420 = vunpack.c.h.b16 %v2045
            %v2421 = vunpack.c.l.b16 %v2046
            %v2422 = vunpack.c.h.b16 %v2046
            %v2423 = vunpack.c.l.b16 %v2047
            %v2424 = vunpack.c.h.b16 %v2047
            %v2425 = vunpack.c.l.b16 %v2048
            %v2426 = vunpack.c.h.b16 %v2048
            %v2427 = vunpack.c.l.b16 %v2049
            %v2428 = vunpack.c.h.b16 %v2049
            %v2429 = vunpack.c.l.b16 %v2050
            %v2430 = vunpack.c.h.b16 %v2050
            %v2431 = vunpack.c.l.b16 %v2051
            %v2432 = vunpack.c.h.b16 %v2051
            %v2433 = vunpack.c.l.b16 %v2052
            %v2434 = vunpack.c.h.b16 %v2052
            %v2435 = vunpack.c.l.b16 %v2053
            %v2436 = vunpack.c.h.b16 %v2053
            %v2437 = vunpack.c.l.b16 %v2054
            %v2438 = vunpack.c.h.b16 %v2054
            %v2439 = vpack.c.b16 %v2187, %v2183
            %v2440 = vpack.c.b16 %v2188, %v2184
            %v2441 = vpack.c.b16 %v2189, %v2185
            %v2442 = vpack.c.b16 %v2190, %v2186
            %v2443 = vpack.c.b16 %v2195, %v2191
            %v2444 = vpack.c.b16 %v2196, %v2192
            %v2445 = vpack.c.b16 %v2197, %v2193
            %v2446 = vpack.c.b16 %v2198, %v2194
            %v2447 = vpack.c.b16 %v2203, %v2199
            %v2448 = vpack.c.b16 %v2204, %v2200
            %v2449 = vpack.c.b16 %v2205, %v2201
            %v2450 = vpack.c.b16 %v2206, %v2202
            %v2451 = vpack.c.b16 %v2211, %v2207
            %v2452 = vpack.c.b16 %v2212, %v2208
            %v2453 = vpack.c.b16 %v2213, %v2209
            %v2454 = vpack.c.b16 %v2214, %v2210
            %v2455 = vpack.c.b16 %v2219, %v2215
            %v2456 = vpack.c.b16 %v2220, %v2216
            %v2457 = vpack.c.b16 %v2221, %v2217
            %v2458 = vpack.c.b16 %v2222, %v2218
            %v2459 = vpack.c.b16 %v2227, %v2223
            %v2460 = vpack.c.b16 %v2228, %v2224
            %v2461 = vpack.c.b16 %v2229, %v2225
            %v2462 = vpack.c.b16 %v2230, %v2226
            %v2463 = vpack.c.b16 %v2235, %v2231
            %v2464 = vpack.c.b16 %v2236, %v2232
            %v2465 = vpack.c.b16 %v2237, %v2233
            %v2466 = vpack.c.b16 %v2238, %v2234
            %v2467 = vpack.c.b16 %v2243, %v2239
            %v2468 = vpack.c.b16 %v2244, %v2240
            %v2469 = vpack.c.b16 %v2245, %v2241
            %v2470 = vpack.c.b16 %v2246, %v2242
            %v2471 = vpack.c.b16 %v2251, %v2247
            %v2472 = vpack.c.b16 %v2252, %v2248
            %v2473 = vpack.c.b16 %v2253, %v2249
            %v2474 = vpack.c.b16 %v2254, %v2250
            %v2475 = vpack.c.b16 %v2259, %v2255
            %v2476 = vpack.c.b16 %v2260, %v2256
            %v2477 = vpack.c.b16 %v2261, %v2257
            %v2478 = vpack.c.b16 %v2262, %v2258
            %v2479 = vpack.c.b16 %v2267, %v2263
            %v2480 = vpack.c.b16 %v2268, %v2264
            %v2481 = vpack.c.b16 %v2269, %v2265
            %v2482 = vpack.c.b16 %v2270, %v2266
            %v2483 = vpack.c.b16 %v2275, %v2271
            %v2484 = vpack.c.b16 %v2276, %v2272
            %v2485 = vpack.c.b16 %v2277, %v2273
            %v2486 = vpack.c.b16 %v2278, %v2274
            %v2487 = vpack.c.b16 %v2283, %v2279
            %v2488 = vpack.c.b16 %v2284, %v2280
            %v2489 = vpack.c.b16 %v2285, %v2281
            %v2490 = vpack.c.b16 %v2286, %v2282
            %v2491 = vpack.c.b16 %v2291, %v2287
            %v2492 = vpack.c.b16 %v2292, %v2288
            %v2493 = vpack.c.b16 %v2293, %v2289
            %v2494 = vpack.c.b16 %v2294, %v2290
            %v2495 = vpack.c.b16 %v2299, %v2295
            %v2496 = vpack.c.b16 %v2300, %v2296
            %v2497 = vpack.c.b16 %v2301, %v2297
            %v2498 = vpack.c.b16 %v2302, %v2298
            %v2499 = vpack.c.b16 %v2307, %v2303
            %v2500 = vpack.c.b16 %v2308, %v2304
            %v2501 = vpack.c.b16 %v2309, %v2305
            %v2502 = vpack.c.b16 %v2310, %v2306
            %v2503 = vpack.c.b16 %v2315, %v2311
            %v2504 = vpack.c.b16 %v2316, %v2312
            %v2505 = vpack.c.b16 %v2317, %v2313
            %v2506 = vpack.c.b16 %v2318, %v2314
            %v2507 = vpack.c.b16 %v2323, %v2319
            %v2508 = vpack.c.b16 %v2324, %v2320
            %v2509 = vpack.c.b16 %v2325, %v2321
            %v2510 = vpack.c.b16 %v2326, %v2322
            %v2511 = vpack.c.b16 %v2331, %v2327
            %v2512 = vpack.c.b16 %v2332, %v2328
            %v2513 = vpack.c.b16 %v2333, %v2329
            %v2514 = vpack.c.b16 %v2334, %v2330
            %v2515 = vpack.c.b16 %v2339, %v2335
            %v2516 = vpack.c.b16 %v2340, %v2336
            %v2517 = vpack.c.b16 %v2341, %v2337
            %v2518 = vpack.c.b16 %v2342, %v2338
            %v2519 = vpack.c.b16 %v2347, %v2343
            %v2520 = vpack.c.b16 %v2348, %v2344
            %v2521 = vpack.c.b16 %v2349, %v2345
            %v2522 = vpack.c.b16 %v2350, %v2346
            %v2523 = vpack.c.b16 %v2355, %v2351
            %v2524 = vpack.c.b16 %v2356, %v2352
            %v2525 = vpack.c.b16 %v2357, %v2353
            %v2526 = vpack.c.b16 %v2358, %v2354
            %v2527 = vpack.c.b16 %v2363, %v2359
            %v2528 = vpack.c.b16 %v2364, %v2360
            %v2529 = vpack.c.b16 %v2365, %v2361
            %v2530 = vpack.c.b16 %v2366, %v2362
            %v2531 = vpack.c.b16 %v2371, %v2367
            %v2532 = vpack.c.b16 %v2372, %v2368
            %v2533 = vpack.c.b16 %v2373, %v2369
            %v2534 = vpack.c.b16 %v2374, %v2370
            %v2535 = vpack.c.b16 %v2379, %v2375
            %v2536 = vpack.c.b16 %v2380, %v2376
            %v2537 = vpack.c.b16 %v2381, %v2377
            %v2538 = vpack.c.b16 %v2382, %v2378
            %v2539 = vpack.c.b16 %v2387, %v2383
            %v2540 = vpack.c.b16 %v2388, %v2384
            %v2541 = vpack.c.b16 %v2389, %v2385
            %v2542 = vpack.c.b16 %v2390, %v2386
            %v2543 = vpack.c.b16 %v2395, %v2391
            %v2544 = vpack.c.b16 %v2396, %v2392
            %v2545 = vpack.c.b16 %v2397, %v2393
            %v2546 = vpack.c.b16 %v2398, %v2394
            %v2547 = vpack.c.b16 %v2403, %v2399
            %v2548 = vpack.c.b16 %v2404, %v2400
            %v2549 = vpack.c.b16 %v2405, %v2401
            %v2550 = vpack.c.b16 %v2406, %v2402
            %v2551 = vpack.c.b16 %v2411, %v2407
            %v2552 = vpack.c.b16 %v2412, %v2408
            %v2553 = vpack.c.b16 %v2413, %v2409
            %v2554 = vpack.c.b16 %v2414, %v2410
            %v2555 = vpack.c.b16 %v2419, %v2415
            %v2556 = vpack.c.b16 %v2420, %v2416
            %v2557 = vpack.c.b16 %v2421, %v2417
            %v2558 = vpack.c.b16 %v2422, %v2418
            %v2559 = vpack.c.b16 %v2427, %v2423
            %v2560 = vpack.c.b16 %v2428, %v2424
            %v2561 = vpack.c.b16 %v2429, %v2425
            %v2562 = vpack.c.b16 %v2430, %v2426
            %v2563 = vpack.c.b16 %v2435, %v2431
            %v2564 = vpack.c.b16 %v2436, %v2432
            %v2565 = vpack.c.b16 %v2437, %v2433
            %v2566 = vpack.c.b16 %v2438, %v2434
            %2695 = vmatprep.subr.bf16.mxu0 %v2468
            %2696 = vmatpush1.bf16.msra.mxu0 %v2467
            %2697 = vmatprep.subr.bf16.mxu0 %v2464
            %2698 = vmatpush1.bf16.msra.mxu0 %v2463
            %2699 = vmatprep.subr.bf16.mxu0 %v2460
            %2700 = vmatpush1.bf16.msra.mxu0 %v2459
            %2701 = vmatprep.subr.bf16.mxu0 %v2456
            %2702 = vmatpush1.bf16.msra.mxu0 %v2455
            %2703 = vmatprep.subr.bf16.mxu0 %v2452
            %2704 = vmatpush1.bf16.msra.mxu0 %v2451
            %2705 = vmatprep.subr.bf16.mxu0 %v2448
            %2706 = vmatpush1.bf16.msra.mxu0 %v2447
            %2707 = vmatprep.subr.bf16.mxu0 %v2444
            %2708 = vmatpush1.bf16.msra.mxu0 %v2443
            %2709 = vmatprep.subr.bf16.mxu0 %v2440
            %2710 = vmatpush1.bf16.msra.mxu0 %v2439
            %2711 = vmatprep.subr.bf16.mxu0 %v2500
            %2712 = vmatpush2.bf16.msra.mxu0 %v2499
            %2713 = vmatprep.subr.bf16.mxu0 %v2496
            %2714 = vmatpush2.bf16.msra.mxu0 %v2495
            %2715 = vmatprep.subr.bf16.mxu0 %v2492
            %2716 = vmatpush2.bf16.msra.mxu0 %v2491
            %2717 = vmatprep.subr.bf16.mxu0 %v2488
            %2718 = vmatpush2.bf16.msra.mxu0 %v2487
            %2719 = vmatprep.subr.bf16.mxu0 %v2484
            %2720 = vmatpush2.bf16.msra.mxu0 %v2483
            %2721 = vmatprep.subr.bf16.mxu0 %v2480
            %2722 = vmatpush2.bf16.msra.mxu0 %v2479
            %2723 = vmatprep.subr.bf16.mxu0 %v2476
            %2724 = vmatpush2.bf16.msra.mxu0 %v2475
            %2725 = vmatprep.subr.bf16.mxu0 %v2472
            %2726 = vmatpush2.bf16.msra.mxu0 %v2471
            %2727 = vmatprep.mubr.bf16.mxu0 %v1924
            %2728 = vmatmul.mubr.bf16.gmra.mxu0 %v1923
            %v2729 = vpop.f32.mrf.mxu0
            %v2730 = vadd.f32 0.0, %v2729
            %v2731 = vpop.f32.mrf.mxu0
            %v2732 = vadd.f32 0.0, %v2731
            %v2733 = vpop.f32.mrf.mxu0
            %v2734 = vpop.f32.mrf.mxu0
            %2735 = vdwg.mxu0
            %2736 = vmatprep.subr.bf16.mxu0 %v2532
            %2737 = vmatpush1.bf16.msra.mxu0 %v2531
            %2738 = vmatprep.subr.bf16.mxu0 %v2528
            %2739 = vmatpush1.bf16.msra.mxu0 %v2527
            %2740 = vmatprep.subr.bf16.mxu0 %v2524
            %2741 = vmatpush1.bf16.msra.mxu0 %v2523
            %2742 = vmatprep.subr.bf16.mxu0 %v2520
            %2743 = vmatpush1.bf16.msra.mxu0 %v2519
            %2744 = vmatprep.subr.bf16.mxu0 %v2516
            %2745 = vmatpush1.bf16.msra.mxu0 %v2515
            %2746 = vmatprep.subr.bf16.mxu0 %v2512
            %2747 = vmatpush1.bf16.msra.mxu0 %v2511
            %2748 = vmatprep.subr.bf16.mxu0 %v2508
            %2749 = vmatpush1.bf16.msra.mxu0 %v2507
            %2750 = vmatprep.subr.bf16.mxu0 %v2504
            %2751 = vmatpush1.bf16.msra.mxu0 %v2503
            %2752 = vmatprep.subr.bf16.mxu0 %v2564
            %2753 = vmatpush2.bf16.msra.mxu0 %v2563
            %2754 = vmatprep.subr.bf16.mxu0 %v2560
            %2755 = vmatpush2.bf16.msra.mxu0 %v2559
            %2756 = vmatprep.subr.bf16.mxu0 %v2556
            %2757 = vmatpush2.bf16.msra.mxu0 %v2555
            %2758 = vmatprep.subr.bf16.mxu0 %v2552
            %2759 = vmatpush2.bf16.msra.mxu0 %v2551
            %2760 = vmatprep.subr.bf16.mxu0 %v2548
            %2761 = vmatpush2.bf16.msra.mxu0 %v2547
            %2762 = vmatprep.subr.bf16.mxu0 %v2544
            %2763 = vmatpush2.bf16.msra.mxu0 %v2543
            %2764 = vmatprep.subr.bf16.mxu0 %v2540
            %2765 = vmatpush2.bf16.msra.mxu0 %v2539
            %2766 = vmatprep.subr.bf16.mxu0 %v2536
            %2767 = vmatpush2.bf16.msra.mxu0 %v2535
            %2768 = vmatprep.mubr.bf16.mxu0 %v1926
            %2769 = vmatmul.mubr.bf16.gmra.mxu0 %v1925
            %v2770 = vpop.f32.mrf.mxu0
            %v2771 = vadd.f32 %v2730, %v2770
            %v2772 = vpop.f32.mrf.mxu0
            %v2773 = vadd.f32 %v2732, %v2772
            %v2774 = vpop.f32.mrf.mxu0
            %v2775 = vpop.f32.mrf.mxu0
            %2776 = vdwg.mxu0
            %2777 = vmatprep.subr.bf16.mxu0 %v2470
            %2778 = vmatpush1.bf16.msra.mxu0 %v2469
            %2779 = vmatprep.subr.bf16.mxu0 %v2466
            %2780 = vmatpush1.bf16.msra.mxu0 %v2465
            %2781 = vmatprep.subr.bf16.mxu0 %v2462
            %2782 = vmatpush1.bf16.msra.mxu0 %v2461
            %2783 = vmatprep.subr.bf16.mxu0 %v2458
            %2784 = vmatpush1.bf16.msra.mxu0 %v2457
            %2785 = vmatprep.subr.bf16.mxu0 %v2454
            %2786 = vmatpush1.bf16.msra.mxu0 %v2453
            %2787 = vmatprep.subr.bf16.mxu0 %v2450
            %2788 = vmatpush1.bf16.msra.mxu0 %v2449
            %2789 = vmatprep.subr.bf16.mxu0 %v2446
            %2790 = vmatpush1.bf16.msra.mxu0 %v2445
            %2791 = vmatprep.subr.bf16.mxu0 %v2442
            %2792 = vmatpush1.bf16.msra.mxu0 %v2441
            %2793 = vmatprep.subr.bf16.mxu0 %v2502
            %2794 = vmatpush2.bf16.msra.mxu0 %v2501
            %2795 = vmatprep.subr.bf16.mxu0 %v2498
            %2796 = vmatpush2.bf16.msra.mxu0 %v2497
            %2797 = vmatprep.subr.bf16.mxu0 %v2494
            %2798 = vmatpush2.bf16.msra.mxu0 %v2493
            %2799 = vmatprep.subr.bf16.mxu0 %v2490
            %2800 = vmatpush2.bf16.msra.mxu0 %v2489
            %2801 = vmatprep.subr.bf16.mxu0 %v2486
            %2802 = vmatpush2.bf16.msra.mxu0 %v2485
            %2803 = vmatprep.subr.bf16.mxu0 %v2482
            %2804 = vmatpush2.bf16.msra.mxu0 %v2481
            %2805 = vmatprep.subr.bf16.mxu0 %v2478
            %2806 = vmatpush2.bf16.msra.mxu0 %v2477
            %2807 = vmatprep.subr.bf16.mxu0 %v2474
            %2808 = vmatpush2.bf16.msra.mxu0 %v2473
            %2809 = vmatprep.mubr.bf16.mxu0 %v1924
            %2810 = vmatmul.mubr.bf16.gmra.mxu0 %v1923
            %v2811 = vpop.f32.mrf.mxu0
            %v2812 = vadd.f32 0.0, %v2811
            %v2813 = vpop.f32.mrf.mxu0
            %v2814 = vadd.f32 0.0, %v2813
            %v2815 = vpop.f32.mrf.mxu0
            %v2816 = vpop.f32.mrf.mxu0
            %2817 = vdwg.mxu0
            %2818 = vmatprep.subr.bf16.mxu0 %v2534
            %2819 = vmatpush1.bf16.msra.mxu0 %v2533
            %2820 = vmatprep.subr.bf16.mxu0 %v2530
            %2821 = vmatpush1.bf16.msra.mxu0 %v2529
            %2822 = vmatprep.subr.bf16.mxu0 %v2526
            %2823 = vmatpush1.bf16.msra.mxu0 %v2525
            %2824 = vmatprep.subr.bf16.mxu0 %v2522
            %2825 = vmatpush1.bf16.msra.mxu0 %v2521
            %2826 = vmatprep.subr.bf16.mxu0 %v2518
            %2827 = vmatpush1.bf16.msra.mxu0 %v2517
            %2828 = vmatprep.subr.bf16.mxu0 %v2514
            %2829 = vmatpush1.bf16.msra.mxu0 %v2513
            %2830 = vmatprep.subr.bf16.mxu0 %v2510
            %2831 = vmatpush1.bf16.msra.mxu0 %v2509
            %2832 = vmatprep.subr.bf16.mxu0 %v2506
            %2833 = vmatpush1.bf16.msra.mxu0 %v2505
            %2834 = vmatprep.subr.bf16.mxu0 %v2566
            %2835 = vmatpush2.bf16.msra.mxu0 %v2565
            %2836 = vmatprep.subr.bf16.mxu0 %v2562
            %2837 = vmatpush2.bf16.msra.mxu0 %v2561
            %2838 = vmatprep.subr.bf16.mxu0 %v2558
            %2839 = vmatpush2.bf16.msra.mxu0 %v2557
            %2840 = vmatprep.subr.bf16.mxu0 %v2554
            %2841 = vmatpush2.bf16.msra.mxu0 %v2553
            %2842 = vmatprep.subr.bf16.mxu0 %v2550
            %2843 = vmatpush2.bf16.msra.mxu0 %v2549
            %2844 = vmatprep.subr.bf16.mxu0 %v2546
            %2845 = vmatpush2.bf16.msra.mxu0 %v2545
            %2846 = vmatprep.subr.bf16.mxu0 %v2542
            %2847 = vmatpush2.bf16.msra.mxu0 %v2541
            %2848 = vmatprep.subr.bf16.mxu0 %v2538
            %2849 = vmatpush2.bf16.msra.mxu0 %v2537
            %2850 = vmatprep.mubr.bf16.mxu0 %v1926
            %2851 = vmatmul.mubr.bf16.gmra.mxu0 %v1925
            %v2852 = vpop.f32.mrf.mxu0
            %v2853 = vadd.f32 %v2812, %v2852
            %v2854 = vpop.f32.mrf.mxu0
            %v2855 = vadd.f32 %v2814, %v2854
            %v2856 = vpop.f32.mrf.mxu0
            %v2857 = vpop.f32.mrf.mxu0
            %2858 = vdwg.mxu0
            %vm2859 = vcmask 1041408
            %v2860 = vsel %vm2859, %v2771, 0.0
            %v2861 = vrot.slane %v2860, 4
            %v2862 = vadd.f32 %v2860, %v2861
            %v2863 = vrot.slane %v2862, 2
            %v2864 = vadd.f32 %v2862, %v2863
            %v2865 = vrot.slane %v2864, 1
            %v2866 = vadd.f32 %v2864, %v2865
            %v2867 = vsel %vm2859, %v2773, 0.0
            %v2868 = vrot.slane %v2867, 4
            %v2869 = vadd.f32 %v2867, %v2868
            %v2870 = vrot.slane %v2869, 2
            %v2871 = vadd.f32 %v2869, %v2870
            %v2872 = vrot.slane %v2871, 1
            %v2873 = vadd.f32 %v2871, %v2872
            %v2874 = vsel %vm2859, %v2853, 0.0
            %v2875 = vrot.slane %v2874, 4
            %v2876 = vadd.f32 %v2874, %v2875
            %v2877 = vrot.slane %v2876, 2
            %v2878 = vadd.f32 %v2876, %v2877
            %v2879 = vrot.slane %v2878, 1
            %v2880 = vadd.f32 %v2878, %v2879
            %v2881 = vsel %vm2859, %v2855, 0.0
            %v2882 = vrot.slane %v2881, 4
            %v2883 = vadd.f32 %v2881, %v2882
            %v2884 = vrot.slane %v2883, 2
            %v2885 = vadd.f32 %v2883, %v2884
            %v2886 = vrot.slane %v2885, 1
            %v2887 = vadd.f32 %v2885, %v2886
            %v2888 = vrcp.pop 2.0
            %v2889 = vmul.f32 %v2866, %v2888
            %v2890 = vmul.f32 %v2873, %v2888
            %v2891 = vmul.f32 %v2880, %v2888
            %v2892 = vmul.f32 %v2887, %v2888
            %v2893 = vsub.f32 %v2771, %v2889
            %v2894 = vsub.f32 %v2773, %v2890
            %v2895 = vsub.f32 %v2853, %v2891
            %v2896 = vsub.f32 %v2855, %v2892
            %v2897 = vmul.f32 %v2893, %v2893
            %v2898 = vmul.f32 %v2894, %v2894
            %v2899 = vmul.f32 %v2895, %v2895
            %v2900 = vmul.f32 %v2896, %v2896
            %v2901 = vsel %vm2859, %v2897, 0.0
            %v2902 = vrot.slane %v2901, 4
            %v2903 = vadd.f32 %v2901, %v2902
            %v2904 = vrot.slane %v2903, 2
            %v2905 = vadd.f32 %v2903, %v2904
            %v2906 = vrot.slane %v2905, 1
            %v2907 = vadd.f32 %v2905, %v2906
            %v2908 = vsel %vm2859, %v2898, 0.0
            %v2909 = vrot.slane %v2908, 4
            %v2910 = vadd.f32 %v2908, %v2909
            %v2911 = vrot.slane %v2910, 2
            %v2912 = vadd.f32 %v2910, %v2911
            %v2913 = vrot.slane %v2912, 1
            %v2914 = vadd.f32 %v2912, %v2913
            %v2915 = vsel %vm2859, %v2899, 0.0
            %v2916 = vrot.slane %v2915, 4
            %v2917 = vadd.f32 %v2915, %v2916
            %v2918 = vrot.slane %v2917, 2
            %v2919 = vadd.f32 %v2917, %v2918
            %v2920 = vrot.slane %v2919, 1
            %v2921 = vadd.f32 %v2919, %v2920
            %v2922 = vsel %vm2859, %v2900, 0.0
            %v2923 = vrot.slane %v2922, 4
            %v2924 = vadd.f32 %v2922, %v2923
            %v2925 = vrot.slane %v2924, 2
            %v2926 = vadd.f32 %v2924, %v2925
            %v2927 = vrot.slane %v2926, 1
            %v2928 = vadd.f32 %v2926, %v2927
            %v2929 = vmul.f32 %v2907, %v2888
            %v2930 = vmul.f32 %v2914, %v2888
            %v2931 = vmul.f32 %v2921, %v2888
            %v2932 = vmul.f32 %v2928, %v2888
            %v2933 = vadd.f32 %v2929, 1e-05
            %v2934 = vadd.f32 %v2930, 1e-05
            %v2935 = vadd.f32 %v2931, 1e-05
            %v2936 = vadd.f32 %v2932, 1e-05
            %v2937 = vrsqrt.pop %v2933
            %v2938 = vrsqrt.pop %v2934
            %v2939 = vrsqrt.pop %v2935
            %v2940 = vrsqrt.pop %v2936
            %v2941 = vmul.f32 %v2893, %v2937
            %v2942 = vmul.f32 %v2894, %v2938
            %v2943 = vmul.f32 %v2895, %v2939
            %v2944 = vmul.f32 %v2896, %v2940
            %v2945 = vld [vmem:[%s5] sm:$0xf]
            %v2947 = vlaneseq
            %v2948 = vshrl.u32 %v2947, 7
            %v2949 = vsub.s32 0, %v2948
            %v2950 = vrot.slane %v2945, %v2949
            %v2951 = vlaneseq
            %v2952 = vshrl.u32 %v2951, 7
            %v2953 = vsub.s32 1, %v2952
            %v2954 = vrot.slane %v2945, %v2953
            %v2955 = vlaneseq
            %v2956 = vshrl.u32 %v2955, 7
            %v2957 = vsub.s32 2, %v2956
            %v2958 = vrot.slane %v2945, %v2957
            %v2959 = vlaneseq
            %v2960 = vshrl.u32 %v2959, 7
            %v2961 = vsub.s32 3, %v2960
            %v2962 = vrot.slane %v2945, %v2961
            %v2967 = vmul.f32 %v2941, %v2950
            %v2968 = vmul.f32 %v2942, %v2954
            %v2969 = vmul.f32 %v2943, %v2958
            %v2970 = vmul.f32 %v2944, %v2962
            %v2971 = vld [vmem:[%s6] sm:$0xf]
            %v2973 = vlaneseq
            %v2974 = vshrl.u32 %v2973, 7
            %v2975 = vsub.s32 0, %v2974
            %v2976 = vrot.slane %v2971, %v2975
            %v2977 = vlaneseq
            %v2978 = vshrl.u32 %v2977, 7
            %v2979 = vsub.s32 1, %v2978
            %v2980 = vrot.slane %v2971, %v2979
            %v2981 = vlaneseq
            %v2982 = vshrl.u32 %v2981, 7
            %v2983 = vsub.s32 2, %v2982
            %v2984 = vrot.slane %v2971, %v2983
            %v2985 = vlaneseq
            %v2986 = vshrl.u32 %v2985, 7
            %v2987 = vsub.s32 3, %v2986
            %v2988 = vrot.slane %v2971, %v2987
            %v2993 = vadd.f32 %v2967, %v2976
            %v2994 = vadd.f32 %v2968, %v2980
            %v2995 = vadd.f32 %v2969, %v2984
            %v2996 = vadd.f32 %v2970, %v2988
            %v2997 = vmax.f32 %v2993, 0.0
            %v2998 = vmax.f32 %v2994, 0.0
            %v2999 = vmax.f32 %v2995, 0.0
            %v3000 = vmax.f32 %v2996, 0.0
            %v3001 = vpack.c.bf16 %v2997, %v2997
            %v3002 = vpack.c.bf16 %v2998, %v2998
            %v3003 = vpack.c.bf16 %v2999, %v2999
            %v3004 = vpack.c.bf16 %v3000, %v3000
            %v3005 = vld [vmem:[%s7] sm:$0xf]
            %v3006 = vld [vmem:[%s7 + $0x4] sm:$0xf]
            %v3007 = vld [vmem:[%s7 + $0x8] sm:$0xf]
            %v3008 = vld [vmem:[%s7 + $0xc] sm:$0xf]
            %v3009 = vld [vmem:[%s7 + $0x10] sm:$0xf]
            %v3010 = vld [vmem:[%s7 + $0x14] sm:$0xf]
            %v3011 = vld [vmem:[%s7 + $0x18] sm:$0xf]
            %v3012 = vld [vmem:[%s7 + $0x1c] sm:$0xf]
            %v3013 = vld [vmem:[%s7 + $0x20] sm:$0xf]
            %v3014 = vld [vmem:[%s7 + $0x24] sm:$0xf]
            %v3015 = vld [vmem:[%s7 + $0x28] sm:$0xf]
            %v3016 = vld [vmem:[%s7 + $0x2c] sm:$0xf]
            %v3017 = vld [vmem:[%s7 + $0x30] sm:$0xf]
            %v3018 = vld [vmem:[%s7 + $0x34] sm:$0xf]
            %v3019 = vld [vmem:[%s7 + $0x38] sm:$0xf]
            %v3020 = vld [vmem:[%s7 + $0x3c] sm:$0xf]
            %v3021 = vld [vmem:[%s7 + $0x40] sm:$0xf]
            %v3022 = vld [vmem:[%s7 + $0x44] sm:$0xf]
            %v3023 = vld [vmem:[%s7 + $0x48] sm:$0xf]
            %v3024 = vld [vmem:[%s7 + $0x4c] sm:$0xf]
            %v3025 = vld [vmem:[%s7 + $0x50] sm:$0xf]
            %v3026 = vld [vmem:[%s7 + $0x54] sm:$0xf]
            %v3027 = vld [vmem:[%s7 + $0x58] sm:$0xf]
            %v3028 = vld [vmem:[%s7 + $0x5c] sm:$0xf]
            %v3029 = vld [vmem:[%s7 + $0x60] sm:$0xf]
            %v3030 = vld [vmem:[%s7 + $0x64] sm:$0xf]
            %v3031 = vld [vmem:[%s7 + $0x68] sm:$0xf]
            %v3032 = vld [vmem:[%s7 + $0x6c] sm:$0xf]
            %v3033 = vld [vmem:[%s7 + $0x70] sm:$0xf]
            %v3034 = vld [vmem:[%s7 + $0x74] sm:$0xf]
            %v3035 = vld [vmem:[%s7 + $0x78] sm:$0xf]
            %v3036 = vld [vmem:[%s7 + $0x7c] sm:$0xf]
            %v3037 = vld [vmem:[%s7 + $0x80] sm:$0xf]
            %v3038 = vld [vmem:[%s7 + $0x84] sm:$0xf]
            %v3039 = vld [vmem:[%s7 + $0x88] sm:$0xf]
            %v3040 = vld [vmem:[%s7 + $0x8c] sm:$0xf]
            %v3041 = vld [vmem:[%s7 + $0x90] sm:$0xf]
            %v3042 = vld [vmem:[%s7 + $0x94] sm:$0xf]
            %v3043 = vld [vmem:[%s7 + $0x98] sm:$0xf]
            %v3044 = vld [vmem:[%s7 + $0x9c] sm:$0xf]
            %v3045 = vld [vmem:[%s7 + $0xa0] sm:$0xf]
            %v3046 = vld [vmem:[%s7 + $0xa4] sm:$0xf]
            %v3047 = vld [vmem:[%s7 + $0xa8] sm:$0xf]
            %v3048 = vld [vmem:[%s7 + $0xac] sm:$0xf]
            %v3049 = vld [vmem:[%s7 + $0xb0] sm:$0xf]
            %v3050 = vld [vmem:[%s7 + $0xb4] sm:$0xf]
            %v3051 = vld [vmem:[%s7 + $0xb8] sm:$0xf]
            %v3052 = vld [vmem:[%s7 + $0xbc] sm:$0xf]
            %v3053 = vld [vmem:[%s7 + $0xc0] sm:$0xf]
            %v3054 = vld [vmem:[%s7 + $0xc4] sm:$0xf]
            %v3055 = vld [vmem:[%s7 + $0xc8] sm:$0xf]
            %v3056 = vld [vmem:[%s7 + $0xcc] sm:$0xf]
            %v3057 = vld [vmem:[%s7 + $0xd0] sm:$0xf]
            %v3058 = vld [vmem:[%s7 + $0xd4] sm:$0xf]
            %v3059 = vld [vmem:[%s7 + $0xd8] sm:$0xf]
            %v3060 = vld [vmem:[%s7 + $0xdc] sm:$0xf]
            %v3061 = vld [vmem:[%s7 + $0xe0] sm:$0xf]
            %v3062 = vld [vmem:[%s7 + $0xe4] sm:$0xf]
            %v3063 = vld [vmem:[%s7 + $0xe8] sm:$0xf]
            %v3064 = vld [vmem:[%s7 + $0xec] sm:$0xf]
            %v3065 = vld [vmem:[%s7 + $0xf0] sm:$0xf]
            %v3066 = vld [vmem:[%s7 + $0xf4] sm:$0xf]
            %v3067 = vld [vmem:[%s7 + $0xf8] sm:$0xf]
            %v3068 = vld [vmem:[%s7 + $0xfc] sm:$0xf]
            %v3133 = vunpack.c.l.b16 %v3005
            %v3134 = vunpack.c.l.b16 %v3006
            %v3135 = vunpack.c.l.b16 %v3007
            %v3136 = vunpack.c.l.b16 %v3008
            %v3137 = vunpack.c.l.b16 %v3009
            %v3138 = vunpack.c.l.b16 %v3010
            %v3139 = vunpack.c.l.b16 %v3011
            %v3140 = vunpack.c.l.b16 %v3012
            %v3141 = vunpack.c.l.b16 %v3013
            %v3142 = vunpack.c.l.b16 %v3014
            %v3143 = vunpack.c.l.b16 %v3015
            %v3144 = vunpack.c.l.b16 %v3016
            %v3145 = vunpack.c.l.b16 %v3017
            %v3146 = vunpack.c.l.b16 %v3018
            %v3147 = vunpack.c.l.b16 %v3019
            %v3148 = vunpack.c.l.b16 %v3020
            %v3149 = vunpack.c.l.b16 %v3021
            %v3150 = vunpack.c.l.b16 %v3022
            %v3151 = vunpack.c.l.b16 %v3023
            %v3152 = vunpack.c.l.b16 %v3024
            %v3153 = vunpack.c.l.b16 %v3025
            %v3154 = vunpack.c.l.b16 %v3026
            %v3155 = vunpack.c.l.b16 %v3027
            %v3156 = vunpack.c.l.b16 %v3028
            %v3157 = vunpack.c.l.b16 %v3029
            %v3158 = vunpack.c.l.b16 %v3030
            %v3159 = vunpack.c.l.b16 %v3031
            %v3160 = vunpack.c.l.b16 %v3032
            %v3161 = vunpack.c.l.b16 %v3033
            %v3162 = vunpack.c.l.b16 %v3034
            %v3163 = vunpack.c.l.b16 %v3035
            %v3164 = vunpack.c.l.b16 %v3036
            %v3165 = vunpack.c.l.b16 %v3037
            %v3166 = vunpack.c.l.b16 %v3038
            %v3167 = vunpack.c.l.b16 %v3039
            %v3168 = vunpack.c.l.b16 %v3040
            %v3169 = vunpack.c.l.b16 %v3041
            %v3170 = vunpack.c.l.b16 %v3042
            %v3171 = vunpack.c.l.b16 %v3043
            %v3172 = vunpack.c.l.b16 %v3044
            %v3173 = vunpack.c.l.b16 %v3045
            %v3174 = vunpack.c.l.b16 %v3046
            %v3175 = vunpack.c.l.b16 %v3047
            %v3176 = vunpack.c.l.b16 %v3048
            %v3177 = vunpack.c.l.b16 %v3049
            %v3178 = vunpack.c.l.b16 %v3050
            %v3179 = vunpack.c.l.b16 %v3051
            %v3180 = vunpack.c.l.b16 %v3052
            %v3181 = vunpack.c.l.b16 %v3053
            %v3182 = vunpack.c.l.b16 %v3054
            %v3183 = vunpack.c.l.b16 %v3055
            %v3184 = vunpack.c.l.b16 %v3056
            %v3185 = vunpack.c.l.b16 %v3057
            %v3186 = vunpack.c.l.b16 %v3058
            %v3187 = vunpack.c.l.b16 %v3059
            %v3188 = vunpack.c.l.b16 %v3060
            %v3189 = vunpack.c.l.b16 %v3061
            %v3190 = vunpack.c.l.b16 %v3062
            %v3191 = vunpack.c.l.b16 %v3063
            %v3192 = vunpack.c.l.b16 %v3064
            %v3193 = vunpack.c.l.b16 %v3065
            %v3194 = vunpack.c.l.b16 %v3066
            %v3195 = vunpack.c.l.b16 %v3067
            %v3196 = vunpack.c.l.b16 %v3068
            %v3197 = vpack.c.b16 %v3134, %v3133
            %v3198 = vpack.c.b16 %v3136, %v3135
            %v3199 = vpack.c.b16 %v3138, %v3137
            %v3200 = vpack.c.b16 %v3140, %v3139
            %v3201 = vpack.c.b16 %v3142, %v3141
            %v3202 = vpack.c.b16 %v3144, %v3143
            %v3203 = vpack.c.b16 %v3146, %v3145
            %v3204 = vpack.c.b16 %v3148, %v3147
            %v3205 = vpack.c.b16 %v3150, %v3149
            %v3206 = vpack.c.b16 %v3152, %v3151
            %v3207 = vpack.c.b16 %v3154, %v3153
            %v3208 = vpack.c.b16 %v3156, %v3155
            %v3209 = vpack.c.b16 %v3158, %v3157
            %v3210 = vpack.c.b16 %v3160, %v3159
            %v3211 = vpack.c.b16 %v3162, %v3161
            %v3212 = vpack.c.b16 %v3164, %v3163
            %v3213 = vpack.c.b16 %v3166, %v3165
            %v3214 = vpack.c.b16 %v3168, %v3167
            %v3215 = vpack.c.b16 %v3170, %v3169
            %v3216 = vpack.c.b16 %v3172, %v3171
            %v3217 = vpack.c.b16 %v3174, %v3173
            %v3218 = vpack.c.b16 %v3176, %v3175
            %v3219 = vpack.c.b16 %v3178, %v3177
            %v3220 = vpack.c.b16 %v3180, %v3179
            %v3221 = vpack.c.b16 %v3182, %v3181
            %v3222 = vpack.c.b16 %v3184, %v3183
            %v3223 = vpack.c.b16 %v3186, %v3185
            %v3224 = vpack.c.b16 %v3188, %v3187
            %v3225 = vpack.c.b16 %v3190, %v3189
            %v3226 = vpack.c.b16 %v3192, %v3191
            %v3227 = vpack.c.b16 %v3194, %v3193
            %v3228 = vpack.c.b16 %v3196, %v3195
            %3261 = vmatprep.subr.bf16.mxu0 0
            %3262 = vmatpush1.bf16.msra.mxu0 %v3204
            %3263 = vmatprep.subr.bf16.mxu0 0
            %3264 = vmatpush1.bf16.msra.mxu0 %v3203
            %3265 = vmatprep.subr.bf16.mxu0 0
            %3266 = vmatpush1.bf16.msra.mxu0 %v3202
            %3267 = vmatprep.subr.bf16.mxu0 0
            %3268 = vmatpush1.bf16.msra.mxu0 %v3201
            %3269 = vmatprep.subr.bf16.mxu0 0
            %3270 = vmatpush1.bf16.msra.mxu0 %v3200
            %3271 = vmatprep.subr.bf16.mxu0 0
            %3272 = vmatpush1.bf16.msra.mxu0 %v3199
            %3273 = vmatprep.subr.bf16.mxu0 0
            %3274 = vmatpush1.bf16.msra.mxu0 %v3198
            %3275 = vmatprep.subr.bf16.mxu0 0
            %3276 = vmatpush1.bf16.msra.mxu0 %v3197
            %3277 = vmatprep.subr.bf16.mxu0 0
            %3278 = vmatpush2.bf16.msra.mxu0 %v3212
            %3279 = vmatprep.subr.bf16.mxu0 0
            %3280 = vmatpush2.bf16.msra.mxu0 %v3211
            %3281 = vmatprep.subr.bf16.mxu0 0
            %3282 = vmatpush2.bf16.msra.mxu0 %v3210
            %3283 = vmatprep.subr.bf16.mxu0 0
            %3284 = vmatpush2.bf16.msra.mxu0 %v3209
            %3285 = vmatprep.subr.bf16.mxu0 0
            %3286 = vmatpush2.bf16.msra.mxu0 %v3208
            %3287 = vmatprep.subr.bf16.mxu0 0
            %3288 = vmatpush2.bf16.msra.mxu0 %v3207
            %3289 = vmatprep.subr.bf16.mxu0 0
            %3290 = vmatpush2.bf16.msra.mxu0 %v3206
            %3291 = vmatprep.subr.bf16.mxu0 0
            %3292 = vmatpush2.bf16.msra.mxu0 %v3205
            %3293 = vmatprep.mubr.bf16.mxu0 %v3002
            %3294 = vmatmul.mubr.bf16.gmra.mxu0 %v3001
            %v3295 = vpop.f32.mrf.mxu0
            %v3296 = vadd.f32 0.0, %v3295
            %v3297 = vpop.f32.mrf.mxu0
            %v3298 = vpop.f32.mrf.mxu0
            %v3299 = vpop.f32.mrf.mxu0
            %3300 = vdwg.mxu0
            %3301 = vmatprep.subr.bf16.mxu0 0
            %3302 = vmatpush1.bf16.msra.mxu0 %v3220
            %3303 = vmatprep.subr.bf16.mxu0 0
            %3304 = vmatpush1.bf16.msra.mxu0 %v3219
            %3305 = vmatprep.subr.bf16.mxu0 0
            %3306 = vmatpush1.bf16.msra.mxu0 %v3218
            %3307 = vmatprep.subr.bf16.mxu0 0
            %3308 = vmatpush1.bf16.msra.mxu0 %v3217
            %3309 = vmatprep.subr.bf16.mxu0 0
            %3310 = vmatpush1.bf16.msra.mxu0 %v3216
            %3311 = vmatprep.subr.bf16.mxu0 0
            %3312 = vmatpush1.bf16.msra.mxu0 %v3215
            %3313 = vmatprep.subr.bf16.mxu0 0
            %3314 = vmatpush1.bf16.msra.mxu0 %v3214
            %3315 = vmatprep.subr.bf16.mxu0 0
            %3316 = vmatpush1.bf16.msra.mxu0 %v3213
            %3317 = vmatprep.subr.bf16.mxu0 0
            %3318 = vmatpush2.bf16.msra.mxu0 %v3228
            %3319 = vmatprep.subr.bf16.mxu0 0
            %3320 = vmatpush2.bf16.msra.mxu0 %v3227
            %3321 = vmatprep.subr.bf16.mxu0 0
            %3322 = vmatpush2.bf16.msra.mxu0 %v3226
            %3323 = vmatprep.subr.bf16.mxu0 0
            %3324 = vmatpush2.bf16.msra.mxu0 %v3225
            %3325 = vmatprep.subr.bf16.mxu0 0
            %3326 = vmatpush2.bf16.msra.mxu0 %v3224
            %3327 = vmatprep.subr.bf16.mxu0 0
            %3328 = vmatpush2.bf16.msra.mxu0 %v3223
            %3329 = vmatprep.subr.bf16.mxu0 0
            %3330 = vmatpush2.bf16.msra.mxu0 %v3222
            %3331 = vmatprep.subr.bf16.mxu0 0
            %3332 = vmatpush2.bf16.msra.mxu0 %v3221
            %3333 = vmatprep.mubr.bf16.mxu0 %v3004
            %3334 = vmatmul.mubr.bf16.gmra.mxu0 %v3003
            %v3335 = vpop.f32.mrf.mxu0
            %v3336 = vadd.f32 %v3296, %v3335
            %v3337 = vpop.f32.mrf.mxu0
            %v3338 = vpop.f32.mrf.mxu0
            %v3339 = vpop.f32.mrf.mxu0
            %3340 = vdwg.mxu0
            %v3341 = vsel %vm2859, %v3336, 0.0
            %v3342 = vrot.slane %v3341, 4
            %v3343 = vadd.f32 %v3341, %v3342
            %v3344 = vrot.slane %v3343, 2
            %v3345 = vadd.f32 %v3343, %v3344
            %v3346 = vrot.slane %v3345, 1
            %v3347 = vadd.f32 %v3345, %v3346
            %v3348 = vmul.f32 %v3347, %v2888
            %v3349 = vsub.f32 %v3336, %v3348
            %v3350 = vmul.f32 %v3349, %v3349
            %v3351 = vsel %vm2859, %v3350, 0.0
            %v3352 = vrot.slane %v3351, 4
            %v3353 = vadd.f32 %v3351, %v3352
            %v3354 = vrot.slane %v3353, 2
            %v3355 = vadd.f32 %v3353, %v3354
            %v3356 = vrot.slane %v3355, 1
            %v3357 = vadd.f32 %v3355, %v3356
            %v3358 = vmul.f32 %v3357, %v2888
            %v3359 = vadd.f32 %v3358, 1e-05
            %v3360 = vrsqrt.pop %v3359
            %v3361 = vmul.f32 %v3349, %v3360
            %v3362 = vld [vmem:[%s8] sm:$0x1]
            %v3364 = vlaneseq
            %v3365 = vshrl.u32 %v3364, 7
            %v3366 = vsub.s32 0, %v3365
            %v3367 = vrot.slane %v3362, %v3366
            %v3369 = vmul.f32 %v3361, %v3367
            %v3370 = vld [vmem:[%s9] sm:$0x1]
            %v3372 = vlaneseq
            %v3373 = vshrl.u32 %v3372, 7
            %v3374 = vsub.s32 0, %v3373
            %v3375 = vrot.slane %v3370, %v3374
            %v3377 = vadd.f32 %v3369, %v3375
            %3378 = vst [vmem:[#allocation10] sm:$0x3] %v3377
          $region88: #{encode_project_apply.1} parent=83 // pred_fallthru
            _
        $region84: #{encode_project_apply.1} parent=59 // pred_fallthru
          _
        // Predicated region
        $region89: #{encode_project_apply.1} parent=59 // pred_check
          %p3379 = pneg %p269
        $region90: #{encode_project_apply.1} parent=59 // pred_check_branch
          %3381 = sbr.rel (%p3379) target = $region92
        $region91: #{encode_project_apply.1} parent=59 // pred_region
          %s3383 = ssub.s32 128, 128
          %3384 = vsyncadd [#allocation9], %s3383
          %s3386 = sshll.u32 [#allocation8], 4
          %s3387 = int_to_ptr.vmem [resolvable:$true] %s3386
          %3389 = dma.vmem_to_hbm [thread:$0]  %s3387, 128, %s10, [#allocation9]
        $region92: #{encode_project_apply.1} parent=59 // pred_fallthru
          _
        // Predicated region
        $region93: #{encode_project_apply.1} parent=59 // pred_check
          %p3390 = pneg %p290
        $region94: #{encode_project_apply.1} parent=59 // pred_check_branch
          %3392 = sbr.rel (%p3390) target = $region96
        $region95: #{encode_project_apply.1} parent=59 // pred_region
          %s3394 = ssub.s32 32, 32
          %3395 = vsyncadd [#allocation11], %s3394
          %s3397 = sshll.u32 [#allocation10], 4
          %s3398 = int_to_ptr.vmem [resolvable:$true] %s3397
          %3400 = dma.vmem_to_hbm [thread:$0]  %s3398, 32, %s11, [#allocation11]
        $region96: #{encode_project_apply.1} parent=59 // pred_fallthru
          _
        // Predicated region
        $region97: #{encode_project_apply.1} parent=59 // pred_check
          %p3401 = pneg %p269
        $region98: #{encode_project_apply.1} parent=59 // pred_check_branch
          %3403 = sbr.rel (%p3401) target = $region100
        $region99: #{encode_project_apply.1} parent=59 // pred_region
          %3404 = dma.done [#allocation9], 128
        $region100: #{encode_project_apply.1} parent=59 // pred_fallthru
          _
        // Predicated region
        $region101: #{encode_project_apply.1} parent=59 // pred_check
          %p3405 = pneg %p290
        $region102: #{encode_project_apply.1} parent=59 // pred_check_branch
          %3407 = sbr.rel (%p3405) target = $region104
        $region103: #{encode_project_apply.1} parent=59 // pred_region
          %3408 = dma.done [#allocation11], 32
        $region104: #{encode_project_apply.1} parent=59 // pred_fallthru
          _
      $region60: #{encode_project_apply.1} parent=5 // pred_fallthru
        _
      %p3409 = scmp.le.s32.totalorder 2, %s20
      // Predicated region
      $region105: #{encode_project_apply.1} parent=5 // pred_check
        %p3410 = pneg %p3409
      $region106: #{encode_project_apply.1} parent=5 // pred_check_branch
        %3412 = sbr.rel (%p3410) target = $region108
      $region107: #{encode_project_apply.1} parent=5 // pred_region
        %s3413 = ssub.s32 %s20, 2
      $region108: #{encode_project_apply.1} parent=5 // pred_fallthru
        _
    $region6: #{encode_project_apply.1} parent=1 // loop_footer
      %s24 = sadd.s32 1, %s20
    $region7: #{encode_project_apply.1} parent=1 // loop_footer_branch
      %19 = sbr.rel target = $region3
    $region8: #{encode_project_apply.1} parent=1 // loop_exit
      _
    %3414 = vsyncpa [#allocation9], 1
    %s3415 = scalar_lea.sflag [#allocation9], 1
    %3416 = vsyncpa %s3415, 1
    %3417 = vsyncpa [#allocation11], 1

</llo_original>
